<compile_context>
chip_gen: v7x
topology: tpu7x:2x2x1
jax: 0.10.0
libtpu: 0.0.40
codegen_flags: <defaults>
</compile_context>

<pallas_src>
import jax
import jax.numpy as jnp
from jax.experimental import pallas as pl
from jax.experimental.pallas import tpu as pltpu


def _round_up(v, m):
    return ((v + m - 1) // m) * m


def _pick_tk(n_pad, max_tk):
    """Largest multiple of 128 that divides n_pad and is <= max_tk."""
    best = n_pad
    tk = 128
    while tk <= min(max_tk, n_pad):
        if n_pad % tk == 0:
            best = tk
        tk += 128
    return best


def _vmem_limit(need_bytes):
    # double-buffered blocks + scratch, generous headroom, v7x-physical safe.
    return int(min(max(2 * need_bytes + (8 << 20), 32 << 20), 64 << 20))


# ----------------------------- kernels --------------------------------------

def dense_relu_kernel(x_ref, w_ref, b_ref, o_ref):
    acc = jnp.dot(x_ref[...], w_ref[...], preferred_element_type=jnp.float32)
    o_ref[...] = jnp.maximum(acc + b_ref[...], 0.0)


def dense_relu2_kernel(x_ref, w_ref, b_ref, o_ref, obf_ref):
    acc = jnp.dot(x_ref[...], w_ref[...], preferred_element_type=jnp.float32)
    h = jnp.maximum(acc + b_ref[...], 0.0)
    o_ref[...] = h
    obf_ref[...] = h.astype(jnp.bfloat16)


def prop_kernel(ahat_ref, xbf_ref, wcat_ref, bcat_ref,
                xcand_ref, y_ref, yy2bf_ref, m_acc):
    k = pl.program_id(1)

    @pl.when(k == 0)
    def _():
        m_acc[...] = jnp.zeros_like(m_acc)

    # M += A_hat[i, k-block] @ X[k-block]   (bf16 operands, f32 accumulate)
    m_acc[...] += jnp.dot(ahat_ref[...], xbf_ref[...],
                          preferred_element_type=jnp.float32)

    @pl.when(k == pl.num_programs(1) - 1)
    def _():
        hp = xcand_ref.shape[1]
        # [X_, Y] = relu(M @ [W_conv | W_gg] + [b_conv | b_gg])  (one wide matmul)
        h = jnp.dot(m_acc[...].astype(jnp.bfloat16), wcat_ref[...],
                    preferred_element_type=jnp.float32)
        h = jnp.maximum(h + bcat_ref[...], 0.0)
        y = h[:, hp:]
        xcand_ref[...] = h[:, :hp]
        y_ref[...] = y
        yy2bf_ref[:, :hp] = y.astype(jnp.bfloat16)
        yy2bf_ref[:, hp:] = (y * y).astype(jnp.bfloat16)


def gate_kernel(asrc_ref, yy2bf_ref, y_ref, x_ref, xcand_ref, rs_ref,
                xf_ref, xbf_ref, z_acc):
    k = pl.program_id(1)

    @pl.when(k == 0)
    def _():
        z_acc[...] = jnp.zeros_like(z_acc)

    # [Z1, Z2] += A_src[i, k-block] @ [Y | Y^2][k-block]
    z_acc[...] += jnp.dot(asrc_ref[...], yy2bf_ref[...],
                          preferred_element_type=jnp.float32)

    @pl.when(k == pl.num_programs(1) - 1)
    def _():
        hp = x_ref.shape[1]
        z1 = z_acc[:, :hp]
        z2 = z_acc[:, hp:]
        y = y_ref[...]                       # f32 Y for the cancellation-prone combine
        deg = rs_ref[:, 0:1]                 # out-degree
        invdeg = rs_ref[:, 1:2]              # 1 / max(deg, 1)
        s = jnp.maximum(deg * (y * y) - 2.0 * y * z1 + z2, 0.0)
        tau = jnp.tanh(s * invdeg)
        xn = (1.0 - tau) * x_ref[...] + tau * xcand_ref[...]
        xf_ref[...] = xn
        xbf_ref[...] = xn.astype(jnp.bfloat16)


# ----------------------------- pallas_call wrappers --------------------------

def _dense_relu(x_bf, w_bf, b_f32, tm, emit_bf16):
    n_pad, kdim = x_bf.shape
    ow = w_bf.shape[1]
    need = (2 * (tm * kdim * 2 + kdim * ow * 2 + ow * 4 + tm * ow * 4)
            + (2 * tm * ow * 2 if emit_bf16 else 0))
    if emit_bf16:
        kern = dense_relu2_kernel
        out_shape = (jax.ShapeDtypeStruct((n_pad, ow), jnp.float32),
                     jax.ShapeDtypeStruct((n_pad, ow), jnp.bfloat16))
        out_specs = (pl.BlockSpec((tm, ow), lambda i: (i, 0)),
                     pl.BlockSpec((tm, ow), lambda i: (i, 0)))
    else:
        kern = dense_relu_kernel
        out_shape = jax.ShapeDtypeStruct((n_pad, ow), jnp.float32)
        out_specs = pl.BlockSpec((tm, ow), lambda i: (i, 0))
    return pl.pallas_call(
        kern,
        out_shape=out_shape,
        grid_spec=pltpu.PrefetchScalarGridSpec(
            num_scalar_prefetch=0,
            grid=(n_pad // tm,),
            in_specs=[pl.BlockSpec((tm, kdim), lambda i: (i, 0)),
                      pl.BlockSpec((kdim, ow), lambda i: (0, 0)),
                      pl.BlockSpec((1, ow), lambda i: (0, 0))],
            out_specs=out_specs),
        compiler_params=pltpu.CompilerParams(
            dimension_semantics=("parallel",),
            vmem_limit_bytes=_vmem_limit(need)),
    )(x_bf, w_bf, b_f32)


def _prop_layer(a_hat_bf, x_bf, w_cat_bf, b_cat, tm, tk):
    n_pad = a_hat_bf.shape[0]
    hp = x_bf.shape[1]
    ce = pl.CostEstimate(
        flops=2 * n_pad * n_pad * hp + 4 * n_pad * hp * hp,
        transcendentals=0,
        bytes_accessed=2 * n_pad * n_pad + 2 * n_pad * hp + 4 * hp * hp
                       + 8 * n_pad * hp + 4 * n_pad * hp)
    need = (2 * (tm * tk * 2 + tk * hp * 2 + hp * 2 * hp * 2 + 2 * hp * 4
                 + tm * hp * 4 + tm * hp * 4 + tm * 2 * hp * 2)
            + tm * hp * 4)
    return pl.pallas_call(
        prop_kernel,
        out_shape=(jax.ShapeDtypeStruct((n_pad, hp), jnp.float32),       # X_ cand (f32)
                   jax.ShapeDtypeStruct((n_pad, hp), jnp.float32),       # Y (f32)
                   jax.ShapeDtypeStruct((n_pad, 2 * hp), jnp.bfloat16)), # [Y|Y^2] bf16
        grid_spec=pltpu.PrefetchScalarGridSpec(
            num_scalar_prefetch=0,
            grid=(n_pad // tm, n_pad // tk),
            in_specs=[pl.BlockSpec((tm, tk), lambda i, k: (i, k)),       # A_hat (streamed)
                      pl.BlockSpec((tk, hp), lambda i, k: (k, 0)),       # X bf16 (K-tiled)
                      pl.BlockSpec((hp, 2 * hp), lambda i, k: (0, 0)),   # [W_conv|W_gg]
                      pl.BlockSpec((1, 2 * hp), lambda i, k: (0, 0))],   # [b_conv|b_gg]
            out_specs=(pl.BlockSpec((tm, hp), lambda i, k: (i, 0)),
                       pl.BlockSpec((tm, hp), lambda i, k: (i, 0)),
                       pl.BlockSpec((tm, 2 * hp), lambda i, k: (i, 0))),
            scratch_shapes=[pltpu.VMEM((tm, hp), jnp.float32)]),
        compiler_params=pltpu.CompilerParams(
            dimension_semantics=("parallel", "arbitrary"),
            vmem_limit_bytes=_vmem_limit(need)),
        cost_estimate=ce,
    )(a_hat_bf, x_bf, w_cat_bf, b_cat)


def _gate_layer(a_src_bf, yy2_bf, y_f32, x_f32, x_cand, row_stats, tm, tk):
    n_pad = a_src_bf.shape[0]
    hp = x_f32.shape[1]
    ce = pl.CostEstimate(
        flops=4 * n_pad * n_pad * hp + 10 * n_pad * hp,
        transcendentals=n_pad * hp,
        bytes_accessed=2 * n_pad * n_pad + 2 * n_pad * 2 * hp + 12 * n_pad * hp
                       + 4 * n_pad * 128 + 6 * n_pad * hp)
    need = (2 * (tm * tk * 2 + tk * 2 * hp * 2 + 3 * tm * hp * 4 + tm * 128 * 4
                 + tm * hp * 4 + tm * hp * 2)
            + tm * 2 * hp * 4)
    return pl.pallas_call(
        gate_kernel,
        out_shape=(jax.ShapeDtypeStruct((n_pad, hp), jnp.float32),    # X new (f32, aliased)
                   jax.ShapeDtypeStruct((n_pad, hp), jnp.bfloat16)),  # X new (bf16)
        grid_spec=pltpu.PrefetchScalarGridSpec(
            num_scalar_prefetch=0,
            grid=(n_pad // tm, n_pad // tk),
            in_specs=[pl.BlockSpec((tm, tk), lambda i, k: (i, k)),        # A_src (streamed)
                      pl.BlockSpec((tk, 2 * hp), lambda i, k: (k, 0)),    # [Y|Y^2] bf16 (K-tiled)
                      pl.BlockSpec((tm, hp), lambda i, k: (i, 0)),        # Y f32 tile
                      pl.BlockSpec((tm, hp), lambda i, k: (i, 0)),        # X f32 tile
                      pl.BlockSpec((tm, hp), lambda i, k: (i, 0)),        # X_ cand tile
                      pl.BlockSpec((tm, 128), lambda i, k: (i, 0))],      # [deg | 1/deg | 0...]
            out_specs=(pl.BlockSpec((tm, hp), lambda i, k: (i, 0)),
                       pl.BlockSpec((tm, hp), lambda i, k: (i, 0))),
            scratch_shapes=[pltpu.VMEM((tm, 2 * hp), jnp.float32)]),
        compiler_params=pltpu.CompilerParams(
            dimension_semantics=("parallel", "arbitrary"),
            vmem_limit_bytes=_vmem_limit(need)),
        cost_estimate=ce,
        input_output_aliases={3: 0},     # in-place X update each layer
    )(a_src_bf, yy2_bf, y_f32, x_f32, x_cand, row_stats)


# ----------------------------- graph prep & forward --------------------------

def build_graph_mats(edge_index, n_nodes, n_pad):
    """Per-graph constants. Build ONCE per graph and reuse across forward calls.

    Returns (A_hat bf16 [n_pad,n_pad], A_src bf16 [n_pad,n_pad],
             row_stats f32 [n_pad,128] with col0=out-degree, col1=1/max(deg,1)).
    """
    src, dst = edge_index[0], edge_index[1]
    loop = jnp.arange(n_nodes, dtype=src.dtype)
    src_sl = jnp.concatenate([src, loop])
    dst_sl = jnp.concatenate([dst, loop])
    ones = jnp.ones(src_sl.shape[0], jnp.float32)
    deg_in = jnp.zeros((n_pad,), jnp.float32).at[dst_sl].add(ones)
    dinv = jnp.where(deg_in > 0, 1.0 / jnp.sqrt(deg_in), 0.0)
    norm = (dinv[src_sl] * dinv[dst_sl]).astype(jnp.bfloat16)
    # Scatter directly into bf16 (degree math stays f32): no f32 N^2 intermediate.
    a_hat = jnp.zeros((n_pad, n_pad), jnp.bfloat16).at[dst_sl, src_sl].add(norm)
    a_src = jnp.zeros((n_pad, n_pad), jnp.bfloat16).at[src, dst].add(
        jnp.ones(src.shape[0], jnp.bfloat16))
    deg_out = jnp.zeros((n_pad,), jnp.float32).at[src].add(
        jnp.ones(src.shape[0], jnp.float32))
    inv_deg = 1.0 / jnp.maximum(deg_out, 1.0)
    row_stats = (jnp.zeros((n_pad, 128), jnp.float32)
                 .at[:, 0].set(deg_out).at[:, 1].set(inv_deg))
    return a_hat, a_src, row_stats


def g2_gnn_forward(x, edge_index, params, nlayers, *, row_tile=256, max_tk=2048,
                   graph=None):
    n_nodes, nfeat = x.shape
    nhid = params["w_enc"].shape[1]
    nclass = params["w_dec"].shape[1]
    fp = _round_up(nfeat, 128)
    hp = _round_up(nhid, 128)
    cp = _round_up(nclass, 128)
    n_pad = _round_up(max(n_nodes, 8), row_tile)
    tk = _pick_tk(n_pad, max_tk)

    f32, bf16 = jnp.float32, jnp.bfloat16

    # Zero-pad features / weights to lane-dense shapes.  Padded feature columns
    # stay zero; padded node rows may become relu(bias) but are never read
    # through A (their A columns are zero) and are sliced off at the end.
    x0 = jnp.zeros((n_pad, fp), bf16).at[:n_nodes, :nfeat].set(x.astype(bf16))
    w_enc = jnp.zeros((fp, hp), bf16).at[:nfeat, :nhid].set(params["w_enc"].astype(bf16))
    b_enc = jnp.zeros((1, hp), f32).at[:, :nhid].set(params["b_enc"])
    w_cat = (jnp.zeros((hp, 2 * hp), bf16)
             .at[:nhid, :nhid].set(params["w_conv"].astype(bf16))
             .at[:nhid, hp:hp + nhid].set(params["w_gg"].astype(bf16)))
    b_cat = (jnp.zeros((1, 2 * hp), f32)
             .at[:, :nhid].set(params["b_conv"])
             .at[:, hp:hp + nhid].set(params["b_gg"]))
    w_dec = jnp.zeros((hp, cp), bf16).at[:nhid, :nclass].set(params["w_dec"].astype(bf16))
    b_dec = jnp.zeros((1, cp), f32).at[:, :nclass].set(params["b_dec"])

    if graph is None:
        graph = build_graph_mats(edge_index, n_nodes, n_pad)
    a_hat_bf, a_src_bf, row_stats = graph
    if a_hat_bf.shape[0] != n_pad:
        raise ValueError("prebuilt graph was padded for a different row_tile")

    # encoder (emits f32 X for the gate combine and bf16 X for the next matmul)
    X, X_bf = _dense_relu(x0, w_enc, b_enc, row_tile, emit_bf16=True)

    # G2 layers
    for _ in range(nlayers):
        x_cand, y_f32, yy2_bf = _prop_layer(a_hat_bf, X_bf, w_cat, b_cat, row_tile, tk)
        X, X_bf = _gate_layer(a_src_bf, yy2_bf, y_f32, X, x_cand, row_stats,
                              row_tile, tk)

    # decoder
    out = _dense_relu(X_bf, w_dec, b_dec, row_tile, emit_bf16=False)
    return out[:n_nodes, :nclass]


# ----------------------------- reference & params ----------------------------

def g2_gnn_reference(x, edge_index, params, nlayers):
    """Pure-JAX f32 reference mirroring the PyTorch eval forward (gather/scatter)."""
    n = x.shape[0]
    src, dst = edge_index[0], edge_index[1]
    loop = jnp.arange(n, dtype=src.dtype)
    src_sl = jnp.concatenate([src, loop])
    dst_sl = jnp.concatenate([dst, loop])
    ones = jnp.ones(src_sl.shape[0], jnp.float32)
    deg_in = jnp.zeros((n,), jnp.float32).at[dst_sl].add(ones)
    dinv = jnp.where(deg_in > 0, 1.0 / jnp.sqrt(deg_in), 0.0)
    norm = dinv[src_sl] * dinv[dst_sl]
    a_hat = jnp.zeros((n, n), jnp.float32).at[dst_sl, src_sl].add(norm)

    X = jnp.maximum(x @ params["w_enc"] + params["b_enc"], 0.0)
    for _ in range(nlayers):
        X_ = jnp.maximum(a_hat @ (X @ params["w_conv"]) + params["b_conv"], 0.0)
        Y = jnp.maximum(a_hat @ (X @ params["w_gg"]) + params["b_gg"], 0.0)
        diff2 = (Y[src] - Y[dst]) ** 2
        ssum = jnp.zeros_like(Y).at[src].add(diff2)
        cnt = jnp.zeros((n,), jnp.float32).at[src].add(
            jnp.ones(src.shape[0], jnp.float32))
        tau = jnp.tanh(ssum / jnp.maximum(cnt, 1.0)[:, None])
        X = (1.0 - tau) * X + tau * X_
    return jnp.maximum(X @ params["w_dec"] + params["b_dec"], 0.0)


def init_params(key, nfeat, nhid, nclass):
    ks = jax.random.split(key, 8)
    s = 0.1
    return {
        # nn.Linear / GCNConv weights stored as [in, out] so kernels do X @ W.
        "w_enc":  (s * jax.random.normal(ks[0], (nfeat, nhid))).astype(jnp.float32),
        "b_enc":  (s * jax.random.normal(ks[1], (1, nhid))).astype(jnp.float32),
        "w_conv": (s * jax.random.normal(ks[2], (nhid, nhid))).astype(jnp.float32),
        "b_conv": (s * jax.random.normal(ks[3], (1, nhid))).astype(jnp.float32),
        "w_gg":   (s * jax.random.normal(ks[4], (nhid, nhid))).astype(jnp.float32),
        "b_gg":   (s * jax.random.normal(ks[5], (1, nhid))).astype(jnp.float32),
        "w_dec":  (s * jax.random.normal(ks[6], (nhid, nclass))).astype(jnp.float32),
        "b_dec":  (s * jax.random.normal(ks[7], (1, nclass))).astype(jnp.float32),
    }


if __name__ == "__main__":
    N_NODES, NFEAT, NHID, NCLASS, NLAYERS, N_EDGES = 200, 8, 32, 4, 2, 600
    # Small tiles so the toy test exercises multi-tile row and K grids
    # (production default is row_tile=256, max_tk=2048).
    ROW_TILE, MAX_TK = 128, 128

    key = jax.random.PRNGKey(0)
    k_x, k_e, k_p = jax.random.split(key, 3)

    x = jax.random.normal(k_x, (N_NODES, NFEAT), dtype=jnp.float32)
    edge_index = jax.random.randint(k_e, (2, N_EDGES), 0, N_NODES, dtype=jnp.int32)
    params = init_params(k_p, NFEAT, NHID, NCLASS)

    # Graph constants built once per graph (hoisted out of the forward).
    n_pad = _round_up(max(N_NODES, 8), ROW_TILE)
    graph = build_graph_mats(edge_index, N_NODES, n_pad)

    fwd = jax.jit(lambda xx, ei, pp, gg: g2_gnn_forward(
        xx, ei, pp, NLAYERS, row_tile=ROW_TILE, max_tk=MAX_TK, graph=gg))

    out = jax.block_until_ready(fwd(x, edge_index, params, graph))
    ref = g2_gnn_reference(x, edge_index, params, NLAYERS)

    assert out.shape == (N_NODES, NCLASS)
    assert bool(jnp.all(jnp.isfinite(out)))
    err = float(jnp.max(jnp.abs(out - ref)))
    assert err < 5e-2, f"max abs err {err}"
    print("KERNEL_OK")
</pallas_src>

<mosaic_0001>
module attributes {stable_mosaic.version = 11 : i64} {
  func.func @dense_relu2_kernel(%arg0: i32, %arg1: memref<128x128xbf16, #tpu.memory_space<vmem>>, %arg2: memref<128x128xbf16, #tpu.memory_space<vmem>>, %arg3: memref<1x128xf32, #tpu.memory_space<vmem>>, %arg4: memref<128x128xf32, #tpu.memory_space<vmem>>, %arg5: memref<128x128xbf16, #tpu.memory_space<vmem>>) attributes {dimension_semantics = [#tpu.dimension_semantics<parallel>], iteration_bounds = array<i64: 2>, scalar_prefetch = 0 : i64, scratch_operands = 0 : i64, tpu.core_type = #tpu.core_type<tc>, window_params = [{transform_indices = @transform_0, window_bounds = array<i64: 128, 128>}, {pipeline_mode = #tpu.pipeline_mode<synchronous>, transform_indices = @transform_1, window_bounds = array<i64: 128, 128>}, {pipeline_mode = #tpu.pipeline_mode<synchronous>, transform_indices = @transform_2, window_bounds = array<i64: 1, 128>}, {transform_indices = @transform_3, window_bounds = array<i64: 128, 128>}, {transform_indices = @transform_4, window_bounds = array<i64: 128, 128>}]} {
    %c0 = arith.constant 0 : index
    %c0_0 = arith.constant 0 : index
    %0 = vector.load %arg1[%c0, %c0_0] : memref<128x128xbf16, #tpu.memory_space<vmem>>, vector<128x128xbf16>
    %c0_1 = arith.constant 0 : index
    %c0_2 = arith.constant 0 : index
    %1 = vector.load %arg2[%c0_1, %c0_2] : memref<128x128xbf16, #tpu.memory_space<vmem>>, vector<128x128xbf16>
    %cst = arith.constant dense<0.000000e+00> : vector<128x128xf32>
    %2 = tpu.matmul %0, %1, %cst {dimension_numbers = #tpu.dot_dimension_numbers<[1], [0], [0], [1], [0, 0, 1, 1], [], []>} : vector<128x128xbf16>, vector<128x128xbf16>, vector<128x128xf32> -> vector<128x128xf32>
    %c0_3 = arith.constant 0 : index
    %c0_4 = arith.constant 0 : index
    %3 = vector.load %arg3[%c0_3, %c0_4] : memref<1x128xf32, #tpu.memory_space<vmem>>, vector<1x128xf32>
    %4 = vector.broadcast %3 : vector<1x128xf32> to vector<128x128xf32>
    %5 = arith.addf %2, %4 : vector<128x128xf32>
    %cst_5 = arith.constant 0.000000e+00 : f32
    %6 = vector.broadcast %cst_5 : f32 to vector<128x128xf32>
    %7 = arith.maximumf %5, %6 : vector<128x128xf32>
    %c0_6 = arith.constant 0 : index
    %c0_7 = arith.constant 0 : index
    %8 = vector.load %arg4[%c0_6, %c0_7] : memref<128x128xf32, #tpu.memory_space<vmem>>, vector<128x128xf32>
    tpu.vector_store %arg4[%c0_6, %c0_7], %7 {strides = array<i32>} : memref<128x128xf32, #tpu.memory_space<vmem>>, vector<128x128xf32>,
    %9 = arith.truncf %7 : vector<128x128xf32> to vector<128x128xbf16>
    %c0_8 = arith.constant 0 : index
    %c0_9 = arith.constant 0 : index
    %10 = vector.load %arg5[%c0_8, %c0_9] : memref<128x128xbf16, #tpu.memory_space<vmem>>, vector<128x128xbf16>
    tpu.vector_store %arg5[%c0_8, %c0_9], %9 {strides = array<i32>} : memref<128x128xbf16, #tpu.memory_space<vmem>>, vector<128x128xbf16>,
    return
  }
  func.func @transform_0(%arg0: i32) -> (i32, i32) {
    %c0_i32 = arith.constant 0 : i32
    %c0_i32_0 = arith.constant 0 : i32
    return %arg0, %c0_i32 : i32, i32
  }
  func.func @transform_1(%arg0: i32) -> (i32, i32) {
    %c0_i32 = arith.constant 0 : i32
    %c0_i32_0 = arith.constant 0 : i32
    %c0_i32_1 = arith.constant 0 : i32
    return %c0_i32, %c0_i32_0 : i32, i32
  }
  func.func @transform_2(%arg0: i32) -> (i32, i32) {
    %c0_i32 = arith.constant 0 : i32
    %c0_i32_0 = arith.constant 0 : i32
    %c0_i32_1 = arith.constant 0 : i32
    return %c0_i32, %c0_i32_0 : i32, i32
  }
  func.func @transform_3(%arg0: i32) -> (i32, i32) {
    %c0_i32 = arith.constant 0 : i32
    %c0_i32_0 = arith.constant 0 : i32
    return %arg0, %c0_i32 : i32, i32
  }
  func.func @transform_4(%arg0: i32) -> (i32, i32) {
    %c0_i32 = arith.constant 0 : i32
    %c0_i32_0 = arith.constant 0 : i32
    return %arg0, %c0_i32 : i32, i32
  }
}

module attributes {stable_mosaic.version = 11 : i64} {
  func.func @prop_kernel(%arg0: i32, %arg1: i32, %arg2: memref<128x128xbf16, #tpu.memory_space<vmem>>, %arg3: memref<128x128xbf16, #tpu.memory_space<vmem>>, %arg4: memref<128x256xbf16, #tpu.memory_space<vmem>>, %arg5: memref<1x256xf32, #tpu.memory_space<vmem>>, %arg6: memref<128x128xf32, #tpu.memory_space<vmem>>, %arg7: memref<128x128xf32, #tpu.memory_space<vmem>>, %arg8: memref<128x256xbf16, #tpu.memory_space<vmem>>, %arg9: memref<128x128xf32, #tpu.memory_space<vmem>>) attributes {dimension_semantics = [#tpu.dimension_semantics<parallel>, #tpu.dimension_semantics<arbitrary>], iteration_bounds = array<i64: 2, 2>, scalar_prefetch = 0 : i64, scratch_operands = 1 : i64, tpu.core_type = #tpu.core_type<tc>, window_params = [{transform_indices = @transform_0, window_bounds = array<i64: 128, 128>}, {transform_indices = @transform_1, window_bounds = array<i64: 128, 128>}, {pipeline_mode = #tpu.pipeline_mode<synchronous>, transform_indices = @transform_2, window_bounds = array<i64: 128, 256>}, {pipeline_mode = #tpu.pipeline_mode<synchronous>, transform_indices = @transform_3, window_bounds = array<i64: 1, 256>}, {transform_indices = @transform_4, window_bounds = array<i64: 128, 128>}, {transform_indices = @transform_5, window_bounds = array<i64: 128, 128>}, {transform_indices = @transform_6, window_bounds = array<i64: 128, 256>}]} {
    %c0_i32 = arith.constant 0 : i32
    %0 = arith.cmpi eq, %arg1, %c0_i32 : i32
    %1 = arith.extui %0 : i1 to i32
    %c0_i32_0 = arith.constant 0 : i32
    %2 = arith.cmpi ne, %1, %c0_i32_0 : i32
    scf.if %2 {
      %cst_9 = arith.constant 0.000000e+00 : f32
      %12 = vector.broadcast %cst_9 : f32 to vector<128x128xf32>
      %c0_10 = arith.constant 0 : index
      %c0_11 = arith.constant 0 : index
      %13 = vector.load %arg9[%c0_10, %c0_11] : memref<128x128xf32, #tpu.memory_space<vmem>>, vector<128x128xf32>
      tpu.vector_store %arg9[%c0_10, %c0_11], %12 {strides = array<i32>} : memref<128x128xf32, #tpu.memory_space<vmem>>, vector<128x128xf32>,
    } else {
    }
    %c0 = arith.constant 0 : index
    %c0_1 = arith.constant 0 : index
    %3 = vector.load %arg9[%c0, %c0_1] : memref<128x128xf32, #tpu.memory_space<vmem>>, vector<128x128xf32>
    %c0_2 = arith.constant 0 : index
    %c0_3 = arith.constant 0 : index
    %4 = vector.load %arg2[%c0_2, %c0_3] : memref<128x128xbf16, #tpu.memory_space<vmem>>, vector<128x128xbf16>
    %c0_4 = arith.constant 0 : index
    %c0_5 = arith.constant 0 : index
    %5 = vector.load %arg3[%c0_4, %c0_5] : memref<128x128xbf16, #tpu.memory_space<vmem>>, vector<128x128xbf16>
    %cst = arith.constant dense<0.000000e+00> : vector<128x128xf32>
    %6 = tpu.matmul %4, %5, %cst {dimension_numbers = #tpu.dot_dimension_numbers<[1], [0], [0], [1], [0, 0, 1, 1], [], []>} : vector<128x128xbf16>, vector<128x128xbf16>, vector<128x128xf32> -> vector<128x128xf32>
    %7 = arith.addf %3, %6 : vector<128x128xf32>
    %c0_6 = arith.constant 0 : index
    %c0_7 = arith.constant 0 : index
    %8 = vector.load %arg9[%c0_6, %c0_7] : memref<128x128xf32, #tpu.memory_space<vmem>>, vector<128x128xf32>
    tpu.vector_store %arg9[%c0_6, %c0_7], %7 {strides = array<i32>} : memref<128x128xf32, #tpu.memory_space<vmem>>, vector<128x128xf32>,
    %c1_i32 = arith.constant 1 : i32
    %9 = arith.cmpi eq, %arg1, %c1_i32 : i32
    %10 = arith.extui %9 : i1 to i32
    %c0_i32_8 = arith.constant 0 : i32
    %11 = arith.cmpi ne, %10, %c0_i32_8 : i32
    scf.if %11 {
      %c0_9 = arith.constant 0 : index
      %c0_10 = arith.constant 0 : index
      %12 = vector.load %arg9[%c0_9, %c0_10] : memref<128x128xf32, #tpu.memory_space<vmem>>, vector<128x128xf32>
      %13 = arith.truncf %12 : vector<128x128xf32> to vector<128x128xbf16>
      %c0_11 = arith.constant 0 : index
      %c0_12 = arith.constant 0 : index
      %14 = vector.load %arg4[%c0_11, %c0_12] : memref<128x256xbf16, #tpu.memory_space<vmem>>, vector<128x256xbf16>
      %cst_13 = arith.constant dense<0.000000e+00> : vector<128x256xf32>
      %15 = tpu.matmul %13, %14, %cst_13 {dimension_numbers = #tpu.dot_dimension_numbers<[1], [0], [0], [1], [0, 0, 1, 1], [], []>} : vector<128x128xbf16>, vector<128x256xbf16>, vector<128x256xf32> -> vector<128x256xf32>
      %c0_14 = arith.constant 0 : index
      %c0_15 = arith.constant 0 : index
      %16 = vector.load %arg5[%c0_14, %c0_15] : memref<1x256xf32, #tpu.memory_space<vmem>>, vector<1x256xf32>
      %17 = vector.broadcast %16 : vector<1x256xf32> to vector<128x256xf32>
      %18 = arith.addf %15, %17 : vector<128x256xf32>
      %cst_16 = arith.constant 0.000000e+00 : f32
      %19 = vector.broadcast %cst_16 : f32 to vector<128x256xf32>
      %20 = arith.maximumf %18, %19 : vector<128x256xf32>
      %21 = vector.extract_strided_slice %20 {offsets = [0, 128], sizes = [128, 128], strides = [1, 1]} : vector<128x256xf32> to vector<128x128xf32>
      %22 = vector.extract_strided_slice %20 {offsets = [0, 0], sizes = [128, 128], strides = [1, 1]} : vector<128x256xf32> to vector<128x128xf32>
      %c0_17 = arith.constant 0 : index
      %c0_18 = arith.constant 0 : index
      %23 = vector.load %arg6[%c0_17, %c0_18] : memref<128x128xf32, #tpu.memory_space<vmem>>, vector<128x128xf32>
      tpu.vector_store %arg6[%c0_17, %c0_18], %22 {strides = array<i32>} : memref<128x128xf32, #tpu.memory_space<vmem>>, vector<128x128xf32>,
      %c0_19 = arith.constant 0 : index
      %c0_20 = arith.constant 0 : index
      %24 = vector.load %arg7[%c0_19, %c0_20] : memref<128x128xf32, #tpu.memory_space<vmem>>, vector<128x128xf32>
      tpu.vector_store %arg7[%c0_19, %c0_20], %21 {strides = array<i32>} : memref<128x128xf32, #tpu.memory_space<vmem>>, vector<128x128xf32>,
      %25 = arith.truncf %21 : vector<128x128xf32> to vector<128x128xbf16>
      %c0_21 = arith.constant 0 : index
      %c0_22 = arith.constant 0 : index
      %26 = vector.load %arg8[%c0_21, %c0_22] : memref<128x256xbf16, #tpu.memory_space<vmem>>, vector<128x128xbf16>
      tpu.vector_store %arg8[%c0_21, %c0_22], %25 {strides = array<i32>} : memref<128x256xbf16, #tpu.memory_space<vmem>>, vector<128x128xbf16>,
      %27 = arith.mulf %21, %21 : vector<128x128xf32>
      %28 = arith.truncf %27 : vector<128x128xf32> to vector<128x128xbf16>
      %c0_23 = arith.constant 0 : index
      %c128 = arith.constant 128 : index
      %29 = vector.load %arg8[%c0_23, %c128] : memref<128x256xbf16, #tpu.memory_space<vmem>>, vector<128x128xbf16>
      tpu.vector_store %arg8[%c0_23, %c128], %28 {strides = array<i32>} : memref<128x256xbf16, #tpu.memory_space<vmem>>, vector<128x128xbf16>,
    } else {
    }
    return
  }
  func.func @transform_0(%arg0: i32, %arg1: i32) -> (i32, i32) {
    %c0_i32 = arith.constant 0 : i32
    return %arg0, %arg1 : i32, i32
  }
  func.func @transform_1(%arg0: i32, %arg1: i32) -> (i32, i32) {
    %c0_i32 = arith.constant 0 : i32
    %c0_i32_0 = arith.constant 0 : i32
    return %arg1, %c0_i32 : i32, i32
  }
  func.func @transform_2(%arg0: i32, %arg1: i32) -> (i32, i32) {
    %c0_i32 = arith.constant 0 : i32
    %c0_i32_0 = arith.constant 0 : i32
    %c0_i32_1 = arith.constant 0 : i32
    return %c0_i32, %c0_i32_0 : i32, i32
  }
  func.func @transform_3(%arg0: i32, %arg1: i32) -> (i32, i32) {
    %c0_i32 = arith.constant 0 : i32
    %c0_i32_0 = arith.constant 0 : i32
    %c0_i32_1 = arith.constant 0 : i32
    return %c0_i32, %c0_i32_0 : i32, i32
  }
  func.func @transform_4(%arg0: i32, %arg1: i32) -> (i32, i32) {
    %c0_i32 = arith.constant 0 : i32
    %c0_i32_0 = arith.constant 0 : i32
    return %arg0, %c0_i32 : i32, i32
  }
  func.func @transform_5(%arg0: i32, %arg1: i32) -> (i32, i32) {
    %c0_i32 = arith.constant 0 : i32
    %c0_i32_0 = arith.constant 0 : i32
    return %arg0, %c0_i32 : i32, i32
  }
  func.func @transform_6(%arg0: i32, %arg1: i32) -> (i32, i32) {
    %c0_i32 = arith.constant 0 : i32
    %c0_i32_0 = arith.constant 0 : i32
    return %arg0, %c0_i32 : i32, i32
  }
}

module attributes {stable_mosaic.version = 11 : i64} {
  func.func @gate_kernel(%arg0: i32, %arg1: i32, %arg2: memref<128x128xbf16, #tpu.memory_space<vmem>>, %arg3: memref<128x256xbf16, #tpu.memory_space<vmem>>, %arg4: memref<128x128xf32, #tpu.memory_space<vmem>>, %arg5: memref<128x128xf32, #tpu.memory_space<vmem>>, %arg6: memref<128x128xf32, #tpu.memory_space<vmem>>, %arg7: memref<128x128xf32, #tpu.memory_space<vmem>>, %arg8: memref<128x128xf32, #tpu.memory_space<vmem>>, %arg9: memref<128x128xbf16, #tpu.memory_space<vmem>>, %arg10: memref<128x256xf32, #tpu.memory_space<vmem>>) attributes {dimension_semantics = [#tpu.dimension_semantics<parallel>, #tpu.dimension_semantics<arbitrary>], iteration_bounds = array<i64: 2, 2>, scalar_prefetch = 0 : i64, scratch_operands = 1 : i64, tpu.core_type = #tpu.core_type<tc>, window_params = [{transform_indices = @transform_0, window_bounds = array<i64: 128, 128>}, {transform_indices = @transform_1, window_bounds = array<i64: 128, 256>}, {transform_indices = @transform_2, window_bounds = array<i64: 128, 128>}, {transform_indices = @transform_3, window_bounds = array<i64: 128, 128>}, {transform_indices = @transform_4, window_bounds = array<i64: 128, 128>}, {transform_indices = @transform_5, window_bounds = array<i64: 128, 128>}, {transform_indices = @transform_6, window_bounds = array<i64: 128, 128>}, {transform_indices = @transform_7, window_bounds = array<i64: 128, 128>}]} {
    %c0_i32 = arith.constant 0 : i32
    %0 = arith.cmpi eq, %arg1, %c0_i32 : i32
    %1 = arith.extui %0 : i1 to i32
    %c0_i32_0 = arith.constant 0 : i32
    %2 = arith.cmpi ne, %1, %c0_i32_0 : i32
    scf.if %2 {
      %cst_9 = arith.constant 0.000000e+00 : f32
      %12 = vector.broadcast %cst_9 : f32 to vector<128x256xf32>
      %c0_10 = arith.constant 0 : index
      %c0_11 = arith.constant 0 : index
      %13 = vector.load %arg10[%c0_10, %c0_11] : memref<128x256xf32, #tpu.memory_space<vmem>>, vector<128x256xf32>
      tpu.vector_store %arg10[%c0_10, %c0_11], %12 {strides = array<i32>} : memref<128x256xf32, #tpu.memory_space<vmem>>, vector<128x256xf32>,
    } else {
    }
    %c0 = arith.constant 0 : index
    %c0_1 = arith.constant 0 : index
    %3 = vector.load %arg10[%c0, %c0_1] : memref<128x256xf32, #tpu.memory_space<vmem>>, vector<128x256xf32>
    %c0_2 = arith.constant 0 : index
    %c0_3 = arith.constant 0 : index
    %4 = vector.load %arg2[%c0_2, %c0_3] : memref<128x128xbf16, #tpu.memory_space<vmem>>, vector<128x128xbf16>
    %c0_4 = arith.constant 0 : index
    %c0_5 = arith.constant 0 : index
    %5 = vector.load %arg3[%c0_4, %c0_5] : memref<128x256xbf16, #tpu.memory_space<vmem>>, vector<128x256xbf16>
    %cst = arith.constant dense<0.000000e+00> : vector<128x256xf32>
    %6 = tpu.matmul %4, %5, %cst {dimension_numbers = #tpu.dot_dimension_numbers<[1], [0], [0], [1], [0, 0, 1, 1], [], []>} : vector<128x128xbf16>, vector<128x256xbf16>, vector<128x256xf32> -> vector<128x256xf32>
    %7 = arith.addf %3, %6 : vector<128x256xf32>
    %c0_6 = arith.constant 0 : index
    %c0_7 = arith.constant 0 : index
    %8 = vector.load %arg10[%c0_6, %c0_7] : memref<128x256xf32, #tpu.memory_space<vmem>>, vector<128x256xf32>
    tpu.vector_store %arg10[%c0_6, %c0_7], %7 {strides = array<i32>} : memref<128x256xf32, #tpu.memory_space<vmem>>, vector<128x256xf32>,
    %c1_i32 = arith.constant 1 : i32
    %9 = arith.cmpi eq, %arg1, %c1_i32 : i32
    %10 = arith.extui %9 : i1 to i32
    %c0_i32_8 = arith.constant 0 : i32
    %11 = arith.cmpi ne, %10, %c0_i32_8 : i32
    scf.if %11 {
      %c0_9 = arith.constant 0 : index
      %c0_10 = arith.constant 0 : index
      %12 = vector.load %arg10[%c0_9, %c0_10] : memref<128x256xf32, #tpu.memory_space<vmem>>, vector<128x128xf32>
      %c0_11 = arith.constant 0 : index
      %c128 = arith.constant 128 : index
      %13 = vector.load %arg10[%c0_11, %c128] : memref<128x256xf32, #tpu.memory_space<vmem>>, vector<128x128xf32>
      %c0_12 = arith.constant 0 : index
      %c0_13 = arith.constant 0 : index
      %14 = vector.load %arg4[%c0_12, %c0_13] : memref<128x128xf32, #tpu.memory_space<vmem>>, vector<128x128xf32>
      %c0_14 = arith.constant 0 : index
      %c0_15 = arith.constant 0 : index
      %15 = vector.load %arg7[%c0_14, %c0_15] : memref<128x128xf32, #tpu.memory_space<vmem>>, vector<128x1xf32>
      %c0_16 = arith.constant 0 : index
      %c1 = arith.constant 1 : index
      %16 = vector.load %arg7[%c0_16, %c1] : memref<128x128xf32, #tpu.memory_space<vmem>>, vector<128x1xf32>
      %17 = arith.mulf %14, %14 : vector<128x128xf32>
      %18 = vector.broadcast %15 : vector<128x1xf32> to vector<128x128xf32>
      %19 = arith.mulf %18, %17 : vector<128x128xf32>
      %cst_17 = arith.constant 2.000000e+00 : f32
      %20 = vector.broadcast %cst_17 : f32 to vector<128x128xf32>
      %21 = arith.mulf %20, %14 : vector<128x128xf32>
      %22 = arith.mulf %21, %12 : vector<128x128xf32>
      %23 = arith.subf %19, %22 : vector<128x128xf32>
      %24 = arith.addf %23, %13 : vector<128x128xf32>
      %cst_18 = arith.constant 0.000000e+00 : f32
      %25 = vector.broadcast %cst_18 : f32 to vector<128x128xf32>
      %26 = arith.maximumf %24, %25 : vector<128x128xf32>
      %27 = vector.broadcast %16 : vector<128x1xf32> to vector<128x128xf32>
      %28 = arith.mulf %26, %27 : vector<128x128xf32>
      %29 = math.tanh %28 : vector<128x128xf32>
      %cst_19 = arith.constant 1.000000e+00 : f32
      %30 = vector.broadcast %cst_19 : f32 to vector<128x128xf32>
      %31 = arith.subf %30, %29 : vector<128x128xf32>
      %c0_20 = arith.constant 0 : index
      %c0_21 = arith.constant 0 : index
      %32 = vector.load %arg5[%c0_20, %c0_21] : memref<128x128xf32, #tpu.memory_space<vmem>>, vector<128x128xf32>
      %33 = arith.mulf %31, %32 : vector<128x128xf32>
      %c0_22 = arith.constant 0 : index
      %c0_23 = arith.constant 0 : index
      %34 = vector.load %arg6[%c0_22, %c0_23] : memref<128x128xf32, #tpu.memory_space<vmem>>, vector<128x128xf32>
      %35 = arith.mulf %29, %34 : vector<128x128xf32>
      %36 = arith.addf %33, %35 : vector<128x128xf32>
      %c0_24 = arith.constant 0 : index
      %c0_25 = arith.constant 0 : index
      %37 = vector.load %arg8[%c0_24, %c0_25] : memref<128x128xf32, #tpu.memory_space<vmem>>, vector<128x128xf32>
      tpu.vector_store %arg8[%c0_24, %c0_25], %36 {strides = array<i32>} : memref<128x128xf32, #tpu.memory_space<vmem>>, vector<128x128xf32>,
      %38 = arith.truncf %36 : vector<128x128xf32> to vector<128x128xbf16>
      %c0_26 = arith.constant 0 : index
      %c0_27 = arith.constant 0 : index
      %39 = vector.load %arg9[%c0_26, %c0_27] : memref<128x128xbf16, #tpu.memory_space<vmem>>, vector<128x128xbf16>
      tpu.vector_store %arg9[%c0_26, %c0_27], %38 {strides = array<i32>} : memref<128x128xbf16, #tpu.memory_space<vmem>>, vector<128x128xbf16>,
    } else {
    }
    return
  }
  func.func @transform_0(%arg0: i32, %arg1: i32) -> (i32, i32) {
    %c0_i32 = arith.constant 0 : i32
    return %arg0, %arg1 : i32, i32
  }
  func.func @transform_1(%arg0: i32, %arg1: i32) -> (i32, i32) {
    %c0_i32 = arith.constant 0 : i32
    %c0_i32_0 = arith.constant 0 : i32
    return %arg1, %c0_i32 : i32, i32
  }
  func.func @transform_2(%arg0: i32, %arg1: i32) -> (i32, i32) {
    %c0_i32 = arith.constant 0 : i32
    %c0_i32_0 = arith.constant 0 : i32
    return %arg0, %c0_i32 : i32, i32
  }
  func.func @transform_3(%arg0: i32, %arg1: i32) -> (i32, i32) {
    %c0_i32 = arith.constant 0 : i32
    %c0_i32_0 = arith.constant 0 : i32
    return %arg0, %c0_i32 : i32, i32
  }
  func.func @transform_4(%arg0: i32, %arg1: i32) -> (i32, i32) {
    %c0_i32 = arith.constant 0 : i32
    %c0_i32_0 = arith.constant 0 : i32
    return %arg0, %c0_i32 : i32, i32
  }
  func.func @transform_5(%arg0: i32, %arg1: i32) -> (i32, i32) {
    %c0_i32 = arith.constant 0 : i32
    %c0_i32_0 = arith.constant 0 : i32
    return %arg0, %c0_i32 : i32, i32
  }
  func.func @transform_6(%arg0: i32, %arg1: i32) -> (i32, i32) {
    %c0_i32 = arith.constant 0 : i32
    %c0_i32_0 = arith.constant 0 : i32
    return %arg0, %c0_i32 : i32, i32
  }
  func.func @transform_7(%arg0: i32, %arg1: i32) -> (i32, i32) {
    %c0_i32 = arith.constant 0 : i32
    %c0_i32_0 = arith.constant 0 : i32
    return %arg0, %c0_i32 : i32, i32
  }
}

module attributes {stable_mosaic.version = 11 : i64} {
  func.func @dense_relu_kernel(%arg0: i32, %arg1: memref<128x128xbf16, #tpu.memory_space<vmem>>, %arg2: memref<128x128xbf16, #tpu.memory_space<vmem>>, %arg3: memref<1x128xf32, #tpu.memory_space<vmem>>, %arg4: memref<128x128xf32, #tpu.memory_space<vmem>>) attributes {dimension_semantics = [#tpu.dimension_semantics<parallel>], iteration_bounds = array<i64: 2>, scalar_prefetch = 0 : i64, scratch_operands = 0 : i64, tpu.core_type = #tpu.core_type<tc>, window_params = [{transform_indices = @transform_0, window_bounds = array<i64: 128, 128>}, {pipeline_mode = #tpu.pipeline_mode<synchronous>, transform_indices = @transform_1, window_bounds = array<i64: 128, 128>}, {pipeline_mode = #tpu.pipeline_mode<synchronous>, transform_indices = @transform_2, window_bounds = array<i64: 1, 128>}, {transform_indices = @transform_3, window_bounds = array<i64: 128, 128>}]} {
    %c0 = arith.constant 0 : index
    %c0_0 = arith.constant 0 : index
    %0 = vector.load %arg1[%c0, %c0_0] : memref<128x128xbf16, #tpu.memory_space<vmem>>, vector<128x128xbf16>
    %c0_1 = arith.constant 0 : index
    %c0_2 = arith.constant 0 : index
    %1 = vector.load %arg2[%c0_1, %c0_2] : memref<128x128xbf16, #tpu.memory_space<vmem>>, vector<128x128xbf16>
    %cst = arith.constant dense<0.000000e+00> : vector<128x128xf32>
    %2 = tpu.matmul %0, %1, %cst {dimension_numbers = #tpu.dot_dimension_numbers<[1], [0], [0], [1], [0, 0, 1, 1], [], []>} : vector<128x128xbf16>, vector<128x128xbf16>, vector<128x128xf32> -> vector<128x128xf32>
    %c0_3 = arith.constant 0 : index
    %c0_4 = arith.constant 0 : index
    %3 = vector.load %arg3[%c0_3, %c0_4] : memref<1x128xf32, #tpu.memory_space<vmem>>, vector<1x128xf32>
    %4 = vector.broadcast %3 : vector<1x128xf32> to vector<128x128xf32>
    %5 = arith.addf %2, %4 : vector<128x128xf32>
    %cst_5 = arith.constant 0.000000e+00 : f32
    %6 = vector.broadcast %cst_5 : f32 to vector<128x128xf32>
    %7 = arith.maximumf %5, %6 : vector<128x128xf32>
    %c0_6 = arith.constant 0 : index
    %c0_7 = arith.constant 0 : index
    %8 = vector.load %arg4[%c0_6, %c0_7] : memref<128x128xf32, #tpu.memory_space<vmem>>, vector<128x128xf32>
    tpu.vector_store %arg4[%c0_6, %c0_7], %7 {strides = array<i32>} : memref<128x128xf32, #tpu.memory_space<vmem>>, vector<128x128xf32>,
    return
  }
  func.func @transform_0(%arg0: i32) -> (i32, i32) {
    %c0_i32 = arith.constant 0 : i32
    %c0_i32_0 = arith.constant 0 : i32
    return %arg0, %c0_i32 : i32, i32
  }
  func.func @transform_1(%arg0: i32) -> (i32, i32) {
    %c0_i32 = arith.constant 0 : i32
    %c0_i32_0 = arith.constant 0 : i32
    %c0_i32_1 = arith.constant 0 : i32
    return %c0_i32, %c0_i32_0 : i32, i32
  }
  func.func @transform_2(%arg0: i32) -> (i32, i32) {
    %c0_i32 = arith.constant 0 : i32
    %c0_i32_0 = arith.constant 0 : i32
    %c0_i32_1 = arith.constant 0 : i32
    return %c0_i32, %c0_i32_0 : i32, i32
  }
  func.func @transform_3(%arg0: i32) -> (i32, i32) {
    %c0_i32 = arith.constant 0 : i32
    %c0_i32_0 = arith.constant 0 : i32
    return %arg0, %c0_i32 : i32, i32
  }
}

</mosaic_0001>

<llo_original>
// kernel: _lambda_.6
$region0: #{_lambda_.6}
  #allocation0 [shape = 'u32[]', space=smem, size = 0x4, offset = 0x4, fixed_abs, tag = 'smem constant byte address 0x4 - core index']
  #allocation1 [shape = 'u32[144,128]{1,0:T(1,128)}', space=vmem, size = 0x12000, scoped, tag = 'internal scratch']
  %s0 = inlined_call_operand.vmem [shape: bf16[256,128], index: 0, kind: input, shape index: {}]
  %s1 = inlined_call_operand.vmem [shape: bf16[128,128], index: 1, kind: input, shape index: {}]
  %s2 = inlined_call_operand.vmem [shape: f32[1,128], index: 2, kind: input, shape index: {}]
  %s3 = inlined_call_operand.vmem [shape: f32[256,128], index: 3, kind: output, shape index: {0}]
  %s4 = inlined_call_operand.vmem [shape: bf16[256,128], index: 4, kind: output, shape index: {1}]
  %5 = xla_tuple %s3, %s4
  %s6 = sld [smem:[#allocation0]]
  $region53: #{_lambda_.6} parent=0
    _
  %s8 = ssub.s32 1, %s6
  %s9 = scalar_select 0, %s8, %s6
  loop: start=0, step=1, limit=4
  $region2: #{_lambda_.6} parent=0 // loop_pre_header
    _
  $region3: #{_lambda_.6} parent=0 // loop_header
    %s11 = sphi 0, %s15
    %p12 = scmp.ge.s32.totalorder %s11, 4
    %s21 = sphi 0, %s23
    %s24 = sphi 0, %s21
    %s25 = sphi 0, %s24
    %s41 = sphi 0, %s25
    %s45 = sphi 0, %s45
    %s47 = sphi 0, %s45
    %s48 = sphi 0, %s47
    %s62 = sphi 0, %s48
    %s66 = sphi 0, %s66
    %s68 = sphi 0, %s66
    %s69 = sphi 0, %s68
    %s83 = sphi 0, %s69
    %s89 = sphi 0, %s91
    %s92 = sphi 0, %s89
    %s93 = sphi 0, %s92
    %s109 = sphi 0, %s93
    %s115 = sphi 0, %s117
    %s118 = sphi 0, %s115
    %s119 = sphi 0, %s118
    %s135 = sphi 0, %s119
  $region4: #{_lambda_.6} parent=0 // loop_header_branch
    %14 = sbr.rel (%p12) target = $region8
  $region5: #{_lambda_.6} parent=0 // loop_body
    %s16 = ssub.s32 %s11, 1
    %s17 = ssub.s32 %s11, 2
    %s18 = sadd.s32 %s11, 1
    %s19 = ssub.s32 %s11, %s18
    %p20 = scmp.eq.s32.totalorder %s19, 0
    %s22 = sadd.s32 %s21, 1
    %s23 = scalar_select %p20, %s21, %s22
    %p26 = pneg %p20
    %p27 = scmp.eq.s32.totalorder %s11, 1
    %p28 = por %p26, %p27
    %p29 = scmp.ne.s32.totalorder %s21, %s24
    %p30 = scmp.eq.s32.totalorder %s11, 0
    %p31 = por %p29, %p30
    %p32 = scmp.ne.s32.totalorder %s21, %s24
    %p33 = scmp.eq.s32.totalorder %s16, 1
    %p34 = por %p32, %p33
    %p35 = scmp.ne.s32.totalorder %s24, %s25
    %p36 = scmp.eq.s32.totalorder %s16, 0
    %p37 = por %p35, %p36
    %p38 = scmp.ne.s32.totalorder %s24, %s25
    %p39 = scmp.eq.s32.totalorder %s17, 1
    %p40 = por %p38, %p39
    %p42 = scmp.ne.s32.totalorder %s25, %s41
    %p43 = scmp.eq.s32.totalorder %s17, 0
    %p44 = por %p42, %p43
    %s46 = sadd.s32 %s45, 1
    %p49 = scmp.eq.s32.totalorder %s11, 1
    %p50 = scmp.ne.s32.totalorder %s45, %s47
    %p51 = scmp.eq.s32.totalorder %s11, 0
    %p52 = por %p50, %p51
    %p53 = scmp.ne.s32.totalorder %s45, %s47
    %p54 = scmp.eq.s32.totalorder %s16, 1
    %p55 = por %p53, %p54
    %p56 = scmp.ne.s32.totalorder %s47, %s48
    %p57 = scmp.eq.s32.totalorder %s16, 0
    %p58 = por %p56, %p57
    %p59 = scmp.ne.s32.totalorder %s47, %s48
    %p60 = scmp.eq.s32.totalorder %s17, 1
    %p61 = por %p59, %p60
    %p63 = scmp.ne.s32.totalorder %s48, %s62
    %p64 = scmp.eq.s32.totalorder %s17, 0
    %p65 = por %p63, %p64
    %s67 = sadd.s32 %s66, 1
    %p70 = scmp.eq.s32.totalorder %s11, 1
    %p71 = scmp.ne.s32.totalorder %s66, %s68
    %p72 = scmp.eq.s32.totalorder %s11, 0
    %p73 = por %p71, %p72
    %p74 = scmp.ne.s32.totalorder %s66, %s68
    %p75 = scmp.eq.s32.totalorder %s16, 1
    %p76 = por %p74, %p75
    %p77 = scmp.ne.s32.totalorder %s68, %s69
    %p78 = scmp.eq.s32.totalorder %s16, 0
    %p79 = por %p77, %p78
    %p80 = scmp.ne.s32.totalorder %s68, %s69
    %p81 = scmp.eq.s32.totalorder %s17, 1
    %p82 = por %p80, %p81
    %p84 = scmp.ne.s32.totalorder %s69, %s83
    %p85 = scmp.eq.s32.totalorder %s17, 0
    %p86 = por %p84, %p85
    %s87 = ssub.s32 %s11, %s18
    %p88 = scmp.eq.s32.totalorder %s87, 0
    %s90 = sadd.s32 %s89, 1
    %s91 = scalar_select %p88, %s89, %s90
    %p94 = pneg %p88
    %p95 = scmp.eq.s32.totalorder %s11, 1
    %p96 = por %p94, %p95
    %p97 = scmp.ne.s32.totalorder %s89, %s92
    %p98 = scmp.eq.s32.totalorder %s11, 0
    %p99 = por %p97, %p98
    %p100 = scmp.ne.s32.totalorder %s89, %s92
    %p101 = scmp.eq.s32.totalorder %s16, 1
    %p102 = por %p100, %p101
    %p103 = scmp.ne.s32.totalorder %s92, %s93
    %p104 = scmp.eq.s32.totalorder %s16, 0
    %p105 = por %p103, %p104
    %p106 = scmp.ne.s32.totalorder %s92, %s93
    %p107 = scmp.eq.s32.totalorder %s17, 1
    %p108 = por %p106, %p107
    %p110 = scmp.ne.s32.totalorder %s93, %s109
    %p111 = scmp.eq.s32.totalorder %s17, 0
    %p112 = por %p110, %p111
    %s113 = ssub.s32 %s11, %s18
    %p114 = scmp.eq.s32.totalorder %s113, 0
    %s116 = sadd.s32 %s115, 1
    %s117 = scalar_select %p114, %s115, %s116
    %p120 = pneg %p114
    %p121 = scmp.eq.s32.totalorder %s11, 1
    %p122 = por %p120, %p121
    %p123 = scmp.ne.s32.totalorder %s115, %s118
    %p124 = scmp.eq.s32.totalorder %s11, 0
    %p125 = por %p123, %p124
    %p126 = scmp.ne.s32.totalorder %s115, %s118
    %p127 = scmp.eq.s32.totalorder %s16, 1
    %p128 = por %p126, %p127
    %p129 = scmp.ne.s32.totalorder %s118, %s119
    %p130 = scmp.eq.s32.totalorder %s16, 0
    %p131 = por %p129, %p130
    %p132 = scmp.ne.s32.totalorder %s118, %s119
    %p133 = scmp.eq.s32.totalorder %s17, 1
    %p134 = por %p132, %p133
    %p136 = scmp.ne.s32.totalorder %s119, %s135
    %p137 = scmp.eq.s32.totalorder %s17, 0
    %p138 = por %p136, %p137
    %p139 = scmp.le.s32.totalorder 1, %s11
    %p140 = scmp.lt.s32.totalorder %s11, 3
    %p141 = pnand %p139, %p140
    %p142 = pneg %p141
    // Predicated region
    $region9: #{_lambda_.6} parent=5 // pred_check
      _
    $region10: #{_lambda_.6} parent=5 // pred_check_branch
      %144 = sbr.rel (%p141) target = $region12
    $region11: #{_lambda_.6} parent=5 // pred_region
      %s145 = ssub.s32 %s11, 1
      // Predicated region
      $region13: #{_lambda_.6} parent=11 // pred_check
        %p146 = pneg %p58
      $region14: #{_lambda_.6} parent=11 // pred_check_branch
        %148 = sbr.rel (%p146) target = $region16
      $region15: #{_lambda_.6} parent=11 // pred_region
        _
      $region16: #{_lambda_.6} parent=11 // pred_fallthru
        _
      // Predicated region
      $region17: #{_lambda_.6} parent=11 // pred_check
        %p149 = pneg %p79
      $region18: #{_lambda_.6} parent=11 // pred_check_branch
        %151 = sbr.rel (%p149) target = $region20
      $region19: #{_lambda_.6} parent=11 // pred_region
        _
      $region20: #{_lambda_.6} parent=11 // pred_fallthru
        _
    $region12: #{_lambda_.6} parent=5 // pred_fallthru
      _
    %p152 = scmp.lt.s32.totalorder %s11, 2
    // Predicated region
    $region21: #{_lambda_.6} parent=5 // pred_check
      %p153 = pneg %p152
    $region22: #{_lambda_.6} parent=5 // pred_check_branch
      %155 = sbr.rel (%p153) target = $region24
    $region23: #{_lambda_.6} parent=5 // pred_region
      // Predicated region
      $region25: #{_lambda_.6} parent=23 // pred_check
        %p156 = pneg %p31
      $region26: #{_lambda_.6} parent=23 // pred_check_branch
        %158 = sbr.rel (%p156) target = $region28
      $region27: #{_lambda_.6} parent=23 // pred_region
        %s159 = smul.u32 16, %s11
        %p160 = scmp.lt.s32.totalorder %s159, 31
        %s161 = scalar_select %p160, %s159, 31
        %s162 = smul.addr %s161, 4
        %s163 = scalar_lea.vmem %s0, %s162
        %s164 = smul.u32 16, %s11
      $region28: #{_lambda_.6} parent=23 // pred_fallthru
        _
    $region24: #{_lambda_.6} parent=5 // pred_fallthru
      _
    %p165 = scmp.le.s32.totalorder 1, %s11
    %p166 = scmp.lt.s32.totalorder %s11, 3
    %p167 = pnand %p165, %p166
    %p168 = pneg %p167
    // Predicated region
    $region29: #{_lambda_.6} parent=5 // pred_check
      _
    $region30: #{_lambda_.6} parent=5 // pred_check_branch
      %170 = sbr.rel (%p167) target = $region32
    $region31: #{_lambda_.6} parent=5 // pred_region
      %s171 = ssub.s32 %s11, 1
      %s172 = smul.u32 16, %s16
      %p173 = scmp.lt.s32.totalorder %s172, 31
      %s174 = scalar_select %p173, %s172, 31
      %s175 = smul.addr %s174, 4
      %s176 = scalar_lea.vmem %s0, %s175
      %p177 = pneg %p37
      %p178 = pneg %p34
      %p179 = pneg %p58
      %p180 = pneg %p55
      %p181 = pneg %p79
      %p182 = pneg %p76
      %p183 = pneg %p105
      %p184 = pneg %p102
      %s185 = smul.u32 16, %s16
      %p186 = scmp.lt.s32.totalorder %s185, 31
      %s187 = scalar_select %p186, %s185, 31
      %s188 = smul.addr %s187, 8
      %s189 = scalar_lea.vmem %s3, %s188
      %p190 = pneg %p131
      %p191 = pneg %p128
      %s192 = smul.u32 16, %s16
      %p193 = scmp.lt.s32.totalorder %s192, 31
      %s194 = scalar_select %p193, %s192, 31
      %s195 = smul.addr %s194, 4
      %s196 = scalar_lea.vmem %s4, %s195
      %s197 = smul.u32 16, %s16
      %p198 = scmp.lt.s32.totalorder %s197, 31
      %s199 = scalar_select %p198, %s197, 31
      %s200 = smul.addr %s199, 4
      %s201 = scalar_lea.vmem %s0, %s200
      %s202 = smul.u32 16, %s16
      %s203 = smul.u32 16, %s16
      %p204 = scmp.lt.s32.totalorder %s203, 31
      %s205 = scalar_select %p204, %s203, 31
      %s206 = smul.addr %s205, 8
      %s207 = scalar_lea.vmem %s3, %s206
      %s208 = smul.u32 16, %s16
      %s209 = smul.u32 16, %s16
      %p210 = scmp.lt.s32.totalorder %s209, 31
      %s211 = scalar_select %p210, %s209, 31
      %s212 = smul.addr %s211, 4
      %s213 = scalar_lea.vmem %s4, %s212
      %s214 = smul.u32 16, %s16
      %v216 = vld [vmem:[%s201] sm:$0xf]
      %v217 = vld [vmem:[%s201 + $0x4] sm:$0xf]
      %v218 = vld [vmem:[%s201 + $0x8] sm:$0xf]
      %v219 = vld [vmem:[%s201 + $0xc] sm:$0xf]
      %v220 = vld [vmem:[%s201 + $0x10] sm:$0xf]
      %v221 = vld [vmem:[%s201 + $0x14] sm:$0xf]
      %v222 = vld [vmem:[%s201 + $0x18] sm:$0xf]
      %v223 = vld [vmem:[%s201 + $0x1c] sm:$0xf]
      %v224 = vld [vmem:[%s201 + $0x20] sm:$0xf]
      %v225 = vld [vmem:[%s201 + $0x24] sm:$0xf]
      %v226 = vld [vmem:[%s201 + $0x28] sm:$0xf]
      %v227 = vld [vmem:[%s201 + $0x2c] sm:$0xf]
      %v228 = vld [vmem:[%s201 + $0x30] sm:$0xf]
      %v229 = vld [vmem:[%s201 + $0x34] sm:$0xf]
      %v230 = vld [vmem:[%s201 + $0x38] sm:$0xf]
      %v231 = vld [vmem:[%s201 + $0x3c] sm:$0xf]
      %v232 = vld [vmem:[%s1] sm:$0xf]
      %v233 = vld [vmem:[%s1 + $0x4] sm:$0xf]
      %v234 = vld [vmem:[%s1 + $0x8] sm:$0xf]
      %v235 = vld [vmem:[%s1 + $0xc] sm:$0xf]
      %v236 = vld [vmem:[%s1 + $0x10] sm:$0xf]
      %v237 = vld [vmem:[%s1 + $0x14] sm:$0xf]
      %v238 = vld [vmem:[%s1 + $0x18] sm:$0xf]
      %v239 = vld [vmem:[%s1 + $0x1c] sm:$0xf]
      %v240 = vld [vmem:[%s1 + $0x20] sm:$0xf]
      %v241 = vld [vmem:[%s1 + $0x24] sm:$0xf]
      %v242 = vld [vmem:[%s1 + $0x28] sm:$0xf]
      %v243 = vld [vmem:[%s1 + $0x2c] sm:$0xf]
      %v244 = vld [vmem:[%s1 + $0x30] sm:$0xf]
      %v245 = vld [vmem:[%s1 + $0x34] sm:$0xf]
      %v246 = vld [vmem:[%s1 + $0x38] sm:$0xf]
      %v247 = vld [vmem:[%s1 + $0x3c] sm:$0xf]
      %v248 = vld [vmem:[%s2] sm:$0x1]
      %v250 = vlaneseq
      %v251 = vshrl.u32 %v250, 7
      %v252 = vsub.s32 0, %v251
      %v253 = vrot.slane %v248, %v252
      %v271 = vunpack.c.l.b16 %v216
      %v272 = vunpack.c.l.b16 %v217
      %v273 = vunpack.c.l.b16 %v218
      %v274 = vunpack.c.l.b16 %v219
      %v275 = vunpack.c.l.b16 %v220
      %v276 = vunpack.c.l.b16 %v221
      %v277 = vunpack.c.l.b16 %v222
      %v278 = vunpack.c.l.b16 %v223
      %v279 = vunpack.c.l.b16 %v224
      %v280 = vunpack.c.l.b16 %v225
      %v281 = vunpack.c.l.b16 %v226
      %v282 = vunpack.c.l.b16 %v227
      %v283 = vunpack.c.l.b16 %v228
      %v284 = vunpack.c.l.b16 %v229
      %v285 = vunpack.c.l.b16 %v230
      %v286 = vunpack.c.l.b16 %v231
      %v287 = vpack.c.b16 %v272, %v271
      %v288 = vpack.c.b16 %v274, %v273
      %v289 = vpack.c.b16 %v276, %v275
      %v290 = vpack.c.b16 %v278, %v277
      %v291 = vpack.c.b16 %v280, %v279
      %v292 = vpack.c.b16 %v282, %v281
      %v293 = vpack.c.b16 %v284, %v283
      %v294 = vpack.c.b16 %v286, %v285
      %v319 = vunpack.c.l.b16 %v232
      %v320 = vunpack.c.l.b16 %v233
      %v321 = vunpack.c.l.b16 %v234
      %v322 = vunpack.c.l.b16 %v235
      %v323 = vunpack.c.l.b16 %v236
      %v324 = vunpack.c.l.b16 %v237
      %v325 = vunpack.c.l.b16 %v238
      %v326 = vunpack.c.l.b16 %v239
      %v327 = vunpack.c.l.b16 %v240
      %v328 = vunpack.c.l.b16 %v241
      %v329 = vunpack.c.l.b16 %v242
      %v330 = vunpack.c.l.b16 %v243
      %v331 = vunpack.c.l.b16 %v244
      %v332 = vunpack.c.l.b16 %v245
      %v333 = vunpack.c.l.b16 %v246
      %v334 = vunpack.c.l.b16 %v247
      %v335 = vpack.c.b16 %v320, %v319
      %v336 = vpack.c.b16 %v322, %v321
      %v337 = vpack.c.b16 %v324, %v323
      %v338 = vpack.c.b16 %v326, %v325
      %v339 = vpack.c.b16 %v328, %v327
      %v340 = vpack.c.b16 %v330, %v329
      %v341 = vpack.c.b16 %v332, %v331
      %v342 = vpack.c.b16 %v334, %v333
      %351 = vmatprep.subr.bf16.mxu0 0
      %352 = vmatpush1.bf16.msra.mxu0 %v335
      %353 = vmatprep.subr.bf16.mxu0 0
      %354 = vmatpush1.bf16.msra.mxu0 %v336
      %355 = vmatprep.subr.bf16.mxu0 0
      %356 = vmatpush1.bf16.msra.mxu0 %v337
      %357 = vmatprep.subr.bf16.mxu0 0
      %358 = vmatpush1.bf16.msra.mxu0 %v338
      %359 = vmatprep.subr.bf16.mxu0 0
      %360 = vmatpush1.bf16.msra.mxu0 %v339
      %361 = vmatprep.subr.bf16.mxu0 0
      %362 = vmatpush1.bf16.msra.mxu0 %v340
      %363 = vmatprep.subr.bf16.mxu0 0
      %364 = vmatpush1.bf16.msra.mxu0 %v341
      %365 = vmatprep.subr.bf16.mxu0 0
      %366 = vmatpush1.bf16.msra.mxu0 %v342
      %367 = vmatprep.subr.bf16.mxu0 0
      %368 = vmatpush1.bf16.msra.mxu0 0
      %369 = vmatprep.subr.bf16.mxu0 0
      %370 = vmatpush1.bf16.msra.mxu0 0
      %371 = vmatprep.subr.bf16.mxu0 0
      %372 = vmatpush1.bf16.msra.mxu0 0
      %373 = vmatprep.subr.bf16.mxu0 0
      %374 = vmatpush1.bf16.msra.mxu0 0
      %375 = vmatprep.subr.bf16.mxu0 0
      %376 = vmatpush1.bf16.msra.mxu0 0
      %377 = vmatprep.subr.bf16.mxu0 0
      %378 = vmatpush1.bf16.msra.mxu0 0
      %379 = vmatprep.subr.bf16.mxu0 0
      %380 = vmatpush1.bf16.msra.mxu0 0
      %381 = vmatprep.subr.bf16.mxu0 0
      %382 = vmatpush1.bf16.msra.mxu0 0
      %383 = vmatprep.mubr.bf16.mxu0 0
      %384 = vmatmul.mubr.bf16.gmra.mrb[0].mxu0 %v287
      %v385 = vpop.f32.mrb[0].mxu0
      %v386 = vadd.f32 %v253, %v385
      %v387 = vpop.f32.mrb[0].mxu0
      %v388 = vpop.f32.mrb[0].mxu0
      %v389 = vadd.f32 %v253, %v388
      %v390 = vpop.f32.mrb[0].mxu0
      %391 = vmatprep.mubr.bf16.mxu0 0
      %392 = vmatmul.mubr.bf16.gmra.mrb[0].mxu0 %v288
      %v393 = vpop.f32.mrb[0].mxu0
      %v394 = vadd.f32 %v253, %v393
      %v395 = vpop.f32.mrb[0].mxu0
      %v396 = vpop.f32.mrb[0].mxu0
      %v397 = vadd.f32 %v253, %v396
      %v398 = vpop.f32.mrb[0].mxu0
      %399 = vmatprep.mubr.bf16.mxu0 0
      %400 = vmatmul.mubr.bf16.gmra.mrb[0].mxu0 %v289
      %v401 = vpop.f32.mrb[0].mxu0
      %v402 = vadd.f32 %v253, %v401
      %v403 = vpop.f32.mrb[0].mxu0
      %v404 = vpop.f32.mrb[0].mxu0
      %v405 = vadd.f32 %v253, %v404
      %v406 = vpop.f32.mrb[0].mxu0
      %407 = vmatprep.mubr.bf16.mxu0 0
      %408 = vmatmul.mubr.bf16.gmra.mrb[0].mxu0 %v290
      %v409 = vpop.f32.mrb[0].mxu0
      %v410 = vadd.f32 %v253, %v409
      %v411 = vpop.f32.mrb[0].mxu0
      %v412 = vpop.f32.mrb[0].mxu0
      %v413 = vadd.f32 %v253, %v412
      %v414 = vpop.f32.mrb[0].mxu0
      %415 = vmatprep.mubr.bf16.mxu0 0
      %416 = vmatmul.mubr.bf16.gmra.mrb[0].mxu0 %v291
      %v417 = vpop.f32.mrb[0].mxu0
      %v418 = vadd.f32 %v253, %v417
      %v419 = vpop.f32.mrb[0].mxu0
      %v420 = vpop.f32.mrb[0].mxu0
      %v421 = vadd.f32 %v253, %v420
      %v422 = vpop.f32.mrb[0].mxu0
      %423 = vmatprep.mubr.bf16.mxu0 0
      %424 = vmatmul.mubr.bf16.gmra.mrb[0].mxu0 %v292
      %v425 = vpop.f32.mrb[0].mxu0
      %v426 = vadd.f32 %v253, %v425
      %v427 = vpop.f32.mrb[0].mxu0
      %v428 = vpop.f32.mrb[0].mxu0
      %v429 = vadd.f32 %v253, %v428
      %v430 = vpop.f32.mrb[0].mxu0
      %431 = vmatprep.mubr.bf16.mxu0 0
      %432 = vmatmul.mubr.bf16.gmra.mrb[0].mxu0 %v293
      %v433 = vpop.f32.mrb[0].mxu0
      %v434 = vadd.f32 %v253, %v433
      %v435 = vpop.f32.mrb[0].mxu0
      %v436 = vpop.f32.mrb[0].mxu0
      %v437 = vadd.f32 %v253, %v436
      %v438 = vpop.f32.mrb[0].mxu0
      %439 = vmatprep.mubr.bf16.mxu0 0
      %440 = vmatmul.mubr.bf16.gmra.mrb[0].mxu0 %v294
      %v441 = vpop.f32.mrb[0].mxu0
      %v442 = vadd.f32 %v253, %v441
      %v443 = vpop.f32.mrb[0].mxu0
      %v444 = vpop.f32.mrb[0].mxu0
      %v445 = vadd.f32 %v253, %v444
      %v446 = vpop.f32.mrb[0].mxu0
      %447 = vdwg.mxu0
      %v448 = vmax.f32 %v386, 0.0
      %v449 = vmax.f32 %v389, 0.0
      %v450 = vmax.f32 %v394, 0.0
      %v451 = vmax.f32 %v397, 0.0
      %v452 = vmax.f32 %v402, 0.0
      %v453 = vmax.f32 %v405, 0.0
      %v454 = vmax.f32 %v410, 0.0
      %v455 = vmax.f32 %v413, 0.0
      %v456 = vmax.f32 %v418, 0.0
      %v457 = vmax.f32 %v421, 0.0
      %v458 = vmax.f32 %v426, 0.0
      %v459 = vmax.f32 %v429, 0.0
      %v460 = vmax.f32 %v434, 0.0
      %v461 = vmax.f32 %v437, 0.0
      %v462 = vmax.f32 %v442, 0.0
      %v463 = vmax.f32 %v445, 0.0
      %464 = vst [vmem:[%s207] sm:$0xff] %v448
      %465 = vst [vmem:[%s207 + $0x8] sm:$0xff] %v449
      %466 = vst [vmem:[%s207 + $0x10] sm:$0xff] %v450
      %467 = vst [vmem:[%s207 + $0x18] sm:$0xff] %v451
      %468 = vst [vmem:[%s207 + $0x20] sm:$0xff] %v452
      %469 = vst [vmem:[%s207 + $0x28] sm:$0xff] %v453
      %470 = vst [vmem:[%s207 + $0x30] sm:$0xff] %v454
      %471 = vst [vmem:[%s207 + $0x38] sm:$0xff] %v455
      %472 = vst [vmem:[%s207 + $0x40] sm:$0xff] %v456
      %473 = vst [vmem:[%s207 + $0x48] sm:$0xff] %v457
      %474 = vst [vmem:[%s207 + $0x50] sm:$0xff] %v458
      %475 = vst [vmem:[%s207 + $0x58] sm:$0xff] %v459
      %476 = vst [vmem:[%s207 + $0x60] sm:$0xff] %v460
      %477 = vst [vmem:[%s207 + $0x68] sm:$0xff] %v461
      %478 = vst [vmem:[%s207 + $0x70] sm:$0xff] %v462
      %479 = vst [vmem:[%s207 + $0x78] sm:$0xff] %v463
      %v480 = vpack.c.bf16 %v449, %v448
      %v481 = vpack.c.bf16 %v451, %v450
      %v482 = vpack.c.bf16 %v453, %v452
      %v483 = vpack.c.bf16 %v455, %v454
      %v484 = vpack.c.bf16 %v457, %v456
      %v485 = vpack.c.bf16 %v459, %v458
      %v486 = vpack.c.bf16 %v461, %v460
      %v487 = vpack.c.bf16 %v463, %v462
      %v496 = vunpack.c.l.b16 %v480
      %v497 = vunpack.c.h.b16 %v480
      %v498 = vunpack.c.l.b16 %v481
      %v499 = vunpack.c.h.b16 %v481
      %v500 = vunpack.c.l.b16 %v482
      %v501 = vunpack.c.h.b16 %v482
      %v502 = vunpack.c.l.b16 %v483
      %v503 = vunpack.c.h.b16 %v483
      %v504 = vunpack.c.l.b16 %v484
      %v505 = vunpack.c.h.b16 %v484
      %v506 = vunpack.c.l.b16 %v485
      %v507 = vunpack.c.h.b16 %v485
      %v508 = vunpack.c.l.b16 %v486
      %v509 = vunpack.c.h.b16 %v486
      %v510 = vunpack.c.l.b16 %v487
      %v511 = vunpack.c.h.b16 %v487
      %v512 = vpack.c.b16 %v496, %v496
      %v513 = vpack.c.b16 %v497, %v497
      %v514 = vpack.c.b16 %v498, %v498
      %v515 = vpack.c.b16 %v499, %v499
      %v516 = vpack.c.b16 %v500, %v500
      %v517 = vpack.c.b16 %v501, %v501
      %v518 = vpack.c.b16 %v502, %v502
      %v519 = vpack.c.b16 %v503, %v503
      %v520 = vpack.c.b16 %v504, %v504
      %v521 = vpack.c.b16 %v505, %v505
      %v522 = vpack.c.b16 %v506, %v506
      %v523 = vpack.c.b16 %v507, %v507
      %v524 = vpack.c.b16 %v508, %v508
      %v525 = vpack.c.b16 %v509, %v509
      %v526 = vpack.c.b16 %v510, %v510
      %v527 = vpack.c.b16 %v511, %v511
      %544 = vst [vmem:[%s213] sm:$0xf] %v512
      %545 = vst [vmem:[%s213 + $0x4] sm:$0xf] %v513
      %546 = vst [vmem:[%s213 + $0x8] sm:$0xf] %v514
      %547 = vst [vmem:[%s213 + $0xc] sm:$0xf] %v515
      %548 = vst [vmem:[%s213 + $0x10] sm:$0xf] %v516
      %549 = vst [vmem:[%s213 + $0x14] sm:$0xf] %v517
      %550 = vst [vmem:[%s213 + $0x18] sm:$0xf] %v518
      %551 = vst [vmem:[%s213 + $0x1c] sm:$0xf] %v519
      %552 = vst [vmem:[%s213 + $0x20] sm:$0xf] %v520
      %553 = vst [vmem:[%s213 + $0x24] sm:$0xf] %v521
      %554 = vst [vmem:[%s213 + $0x28] sm:$0xf] %v522
      %555 = vst [vmem:[%s213 + $0x2c] sm:$0xf] %v523
      %556 = vst [vmem:[%s213 + $0x30] sm:$0xf] %v524
      %557 = vst [vmem:[%s213 + $0x34] sm:$0xf] %v525
      %558 = vst [vmem:[%s213 + $0x38] sm:$0xf] %v526
      %559 = vst [vmem:[%s213 + $0x3c] sm:$0xf] %v527
      %s560 = smul.u32 16, %s16
      %p561 = scmp.lt.s32.totalorder %s560, 31
      %s562 = scalar_select %p561, %s560, 31
      %s563 = smul.addr %s562, 8
      %s564 = scalar_lea.vmem %s3, %s563
      %s565 = smul.u32 16, %s16
      %p566 = scmp.lt.s32.totalorder %s565, 31
      %s567 = scalar_select %p566, %s565, 31
      %s568 = smul.addr %s567, 4
      %s569 = scalar_lea.vmem %s4, %s568
      // Predicated region
      $region33: #{_lambda_.6} parent=31 // pred_check
        %p570 = pneg %p102
      $region34: #{_lambda_.6} parent=31 // pred_check_branch
        %572 = sbr.rel (%p570) target = $region36
      $region35: #{_lambda_.6} parent=31 // pred_region
        %s573 = smul.u32 16, %s16
      $region36: #{_lambda_.6} parent=31 // pred_fallthru
        _
      // Predicated region
      $region37: #{_lambda_.6} parent=31 // pred_check
        %p574 = pneg %p128
      $region38: #{_lambda_.6} parent=31 // pred_check_branch
        %576 = sbr.rel (%p574) target = $region40
      $region39: #{_lambda_.6} parent=31 // pred_region
        %s577 = smul.u32 16, %s16
      $region40: #{_lambda_.6} parent=31 // pred_fallthru
        _
    $region32: #{_lambda_.6} parent=5 // pred_fallthru
      _
    %p578 = scmp.le.s32.totalorder 2, %s11
    // Predicated region
    $region41: #{_lambda_.6} parent=5 // pred_check
      %p579 = pneg %p578
    $region42: #{_lambda_.6} parent=5 // pred_check_branch
      %581 = sbr.rel (%p579) target = $region44
    $region43: #{_lambda_.6} parent=5 // pred_region
      %s582 = ssub.s32 %s11, 2
      // Predicated region
      $region45: #{_lambda_.6} parent=43 // pred_check
        %p583 = pneg %p108
      $region46: #{_lambda_.6} parent=43 // pred_check_branch
        %585 = sbr.rel (%p583) target = $region48
      $region47: #{_lambda_.6} parent=43 // pred_region
        %s586 = smul.u32 16, %s17
        %p587 = scmp.lt.s32.totalorder %s586, 31
        %s588 = scalar_select %p587, %s586, 31
        %s589 = smul.addr %s588, 8
        %s590 = scalar_lea.vmem %s3, %s589
      $region48: #{_lambda_.6} parent=43 // pred_fallthru
        _
      // Predicated region
      $region49: #{_lambda_.6} parent=43 // pred_check
        %p591 = pneg %p134
      $region50: #{_lambda_.6} parent=43 // pred_check_branch
        %593 = sbr.rel (%p591) target = $region52
      $region51: #{_lambda_.6} parent=43 // pred_region
        %s594 = smul.u32 16, %s17
        %p595 = scmp.lt.s32.totalorder %s594, 31
        %s596 = scalar_select %p595, %s594, 31
        %s597 = smul.addr %s596, 4
        %s598 = scalar_lea.vmem %s4, %s597
      $region52: #{_lambda_.6} parent=43 // pred_fallthru
        _
    $region44: #{_lambda_.6} parent=5 // pred_fallthru
      _
  $region6: #{_lambda_.6} parent=0 // loop_footer
    %s15 = sadd.s32 1, %s11
  $region7: #{_lambda_.6} parent=0 // loop_footer_branch
    %10 = sbr.rel target = $region3
  $region8: #{_lambda_.6} parent=0 // loop_exit
    _

// kernel: _lambda_.7
$region0: #{_lambda_.7}
  #allocation0 [shape = 'u32[]', space=smem, size = 0x4, offset = 0x4, fixed_abs, tag = 'smem constant byte address 0x4 - core index']
  #allocation1 [shape = 'u32[144,128]{1,0:T(1,128)}', space=vmem, size = 0x12000, scoped, tag = 'internal scratch']
  #allocation2 [shape = 'f32[128,128]{1,0:T(8,128)}', space=vmem, size = 0x10000, scoped, tag = 'scratch operand']
  %s0 = inlined_call_operand.vmem [shape: bf16[256,256], index: 0, kind: input, shape index: {}]
  %s1 = inlined_call_operand.vmem [shape: bf16[256,128], index: 1, kind: input, shape index: {}]
  %s2 = inlined_call_operand.vmem [shape: bf16[128,256], index: 2, kind: input, shape index: {}]
  %s3 = inlined_call_operand.vmem [shape: f32[1,256], index: 3, kind: input, shape index: {}]
  %s4 = inlined_call_operand.vmem [shape: f32[256,128], index: 4, kind: output, shape index: {0}]
  %s5 = inlined_call_operand.vmem [shape: f32[256,128], index: 5, kind: output, shape index: {1}]
  %s6 = inlined_call_operand.vmem [shape: bf16[256,256], index: 6, kind: output, shape index: {2}]
  %7 = xla_tuple %s4, %s5, %s6
  %s8 = sld [smem:[#allocation0]]
  $region114: #{_lambda_.7} parent=0
    _
  %s10 = ssub.s32 1, %s8
  %s11 = scalar_select 0, %s10, %s8
  $region1: #{_lambda_.7} parent=0
    #allocation3 [shape = 'u8[65536]{0}', space=vmem, size = 0x10000, scoped, tag = 'input window, operand 0']
    loop: start=0, step=1, limit=6
    $region2: #{_lambda_.7} parent=1 // loop_pre_header
      _
    $region3: #{_lambda_.7} parent=1 // loop_header
      %s13 = sphi 0, %s17
      %p14 = scmp.ge.s32.totalorder %s13, 6
      %s20 = sphi 0, %s32
      %s21 = sphi 0, %s28
      %s22 = sphi 0, %s20
      %s23 = sphi 0, %s21
      %s24 = sphi 0, %s22
      %s25 = sphi 0, %s23
      %s37 = sphi 0, %s39
      %s40 = sphi 0, %s37
      %s41 = sphi 0, %s40
      %s57 = sphi 0, %s41
      %s63 = sphi 0, %s65
      %s66 = sphi 0, %s63
      %s67 = sphi 0, %s66
      %s83 = sphi 0, %s67
      %s87 = sphi 0, %s87
      %s89 = sphi 0, %s87
      %s90 = sphi 0, %s89
      %s104 = sphi 0, %s90
      %s108 = sphi 0, %s108
      %s110 = sphi 0, %s108
      %s111 = sphi 0, %s110
      %s125 = sphi 0, %s111
      %s131 = sphi 0, %s133
      %s134 = sphi 0, %s131
      %s135 = sphi 0, %s134
      %s151 = sphi 0, %s135
      %s157 = sphi 0, %s159
      %s160 = sphi 0, %s157
      %s161 = sphi 0, %s160
      %s177 = sphi 0, %s161
      %s183 = sphi 0, %s185
      %s186 = sphi 0, %s183
      %s187 = sphi 0, %s186
      %s203 = sphi 0, %s187
    $region4: #{_lambda_.7} parent=1 // loop_header_branch
      %16 = sbr.rel (%p14) target = $region8
    $region5: #{_lambda_.7} parent=1 // loop_body
      %s18 = ssub.s32 %s13, 1
      %s19 = ssub.s32 %s13, 2
      %s26 = sadd.s32 1, %s21
      %p27 = scmp.ge.s32.totalorder %s26, 2
      %s28 = scalar_select %p27, 0, %s26
      %s29 = sadd.s32 1, %s20
      %s30 = scalar_select %p27, %s29, %s20
      %p31 = scmp.ge.s32.totalorder %s30, 2
      %s32 = scalar_select %p31, 0, %s30
      %s33 = ssub.s32 %s20, %s32
      %s34 = ssub.s32 %s21, %s28
      %s35 = sor.u32 %s33, %s34
      %p36 = scmp.eq.s32.totalorder %s35, 0
      %s38 = sadd.s32 %s37, 1
      %s39 = scalar_select %p36, %s37, %s38
      %p42 = pneg %p36
      %p43 = scmp.eq.s32.totalorder %s13, 3
      %p44 = por %p42, %p43
      %p45 = scmp.ne.s32.totalorder %s37, %s40
      %p46 = scmp.eq.s32.totalorder %s13, 0
      %p47 = por %p45, %p46
      %p48 = scmp.ne.s32.totalorder %s37, %s40
      %p49 = scmp.eq.s32.totalorder %s18, 3
      %p50 = por %p48, %p49
      %p51 = scmp.ne.s32.totalorder %s40, %s41
      %p52 = scmp.eq.s32.totalorder %s18, 0
      %p53 = por %p51, %p52
      %p54 = scmp.ne.s32.totalorder %s40, %s41
      %p55 = scmp.eq.s32.totalorder %s19, 3
      %p56 = por %p54, %p55
      %p58 = scmp.ne.s32.totalorder %s41, %s57
      %p59 = scmp.eq.s32.totalorder %s19, 0
      %p60 = por %p58, %p59
      %s61 = ssub.s32 %s21, %s28
      %p62 = scmp.eq.s32.totalorder %s61, 0
      %s64 = sadd.s32 %s63, 1
      %s65 = scalar_select %p62, %s63, %s64
      %p68 = pneg %p62
      %p69 = scmp.eq.s32.totalorder %s13, 3
      %p70 = por %p68, %p69
      %p71 = scmp.ne.s32.totalorder %s63, %s66
      %p72 = scmp.eq.s32.totalorder %s13, 0
      %p73 = por %p71, %p72
      %p74 = scmp.ne.s32.totalorder %s63, %s66
      %p75 = scmp.eq.s32.totalorder %s18, 3
      %p76 = por %p74, %p75
      %p77 = scmp.ne.s32.totalorder %s66, %s67
      %p78 = scmp.eq.s32.totalorder %s18, 0
      %p79 = por %p77, %p78
      %p80 = scmp.ne.s32.totalorder %s66, %s67
      %p81 = scmp.eq.s32.totalorder %s19, 3
      %p82 = por %p80, %p81
      %p84 = scmp.ne.s32.totalorder %s67, %s83
      %p85 = scmp.eq.s32.totalorder %s19, 0
      %p86 = por %p84, %p85
      %s88 = sadd.s32 %s87, 1
      %p91 = scmp.eq.s32.totalorder %s13, 3
      %p92 = scmp.ne.s32.totalorder %s87, %s89
      %p93 = scmp.eq.s32.totalorder %s13, 0
      %p94 = por %p92, %p93
      %p95 = scmp.ne.s32.totalorder %s87, %s89
      %p96 = scmp.eq.s32.totalorder %s18, 3
      %p97 = por %p95, %p96
      %p98 = scmp.ne.s32.totalorder %s89, %s90
      %p99 = scmp.eq.s32.totalorder %s18, 0
      %p100 = por %p98, %p99
      %p101 = scmp.ne.s32.totalorder %s89, %s90
      %p102 = scmp.eq.s32.totalorder %s19, 3
      %p103 = por %p101, %p102
      %p105 = scmp.ne.s32.totalorder %s90, %s104
      %p106 = scmp.eq.s32.totalorder %s19, 0
      %p107 = por %p105, %p106
      %s109 = sadd.s32 %s108, 1
      %p112 = scmp.eq.s32.totalorder %s13, 3
      %p113 = scmp.ne.s32.totalorder %s108, %s110
      %p114 = scmp.eq.s32.totalorder %s13, 0
      %p115 = por %p113, %p114
      %p116 = scmp.ne.s32.totalorder %s108, %s110
      %p117 = scmp.eq.s32.totalorder %s18, 3
      %p118 = por %p116, %p117
      %p119 = scmp.ne.s32.totalorder %s110, %s111
      %p120 = scmp.eq.s32.totalorder %s18, 0
      %p121 = por %p119, %p120
      %p122 = scmp.ne.s32.totalorder %s110, %s111
      %p123 = scmp.eq.s32.totalorder %s19, 3
      %p124 = por %p122, %p123
      %p126 = scmp.ne.s32.totalorder %s111, %s125
      %p127 = scmp.eq.s32.totalorder %s19, 0
      %p128 = por %p126, %p127
      %s129 = ssub.s32 %s20, %s32
      %p130 = scmp.eq.s32.totalorder %s129, 0
      %s132 = sadd.s32 %s131, 1
      %s133 = scalar_select %p130, %s131, %s132
      %p136 = pneg %p130
      %p137 = scmp.eq.s32.totalorder %s13, 3
      %p138 = por %p136, %p137
      %p139 = scmp.ne.s32.totalorder %s131, %s134
      %p140 = scmp.eq.s32.totalorder %s13, 0
      %p141 = por %p139, %p140
      %p142 = scmp.ne.s32.totalorder %s131, %s134
      %p143 = scmp.eq.s32.totalorder %s18, 3
      %p144 = por %p142, %p143
      %p145 = scmp.ne.s32.totalorder %s134, %s135
      %p146 = scmp.eq.s32.totalorder %s18, 0
      %p147 = por %p145, %p146
      %p148 = scmp.ne.s32.totalorder %s134, %s135
      %p149 = scmp.eq.s32.totalorder %s19, 3
      %p150 = por %p148, %p149
      %p152 = scmp.ne.s32.totalorder %s135, %s151
      %p153 = scmp.eq.s32.totalorder %s19, 0
      %p154 = por %p152, %p153
      %s155 = ssub.s32 %s20, %s32
      %p156 = scmp.eq.s32.totalorder %s155, 0
      %s158 = sadd.s32 %s157, 1
      %s159 = scalar_select %p156, %s157, %s158
      %p162 = pneg %p156
      %p163 = scmp.eq.s32.totalorder %s13, 3
      %p164 = por %p162, %p163
      %p165 = scmp.ne.s32.totalorder %s157, %s160
      %p166 = scmp.eq.s32.totalorder %s13, 0
      %p167 = por %p165, %p166
      %p168 = scmp.ne.s32.totalorder %s157, %s160
      %p169 = scmp.eq.s32.totalorder %s18, 3
      %p170 = por %p168, %p169
      %p171 = scmp.ne.s32.totalorder %s160, %s161
      %p172 = scmp.eq.s32.totalorder %s18, 0
      %p173 = por %p171, %p172
      %p174 = scmp.ne.s32.totalorder %s160, %s161
      %p175 = scmp.eq.s32.totalorder %s19, 3
      %p176 = por %p174, %p175
      %p178 = scmp.ne.s32.totalorder %s161, %s177
      %p179 = scmp.eq.s32.totalorder %s19, 0
      %p180 = por %p178, %p179
      %s181 = ssub.s32 %s20, %s32
      %p182 = scmp.eq.s32.totalorder %s181, 0
      %s184 = sadd.s32 %s183, 1
      %s185 = scalar_select %p182, %s183, %s184
      %p188 = pneg %p182
      %p189 = scmp.eq.s32.totalorder %s13, 3
      %p190 = por %p188, %p189
      %p191 = scmp.ne.s32.totalorder %s183, %s186
      %p192 = scmp.eq.s32.totalorder %s13, 0
      %p193 = por %p191, %p192
      %p194 = scmp.ne.s32.totalorder %s183, %s186
      %p195 = scmp.eq.s32.totalorder %s18, 3
      %p196 = por %p194, %p195
      %p197 = scmp.ne.s32.totalorder %s186, %s187
      %p198 = scmp.eq.s32.totalorder %s18, 0
      %p199 = por %p197, %p198
      %p200 = scmp.ne.s32.totalorder %s186, %s187
      %p201 = scmp.eq.s32.totalorder %s19, 3
      %p202 = por %p200, %p201
      %p204 = scmp.ne.s32.totalorder %s187, %s203
      %p205 = scmp.eq.s32.totalorder %s19, 0
      %p206 = por %p204, %p205
      %p207 = scmp.le.s32.totalorder 1, %s13
      %p208 = scmp.lt.s32.totalorder %s13, 5
      %p209 = pnand %p207, %p208
      %p210 = pneg %p209
      // Predicated region
      $region9: #{_lambda_.7} parent=5 // pred_check
        _
      $region10: #{_lambda_.7} parent=5 // pred_check_branch
        %212 = sbr.rel (%p209) target = $region12
      $region11: #{_lambda_.7} parent=5 // pred_region
        %s213 = ssub.s32 %s13, 1
        // Predicated region
        $region13: #{_lambda_.7} parent=11 // pred_check
          %p214 = pneg %p100
        $region14: #{_lambda_.7} parent=11 // pred_check_branch
          %216 = sbr.rel (%p214) target = $region16
        $region15: #{_lambda_.7} parent=11 // pred_region
          _
        $region16: #{_lambda_.7} parent=11 // pred_fallthru
          _
        // Predicated region
        $region17: #{_lambda_.7} parent=11 // pred_check
          %p217 = pneg %p121
        $region18: #{_lambda_.7} parent=11 // pred_check_branch
          %219 = sbr.rel (%p217) target = $region20
        $region19: #{_lambda_.7} parent=11 // pred_region
          _
        $region20: #{_lambda_.7} parent=11 // pred_fallthru
          _
      $region12: #{_lambda_.7} parent=5 // pred_fallthru
        _
      %p220 = scmp.lt.s32.totalorder %s13, 4
      // Predicated region
      $region21: #{_lambda_.7} parent=5 // pred_check
        %p221 = pneg %p220
      $region22: #{_lambda_.7} parent=5 // pred_check_branch
        %223 = sbr.rel (%p221) target = $region24
      $region23: #{_lambda_.7} parent=5 // pred_region
        // Predicated region
        $region25: #{_lambda_.7} parent=23 // pred_check
          %p224 = pneg %p47
        $region26: #{_lambda_.7} parent=23 // pred_check_branch
          %226 = sbr.rel (%p224) target = $region28
        $region27: #{_lambda_.7} parent=23 // pred_region
          %s227 = sand.u32 %s37, 1
          %s228 = sand.u32 %s37, 1
          %s229 = smul.addr %s228, 64
          %s230 = scalar_lea.vmem [#allocation3], %s229
          %s231 = smul.u32 16, %s20
          %s232 = smul.addr %s231, 2
          %s233 = sadd.s32 %s21, %s232
          %s234 = smul.addr %s233, 4
          %s235 = scalar_lea.vmem %s0, %s234
          // Predicated region
          $region29: #{_lambda_.7} parent=27 // pred_check
            _
          $region30: #{_lambda_.7} parent=27 // pred_check_branch
            %237 = sbr.rel (0) target = $region32
          $region31: #{_lambda_.7} parent=27 // pred_region
            // Predicated region
            $region33: #{_lambda_.7} parent=31 // pred_check
              _
            $region34: #{_lambda_.7} parent=31 // pred_check_branch
              %239 = sbr.rel target = $region36
            $region35: #{_lambda_.7} parent=31 // pred_region
              // Predicated region
              $region48: #{_lambda_.7} parent=35 // pred_check
                _
              $region49: #{_lambda_.7} parent=35 // pred_check_branch
                %284 = sbr.rel (0) target = $region51
              $region50: #{_lambda_.7} parent=35 // pred_region
                loop: start=0, step=1, limit=1
                $region52: #{_lambda_.7} parent=50 // loop_pre_header
                  _
                $region53: #{_lambda_.7} parent=50 // loop_header
                  %s286 = sphi 0, %s290
                  %p287 = scmp.ge.s32.totalorder %s286, 1
                  %s291 = sphi %s235, %s235
                  %s292 = sphi %s230, %s230
                $region54: #{_lambda_.7} parent=50 // loop_header_branch
                  %289 = sbr.rel (%p287) target = $region58
                $region55: #{_lambda_.7} parent=50 // loop_body
                  _
                $region56: #{_lambda_.7} parent=50 // loop_footer
                  %s290 = sadd.s32 1, %s286
                $region57: #{_lambda_.7} parent=50 // loop_footer_branch
                  %285 = sbr.rel target = $region53
                $region58: #{_lambda_.7} parent=50 // loop_exit
                  _
                loop: start=0, step=1, limit=1
                $region59: #{_lambda_.7} parent=50 // loop_pre_header
                  _
                $region60: #{_lambda_.7} parent=50 // loop_header
                  %s295 = sphi 0, %s299
                  %p296 = scmp.ge.s32.totalorder %s295, 1
                  %s300 = sphi %s235, %s235
                  %s301 = sphi %s230, %s230
                $region61: #{_lambda_.7} parent=50 // loop_header_branch
                  %298 = sbr.rel (%p296) target = $region65
                $region62: #{_lambda_.7} parent=50 // loop_body
                  %v302 = vld [vmem:[%s300] sm:$0xf]
                  %303 = vst [vmem:[%s301] sm:$0xf] %v302
                  %v304 = vld [vmem:[%s300 + $0x8] sm:$0xf]
                  %305 = vst [vmem:[%s301 + $0x4] sm:$0xf] %v304
                  %v306 = vld [vmem:[%s300 + $0x10] sm:$0xf]
                  %307 = vst [vmem:[%s301 + $0x8] sm:$0xf] %v306
                  %v308 = vld [vmem:[%s300 + $0x18] sm:$0xf]
                  %309 = vst [vmem:[%s301 + $0xc] sm:$0xf] %v308
                  %v310 = vld [vmem:[%s300 + $0x20] sm:$0xf]
                  %311 = vst [vmem:[%s301 + $0x10] sm:$0xf] %v310
                  %v312 = vld [vmem:[%s300 + $0x28] sm:$0xf]
                  %313 = vst [vmem:[%s301 + $0x14] sm:$0xf] %v312
                  %v314 = vld [vmem:[%s300 + $0x30] sm:$0xf]
                  %315 = vst [vmem:[%s301 + $0x18] sm:$0xf] %v314
                  %v316 = vld [vmem:[%s300 + $0x38] sm:$0xf]
                  %317 = vst [vmem:[%s301 + $0x1c] sm:$0xf] %v316
                  %v318 = vld [vmem:[%s300 + $0x40] sm:$0xf]
                  %319 = vst [vmem:[%s301 + $0x20] sm:$0xf] %v318
                  %v320 = vld [vmem:[%s300 + $0x48] sm:$0xf]
                  %321 = vst [vmem:[%s301 + $0x24] sm:$0xf] %v320
                  %v322 = vld [vmem:[%s300 + $0x50] sm:$0xf]
                  %323 = vst [vmem:[%s301 + $0x28] sm:$0xf] %v322
                  %v324 = vld [vmem:[%s300 + $0x58] sm:$0xf]
                  %325 = vst [vmem:[%s301 + $0x2c] sm:$0xf] %v324
                  %v326 = vld [vmem:[%s300 + $0x60] sm:$0xf]
                  %327 = vst [vmem:[%s301 + $0x30] sm:$0xf] %v326
                  %v328 = vld [vmem:[%s300 + $0x68] sm:$0xf]
                  %329 = vst [vmem:[%s301 + $0x34] sm:$0xf] %v328
                  %v330 = vld [vmem:[%s300 + $0x70] sm:$0xf]
                  %331 = vst [vmem:[%s301 + $0x38] sm:$0xf] %v330
                  %v332 = vld [vmem:[%s300 + $0x78] sm:$0xf]
                  %333 = vst [vmem:[%s301 + $0x3c] sm:$0xf] %v332
                $region63: #{_lambda_.7} parent=50 // loop_footer
                  %s299 = sadd.s32 1, %s295
                $region64: #{_lambda_.7} parent=50 // loop_footer_branch
                  %294 = sbr.rel target = $region60
                $region65: #{_lambda_.7} parent=50 // loop_exit
                  _
              $region51: #{_lambda_.7} parent=35 // pred_fallthru
                _
            $region36: #{_lambda_.7} parent=31 // pred_fallthru
              _
            // Predicated region
            $region37: #{_lambda_.7} parent=31 // pred_check
              _
            $region38: #{_lambda_.7} parent=31 // pred_check_branch
              %241 = sbr.rel (0) target = $region40
            $region39: #{_lambda_.7} parent=31 // pred_region
              loop: start=0, step=1, limit=1
              $region41: #{_lambda_.7} parent=39 // loop_pre_header
                _
              $region42: #{_lambda_.7} parent=39 // loop_header
                %s244 = sphi 0, %s248
                %p245 = scmp.ge.s32.totalorder %s244, 1
                %s249 = sphi %s235, %s235
                %s250 = sphi %s230, %s230
              $region43: #{_lambda_.7} parent=39 // loop_header_branch
                %247 = sbr.rel (%p245) target = $region47
              $region44: #{_lambda_.7} parent=39 // loop_body
                %v251 = vld [vmem:[%s249] sm:$0xf]
                %252 = vst [vmem:[%s250] sm:$0xf] %v251
                %v253 = vld [vmem:[%s249 + $0x8] sm:$0xf]
                %254 = vst [vmem:[%s250 + $0x4] sm:$0xf] %v253
                %v255 = vld [vmem:[%s249 + $0x10] sm:$0xf]
                %256 = vst [vmem:[%s250 + $0x8] sm:$0xf] %v255
                %v257 = vld [vmem:[%s249 + $0x18] sm:$0xf]
                %258 = vst [vmem:[%s250 + $0xc] sm:$0xf] %v257
                %v259 = vld [vmem:[%s249 + $0x20] sm:$0xf]
                %260 = vst [vmem:[%s250 + $0x10] sm:$0xf] %v259
                %v261 = vld [vmem:[%s249 + $0x28] sm:$0xf]
                %262 = vst [vmem:[%s250 + $0x14] sm:$0xf] %v261
                %v263 = vld [vmem:[%s249 + $0x30] sm:$0xf]
                %264 = vst [vmem:[%s250 + $0x18] sm:$0xf] %v263
                %v265 = vld [vmem:[%s249 + $0x38] sm:$0xf]
                %266 = vst [vmem:[%s250 + $0x1c] sm:$0xf] %v265
                %v267 = vld [vmem:[%s249 + $0x40] sm:$0xf]
                %268 = vst [vmem:[%s250 + $0x20] sm:$0xf] %v267
                %v269 = vld [vmem:[%s249 + $0x48] sm:$0xf]
                %270 = vst [vmem:[%s250 + $0x24] sm:$0xf] %v269
                %v271 = vld [vmem:[%s249 + $0x50] sm:$0xf]
                %272 = vst [vmem:[%s250 + $0x28] sm:$0xf] %v271
                %v273 = vld [vmem:[%s249 + $0x58] sm:$0xf]
                %274 = vst [vmem:[%s250 + $0x2c] sm:$0xf] %v273
                %v275 = vld [vmem:[%s249 + $0x60] sm:$0xf]
                %276 = vst [vmem:[%s250 + $0x30] sm:$0xf] %v275
                %v277 = vld [vmem:[%s249 + $0x68] sm:$0xf]
                %278 = vst [vmem:[%s250 + $0x34] sm:$0xf] %v277
                %v279 = vld [vmem:[%s249 + $0x70] sm:$0xf]
                %280 = vst [vmem:[%s250 + $0x38] sm:$0xf] %v279
                %v281 = vld [vmem:[%s249 + $0x78] sm:$0xf]
                %282 = vst [vmem:[%s250 + $0x3c] sm:$0xf] %v281
              $region45: #{_lambda_.7} parent=39 // loop_footer
                %s248 = sadd.s32 1, %s244
              $region46: #{_lambda_.7} parent=39 // loop_footer_branch
                %243 = sbr.rel target = $region42
              $region47: #{_lambda_.7} parent=39 // loop_exit
                _
            $region40: #{_lambda_.7} parent=31 // pred_fallthru
              _
          $region32: #{_lambda_.7} parent=27 // pred_fallthru
            _
          %334 = vnop
        $region28: #{_lambda_.7} parent=23 // pred_fallthru
          _
        // Predicated region
        $region66: #{_lambda_.7} parent=23 // pred_check
          %p335 = pneg %p73
        $region67: #{_lambda_.7} parent=23 // pred_check_branch
          %337 = sbr.rel (%p335) target = $region69
        $region68: #{_lambda_.7} parent=23 // pred_region
          %s338 = smul.u32 16, %s21
          %p339 = scmp.lt.s32.totalorder %s338, 31
          %s340 = scalar_select %p339, %s338, 31
          %s341 = smul.addr %s340, 4
          %s342 = scalar_lea.vmem %s1, %s341
          %s343 = smul.u32 16, %s21
        $region69: #{_lambda_.7} parent=23 // pred_fallthru
          _
      $region24: #{_lambda_.7} parent=5 // pred_fallthru
        _
      %p344 = scmp.le.s32.totalorder 1, %s13
      %p345 = scmp.lt.s32.totalorder %s13, 5
      %p346 = pnand %p344, %p345
      %p347 = pneg %p346
      // Predicated region
      $region70: #{_lambda_.7} parent=5 // pred_check
        _
      $region71: #{_lambda_.7} parent=5 // pred_check_branch
        %349 = sbr.rel (%p346) target = $region73
      $region72: #{_lambda_.7} parent=5 // pred_region
        %s350 = ssub.s32 %s13, 1
        %s351 = sand.u32 %s40, 1
        %s352 = sand.u32 %s40, 1
        %s353 = smul.addr %s352, 64
        %s354 = scalar_lea.vmem [#allocation3], %s353
        // Predicated region
        $region74: #{_lambda_.7} parent=72 // pred_check
          %p355 = pneg %p53
        $region75: #{_lambda_.7} parent=72 // pred_check_branch
          %357 = sbr.rel (%p355) target = $region77
        $region76: #{_lambda_.7} parent=72 // pred_region
          _
        $region77: #{_lambda_.7} parent=72 // pred_fallthru
          _
        %s358 = sand.u32 %s40, 1
        %s359 = sand.u32 %s40, 1
        %s360 = smul.addr %s359, 64
        %s361 = scalar_lea.vmem [#allocation3], %s360
        %p362 = pneg %p53
        %p363 = pneg %p50
        %s364 = smul.u32 16, %s23
        %p365 = scmp.lt.s32.totalorder %s364, 31
        %s366 = scalar_select %p365, %s364, 31
        %s367 = smul.addr %s366, 4
        %s368 = scalar_lea.vmem %s1, %s367
        %p369 = pneg %p79
        %p370 = pneg %p76
        %p371 = pneg %p100
        %p372 = pneg %p97
        %p373 = pneg %p121
        %p374 = pneg %p118
        %p375 = pneg %p147
        %p376 = pneg %p144
        %s377 = smul.u32 16, %s22
        %p378 = scmp.lt.s32.totalorder %s377, 31
        %s379 = scalar_select %p378, %s377, 31
        %s380 = smul.addr %s379, 8
        %s381 = scalar_lea.vmem %s4, %s380
        %p382 = pneg %p173
        %p383 = pneg %p170
        %s384 = smul.u32 16, %s22
        %p385 = scmp.lt.s32.totalorder %s384, 31
        %s386 = scalar_select %p385, %s384, 31
        %s387 = smul.addr %s386, 8
        %s388 = scalar_lea.vmem %s5, %s387
        %p389 = pneg %p199
        %p390 = pneg %p196
        %s391 = smul.u32 16, %s22
        %p392 = scmp.lt.s32.totalorder %s391, 31
        %s393 = scalar_select %p392, %s391, 31
        %s394 = smul.addr %s393, 2
        %s395 = smul.addr %s394, 4
        %s396 = scalar_lea.vmem %s6, %s395
        %s397 = smul.u32 16, %s22
        %s398 = smul.u32 16, %s23
        %p399 = scmp.lt.s32.totalorder %s398, 31
        %s400 = scalar_select %p399, %s398, 31
        %s401 = smul.addr %s400, 4
        %s402 = scalar_lea.vmem %s1, %s401
        %s403 = smul.u32 16, %s23
        %s404 = smul.u32 16, %s22
        %p405 = scmp.lt.s32.totalorder %s404, 31
        %s406 = scalar_select %p405, %s404, 31
        %s407 = smul.addr %s406, 8
        %s408 = scalar_lea.vmem %s4, %s407
        %s409 = smul.u32 16, %s22
        %s410 = smul.u32 16, %s22
        %p411 = scmp.lt.s32.totalorder %s410, 31
        %s412 = scalar_select %p411, %s410, 31
        %s413 = smul.addr %s412, 8
        %s414 = scalar_lea.vmem %s5, %s413
        %s415 = smul.u32 16, %s22
        %s416 = smul.u32 16, %s22
        %p417 = scmp.lt.s32.totalorder %s416, 31
        %s418 = scalar_select %p417, %s416, 31
        %s419 = smul.addr %s418, 2
        %s420 = smul.addr %s419, 4
        %s421 = scalar_lea.vmem %s6, %s420
        %s422 = smul.u32 16, %s22
        %p424 = scmp.eq.s32.totalorder %s23, 0
        // Predicated region
        $region78: #{_lambda_.7} parent=72 // pred_check
          %p425 = pneg %p424
        $region79: #{_lambda_.7} parent=72 // pred_check_branch
          %427 = sbr.rel (%p425) target = $region81
        $region80: #{_lambda_.7} parent=72 // pred_region
          %428 = vst [vmem:[#allocation2] sm:$0xff] 0.0
          %429 = vst [vmem:[#allocation2 + $0x8] sm:$0xff] 0.0
          %430 = vst [vmem:[#allocation2 + $0x10] sm:$0xff] 0.0
          %431 = vst [vmem:[#allocation2 + $0x18] sm:$0xff] 0.0
          %432 = vst [vmem:[#allocation2 + $0x20] sm:$0xff] 0.0
          %433 = vst [vmem:[#allocation2 + $0x28] sm:$0xff] 0.0
          %434 = vst [vmem:[#allocation2 + $0x30] sm:$0xff] 0.0
          %435 = vst [vmem:[#allocation2 + $0x38] sm:$0xff] 0.0
          %436 = vst [vmem:[#allocation2 + $0x40] sm:$0xff] 0.0
          %437 = vst [vmem:[#allocation2 + $0x48] sm:$0xff] 0.0
          %438 = vst [vmem:[#allocation2 + $0x50] sm:$0xff] 0.0
          %439 = vst [vmem:[#allocation2 + $0x58] sm:$0xff] 0.0
          %440 = vst [vmem:[#allocation2 + $0x60] sm:$0xff] 0.0
          %441 = vst [vmem:[#allocation2 + $0x68] sm:$0xff] 0.0
          %442 = vst [vmem:[#allocation2 + $0x70] sm:$0xff] 0.0
          %443 = vst [vmem:[#allocation2 + $0x78] sm:$0xff] 0.0
        $region81: #{_lambda_.7} parent=72 // pred_fallthru
          _
        %v444 = vld [vmem:[#allocation2] sm:$0xff]
        %v445 = vld [vmem:[#allocation2 + $0x8] sm:$0xff]
        %v446 = vld [vmem:[#allocation2 + $0x10] sm:$0xff]
        %v447 = vld [vmem:[#allocation2 + $0x18] sm:$0xff]
        %v448 = vld [vmem:[#allocation2 + $0x20] sm:$0xff]
        %v449 = vld [vmem:[#allocation2 + $0x28] sm:$0xff]
        %v450 = vld [vmem:[#allocation2 + $0x30] sm:$0xff]
        %v451 = vld [vmem:[#allocation2 + $0x38] sm:$0xff]
        %v452 = vld [vmem:[#allocation2 + $0x40] sm:$0xff]
        %v453 = vld [vmem:[#allocation2 + $0x48] sm:$0xff]
        %v454 = vld [vmem:[#allocation2 + $0x50] sm:$0xff]
        %v455 = vld [vmem:[#allocation2 + $0x58] sm:$0xff]
        %v456 = vld [vmem:[#allocation2 + $0x60] sm:$0xff]
        %v457 = vld [vmem:[#allocation2 + $0x68] sm:$0xff]
        %v458 = vld [vmem:[#allocation2 + $0x70] sm:$0xff]
        %v459 = vld [vmem:[#allocation2 + $0x78] sm:$0xff]
        %v460 = vld [vmem:[%s354] sm:$0xf]
        %v461 = vld [vmem:[%s354 + $0x4] sm:$0xf]
        %v462 = vld [vmem:[%s354 + $0x8] sm:$0xf]
        %v463 = vld [vmem:[%s354 + $0xc] sm:$0xf]
        %v464 = vld [vmem:[%s354 + $0x10] sm:$0xf]
        %v465 = vld [vmem:[%s354 + $0x14] sm:$0xf]
        %v466 = vld [vmem:[%s354 + $0x18] sm:$0xf]
        %v467 = vld [vmem:[%s354 + $0x1c] sm:$0xf]
        %v468 = vld [vmem:[%s354 + $0x20] sm:$0xf]
        %v469 = vld [vmem:[%s354 + $0x24] sm:$0xf]
        %v470 = vld [vmem:[%s354 + $0x28] sm:$0xf]
        %v471 = vld [vmem:[%s354 + $0x2c] sm:$0xf]
        %v472 = vld [vmem:[%s354 + $0x30] sm:$0xf]
        %v473 = vld [vmem:[%s354 + $0x34] sm:$0xf]
        %v474 = vld [vmem:[%s354 + $0x38] sm:$0xf]
        %v475 = vld [vmem:[%s354 + $0x3c] sm:$0xf]
        %v476 = vld [vmem:[%s402] sm:$0xf]
        %v477 = vld [vmem:[%s402 + $0x4] sm:$0xf]
        %v478 = vld [vmem:[%s402 + $0x8] sm:$0xf]
        %v479 = vld [vmem:[%s402 + $0xc] sm:$0xf]
        %v480 = vld [vmem:[%s402 + $0x10] sm:$0xf]
        %v481 = vld [vmem:[%s402 + $0x14] sm:$0xf]
        %v482 = vld [vmem:[%s402 + $0x18] sm:$0xf]
        %v483 = vld [vmem:[%s402 + $0x1c] sm:$0xf]
        %v484 = vld [vmem:[%s402 + $0x20] sm:$0xf]
        %v485 = vld [vmem:[%s402 + $0x24] sm:$0xf]
        %v486 = vld [vmem:[%s402 + $0x28] sm:$0xf]
        %v487 = vld [vmem:[%s402 + $0x2c] sm:$0xf]
        %v488 = vld [vmem:[%s402 + $0x30] sm:$0xf]
        %v489 = vld [vmem:[%s402 + $0x34] sm:$0xf]
        %v490 = vld [vmem:[%s402 + $0x38] sm:$0xf]
        %v491 = vld [vmem:[%s402 + $0x3c] sm:$0xf]
        %v508 = vunpack.c.l.b16 %v460
        %v509 = vunpack.c.l.b16 %v461
        %v510 = vunpack.c.l.b16 %v462
        %v511 = vunpack.c.l.b16 %v463
        %v512 = vunpack.c.l.b16 %v464
        %v513 = vunpack.c.l.b16 %v465
        %v514 = vunpack.c.l.b16 %v466
        %v515 = vunpack.c.l.b16 %v467
        %v516 = vunpack.c.l.b16 %v468
        %v517 = vunpack.c.l.b16 %v469
        %v518 = vunpack.c.l.b16 %v470
        %v519 = vunpack.c.l.b16 %v471
        %v520 = vunpack.c.l.b16 %v472
        %v521 = vunpack.c.l.b16 %v473
        %v522 = vunpack.c.l.b16 %v474
        %v523 = vunpack.c.l.b16 %v475
        %v524 = vpack.c.b16 %v509, %v508
        %v525 = vpack.c.b16 %v511, %v510
        %v526 = vpack.c.b16 %v513, %v512
        %v527 = vpack.c.b16 %v515, %v514
        %v528 = vpack.c.b16 %v517, %v516
        %v529 = vpack.c.b16 %v519, %v518
        %v530 = vpack.c.b16 %v521, %v520
        %v531 = vpack.c.b16 %v523, %v522
        %v556 = vunpack.c.l.b16 %v476
        %v557 = vunpack.c.l.b16 %v477
        %v558 = vunpack.c.l.b16 %v478
        %v559 = vunpack.c.l.b16 %v479
        %v560 = vunpack.c.l.b16 %v480
        %v561 = vunpack.c.l.b16 %v481
        %v562 = vunpack.c.l.b16 %v482
        %v563 = vunpack.c.l.b16 %v483
        %v564 = vunpack.c.l.b16 %v484
        %v565 = vunpack.c.l.b16 %v485
        %v566 = vunpack.c.l.b16 %v486
        %v567 = vunpack.c.l.b16 %v487
        %v568 = vunpack.c.l.b16 %v488
        %v569 = vunpack.c.l.b16 %v489
        %v570 = vunpack.c.l.b16 %v490
        %v571 = vunpack.c.l.b16 %v491
        %v572 = vpack.c.b16 %v557, %v556
        %v573 = vpack.c.b16 %v559, %v558
        %v574 = vpack.c.b16 %v561, %v560
        %v575 = vpack.c.b16 %v563, %v562
        %v576 = vpack.c.b16 %v565, %v564
        %v577 = vpack.c.b16 %v567, %v566
        %v578 = vpack.c.b16 %v569, %v568
        %v579 = vpack.c.b16 %v571, %v570
        %588 = vmatprep.subr.bf16.mxu0 0
        %589 = vmatpush1.bf16.msra.mxu0 %v572
        %590 = vmatprep.subr.bf16.mxu0 0
        %591 = vmatpush1.bf16.msra.mxu0 %v573
        %592 = vmatprep.subr.bf16.mxu0 0
        %593 = vmatpush1.bf16.msra.mxu0 %v574
        %594 = vmatprep.subr.bf16.mxu0 0
        %595 = vmatpush1.bf16.msra.mxu0 %v575
        %596 = vmatprep.subr.bf16.mxu0 0
        %597 = vmatpush1.bf16.msra.mxu0 %v576
        %598 = vmatprep.subr.bf16.mxu0 0
        %599 = vmatpush1.bf16.msra.mxu0 %v577
        %600 = vmatprep.subr.bf16.mxu0 0
        %601 = vmatpush1.bf16.msra.mxu0 %v578
        %602 = vmatprep.subr.bf16.mxu0 0
        %603 = vmatpush1.bf16.msra.mxu0 %v579
        %604 = vmatprep.subr.bf16.mxu0 0
        %605 = vmatpush1.bf16.msra.mxu0 0
        %606 = vmatprep.subr.bf16.mxu0 0
        %607 = vmatpush1.bf16.msra.mxu0 0
        %608 = vmatprep.subr.bf16.mxu0 0
        %609 = vmatpush1.bf16.msra.mxu0 0
        %610 = vmatprep.subr.bf16.mxu0 0
        %611 = vmatpush1.bf16.msra.mxu0 0
        %612 = vmatprep.subr.bf16.mxu0 0
        %613 = vmatpush1.bf16.msra.mxu0 0
        %614 = vmatprep.subr.bf16.mxu0 0
        %615 = vmatpush1.bf16.msra.mxu0 0
        %616 = vmatprep.subr.bf16.mxu0 0
        %617 = vmatpush1.bf16.msra.mxu0 0
        %618 = vmatprep.subr.bf16.mxu0 0
        %619 = vmatpush1.bf16.msra.mxu0 0
        %620 = vmatprep.mubr.bf16.mxu0 0
        %621 = vmatmul.mubr.bf16.gmra.mrb[0].mxu0 %v524
        %v622 = vpop.f32.mrb[0].mxu0
        %v623 = vadd.f32 0.0, %v622
        %v624 = vpop.f32.mrb[0].mxu0
        %v625 = vpop.f32.mrb[0].mxu0
        %v626 = vadd.f32 0.0, %v625
        %v627 = vpop.f32.mrb[0].mxu0
        %628 = vmatprep.mubr.bf16.mxu0 0
        %629 = vmatmul.mubr.bf16.gmra.mrb[0].mxu0 %v525
        %v630 = vpop.f32.mrb[0].mxu0
        %v631 = vadd.f32 0.0, %v630
        %v632 = vpop.f32.mrb[0].mxu0
        %v633 = vpop.f32.mrb[0].mxu0
        %v634 = vadd.f32 0.0, %v633
        %v635 = vpop.f32.mrb[0].mxu0
        %636 = vmatprep.mubr.bf16.mxu0 0
        %637 = vmatmul.mubr.bf16.gmra.mrb[0].mxu0 %v526
        %v638 = vpop.f32.mrb[0].mxu0
        %v639 = vadd.f32 0.0, %v638
        %v640 = vpop.f32.mrb[0].mxu0
        %v641 = vpop.f32.mrb[0].mxu0
        %v642 = vadd.f32 0.0, %v641
        %v643 = vpop.f32.mrb[0].mxu0
        %644 = vmatprep.mubr.bf16.mxu0 0
        %645 = vmatmul.mubr.bf16.gmra.mrb[0].mxu0 %v527
        %v646 = vpop.f32.mrb[0].mxu0
        %v647 = vadd.f32 0.0, %v646
        %v648 = vpop.f32.mrb[0].mxu0
        %v649 = vpop.f32.mrb[0].mxu0
        %v650 = vadd.f32 0.0, %v649
        %v651 = vpop.f32.mrb[0].mxu0
        %652 = vmatprep.mubr.bf16.mxu0 0
        %653 = vmatmul.mubr.bf16.gmra.mrb[0].mxu0 %v528
        %v654 = vpop.f32.mrb[0].mxu0
        %v655 = vadd.f32 0.0, %v654
        %v656 = vpop.f32.mrb[0].mxu0
        %v657 = vpop.f32.mrb[0].mxu0
        %v658 = vadd.f32 0.0, %v657
        %v659 = vpop.f32.mrb[0].mxu0
        %660 = vmatprep.mubr.bf16.mxu0 0
        %661 = vmatmul.mubr.bf16.gmra.mrb[0].mxu0 %v529
        %v662 = vpop.f32.mrb[0].mxu0
        %v663 = vadd.f32 0.0, %v662
        %v664 = vpop.f32.mrb[0].mxu0
        %v665 = vpop.f32.mrb[0].mxu0
        %v666 = vadd.f32 0.0, %v665
        %v667 = vpop.f32.mrb[0].mxu0
        %668 = vmatprep.mubr.bf16.mxu0 0
        %669 = vmatmul.mubr.bf16.gmra.mrb[0].mxu0 %v530
        %v670 = vpop.f32.mrb[0].mxu0
        %v671 = vadd.f32 0.0, %v670
        %v672 = vpop.f32.mrb[0].mxu0
        %v673 = vpop.f32.mrb[0].mxu0
        %v674 = vadd.f32 0.0, %v673
        %v675 = vpop.f32.mrb[0].mxu0
        %676 = vmatprep.mubr.bf16.mxu0 0
        %677 = vmatmul.mubr.bf16.gmra.mrb[0].mxu0 %v531
        %v678 = vpop.f32.mrb[0].mxu0
        %v679 = vadd.f32 0.0, %v678
        %v680 = vpop.f32.mrb[0].mxu0
        %v681 = vpop.f32.mrb[0].mxu0
        %v682 = vadd.f32 0.0, %v681
        %v683 = vpop.f32.mrb[0].mxu0
        %684 = vdwg.mxu0
        %v685 = vadd.f32 %v444, %v623
        %v686 = vadd.f32 %v445, %v626
        %v687 = vadd.f32 %v446, %v631
        %v688 = vadd.f32 %v447, %v634
        %v689 = vadd.f32 %v448, %v639
        %v690 = vadd.f32 %v449, %v642
        %v691 = vadd.f32 %v450, %v647
        %v692 = vadd.f32 %v451, %v650
        %v693 = vadd.f32 %v452, %v655
        %v694 = vadd.f32 %v453, %v658
        %v695 = vadd.f32 %v454, %v663
        %v696 = vadd.f32 %v455, %v666
        %v697 = vadd.f32 %v456, %v671
        %v698 = vadd.f32 %v457, %v674
        %v699 = vadd.f32 %v458, %v679
        %v700 = vadd.f32 %v459, %v682
        %701 = vst [vmem:[#allocation2] sm:$0xff] %v685
        %702 = vst [vmem:[#allocation2 + $0x8] sm:$0xff] %v686
        %703 = vst [vmem:[#allocation2 + $0x10] sm:$0xff] %v687
        %704 = vst [vmem:[#allocation2 + $0x18] sm:$0xff] %v688
        %705 = vst [vmem:[#allocation2 + $0x20] sm:$0xff] %v689
        %706 = vst [vmem:[#allocation2 + $0x28] sm:$0xff] %v690
        %707 = vst [vmem:[#allocation2 + $0x30] sm:$0xff] %v691
        %708 = vst [vmem:[#allocation2 + $0x38] sm:$0xff] %v692
        %709 = vst [vmem:[#allocation2 + $0x40] sm:$0xff] %v693
        %710 = vst [vmem:[#allocation2 + $0x48] sm:$0xff] %v694
        %711 = vst [vmem:[#allocation2 + $0x50] sm:$0xff] %v695
        %712 = vst [vmem:[#allocation2 + $0x58] sm:$0xff] %v696
        %713 = vst [vmem:[#allocation2 + $0x60] sm:$0xff] %v697
        %714 = vst [vmem:[#allocation2 + $0x68] sm:$0xff] %v698
        %715 = vst [vmem:[#allocation2 + $0x70] sm:$0xff] %v699
        %716 = vst [vmem:[#allocation2 + $0x78] sm:$0xff] %v700
        %p717 = scmp.eq.s32.totalorder %s23, 1
        // Predicated region
        $region82: #{_lambda_.7} parent=72 // pred_check
          %p718 = pneg %p717
        $region83: #{_lambda_.7} parent=72 // pred_check_branch
          %720 = sbr.rel (%p718) target = $region85
        $region84: #{_lambda_.7} parent=72 // pred_region
          %v721 = vld [vmem:[#allocation2] sm:$0xff]
          %v722 = vld [vmem:[#allocation2 + $0x8] sm:$0xff]
          %v723 = vld [vmem:[#allocation2 + $0x10] sm:$0xff]
          %v724 = vld [vmem:[#allocation2 + $0x18] sm:$0xff]
          %v725 = vld [vmem:[#allocation2 + $0x20] sm:$0xff]
          %v726 = vld [vmem:[#allocation2 + $0x28] sm:$0xff]
          %v727 = vld [vmem:[#allocation2 + $0x30] sm:$0xff]
          %v728 = vld [vmem:[#allocation2 + $0x38] sm:$0xff]
          %v729 = vld [vmem:[#allocation2 + $0x40] sm:$0xff]
          %v730 = vld [vmem:[#allocation2 + $0x48] sm:$0xff]
          %v731 = vld [vmem:[#allocation2 + $0x50] sm:$0xff]
          %v732 = vld [vmem:[#allocation2 + $0x58] sm:$0xff]
          %v733 = vld [vmem:[#allocation2 + $0x60] sm:$0xff]
          %v734 = vld [vmem:[#allocation2 + $0x68] sm:$0xff]
          %v735 = vld [vmem:[#allocation2 + $0x70] sm:$0xff]
          %v736 = vld [vmem:[#allocation2 + $0x78] sm:$0xff]
          %v737 = vpack.c.bf16 %v722, %v721
          %v738 = vpack.c.bf16 %v724, %v723
          %v739 = vpack.c.bf16 %v726, %v725
          %v740 = vpack.c.bf16 %v728, %v727
          %v741 = vpack.c.bf16 %v730, %v729
          %v742 = vpack.c.bf16 %v732, %v731
          %v743 = vpack.c.bf16 %v734, %v733
          %v744 = vpack.c.bf16 %v736, %v735
          %v745 = vld [vmem:[%s2] sm:$0xff]
          %v746 = vld [vmem:[%s2 + $0x8] sm:$0xff]
          %v747 = vld [vmem:[%s2 + $0x10] sm:$0xff]
          %v748 = vld [vmem:[%s2 + $0x18] sm:$0xff]
          %v749 = vld [vmem:[%s2 + $0x20] sm:$0xff]
          %v750 = vld [vmem:[%s2 + $0x28] sm:$0xff]
          %v751 = vld [vmem:[%s2 + $0x30] sm:$0xff]
          %v752 = vld [vmem:[%s2 + $0x38] sm:$0xff]
          %v753 = vld [vmem:[%s2 + $0x40] sm:$0xff]
          %v754 = vld [vmem:[%s2 + $0x48] sm:$0xff]
          %v755 = vld [vmem:[%s2 + $0x50] sm:$0xff]
          %v756 = vld [vmem:[%s2 + $0x58] sm:$0xff]
          %v757 = vld [vmem:[%s2 + $0x60] sm:$0xff]
          %v758 = vld [vmem:[%s2 + $0x68] sm:$0xff]
          %v759 = vld [vmem:[%s2 + $0x70] sm:$0xff]
          %v760 = vld [vmem:[%s2 + $0x78] sm:$0xff]
          %v761 = vld [vmem:[%s3] sm:$0x3]
          %v763 = vlaneseq
          %v764 = vshrl.u32 %v763, 7
          %v765 = vsub.s32 0, %v764
          %v766 = vrot.slane %v761, %v765
          %v767 = vlaneseq
          %v768 = vshrl.u32 %v767, 7
          %v769 = vsub.s32 1, %v768
          %v770 = vrot.slane %v761, %v769
          %v789 = vunpack.c.l.b16 %v745
          %v790 = vunpack.c.h.b16 %v745
          %v791 = vunpack.c.l.b16 %v746
          %v792 = vunpack.c.h.b16 %v746
          %v793 = vunpack.c.l.b16 %v747
          %v794 = vunpack.c.h.b16 %v747
          %v795 = vunpack.c.l.b16 %v748
          %v796 = vunpack.c.h.b16 %v748
          %v797 = vunpack.c.l.b16 %v749
          %v798 = vunpack.c.h.b16 %v749
          %v799 = vunpack.c.l.b16 %v750
          %v800 = vunpack.c.h.b16 %v750
          %v801 = vunpack.c.l.b16 %v751
          %v802 = vunpack.c.h.b16 %v751
          %v803 = vunpack.c.l.b16 %v752
          %v804 = vunpack.c.h.b16 %v752
          %v805 = vunpack.c.l.b16 %v753
          %v806 = vunpack.c.h.b16 %v753
          %v807 = vunpack.c.l.b16 %v754
          %v808 = vunpack.c.h.b16 %v754
          %v809 = vunpack.c.l.b16 %v755
          %v810 = vunpack.c.h.b16 %v755
          %v811 = vunpack.c.l.b16 %v756
          %v812 = vunpack.c.h.b16 %v756
          %v813 = vunpack.c.l.b16 %v757
          %v814 = vunpack.c.h.b16 %v757
          %v815 = vunpack.c.l.b16 %v758
          %v816 = vunpack.c.h.b16 %v758
          %v817 = vunpack.c.l.b16 %v759
          %v818 = vunpack.c.h.b16 %v759
          %v819 = vunpack.c.l.b16 %v760
          %v820 = vunpack.c.h.b16 %v760
          %v821 = vpack.c.b16 %v791, %v789
          %v822 = vpack.c.b16 %v792, %v790
          %v823 = vpack.c.b16 %v795, %v793
          %v824 = vpack.c.b16 %v796, %v794
          %v825 = vpack.c.b16 %v799, %v797
          %v826 = vpack.c.b16 %v800, %v798
          %v827 = vpack.c.b16 %v803, %v801
          %v828 = vpack.c.b16 %v804, %v802
          %v829 = vpack.c.b16 %v807, %v805
          %v830 = vpack.c.b16 %v808, %v806
          %v831 = vpack.c.b16 %v811, %v809
          %v832 = vpack.c.b16 %v812, %v810
          %v833 = vpack.c.b16 %v815, %v813
          %v834 = vpack.c.b16 %v816, %v814
          %v835 = vpack.c.b16 %v819, %v817
          %v836 = vpack.c.b16 %v820, %v818
          %853 = vmatprep.subr.bf16.mxu0 %v822
          %854 = vmatpush1.bf16.msra.mxu0 %v821
          %855 = vmatprep.subr.bf16.mxu0 %v824
          %856 = vmatpush1.bf16.msra.mxu0 %v823
          %857 = vmatprep.subr.bf16.mxu0 %v826
          %858 = vmatpush1.bf16.msra.mxu0 %v825
          %859 = vmatprep.subr.bf16.mxu0 %v828
          %860 = vmatpush1.bf16.msra.mxu0 %v827
          %861 = vmatprep.subr.bf16.mxu0 %v830
          %862 = vmatpush1.bf16.msra.mxu0 %v829
          %863 = vmatprep.subr.bf16.mxu0 %v832
          %864 = vmatpush1.bf16.msra.mxu0 %v831
          %865 = vmatprep.subr.bf16.mxu0 %v834
          %866 = vmatpush1.bf16.msra.mxu0 %v833
          %867 = vmatprep.subr.bf16.mxu0 %v836
          %868 = vmatpush1.bf16.msra.mxu0 %v835
          %869 = vmatprep.subr.bf16.mxu0 0
          %870 = vmatpush1.bf16.msra.mxu0 0
          %871 = vmatprep.subr.bf16.mxu0 0
          %872 = vmatpush1.bf16.msra.mxu0 0
          %873 = vmatprep.subr.bf16.mxu0 0
          %874 = vmatpush1.bf16.msra.mxu0 0
          %875 = vmatprep.subr.bf16.mxu0 0
          %876 = vmatpush1.bf16.msra.mxu0 0
          %877 = vmatprep.subr.bf16.mxu0 0
          %878 = vmatpush1.bf16.msra.mxu0 0
          %879 = vmatprep.subr.bf16.mxu0 0
          %880 = vmatpush1.bf16.msra.mxu0 0
          %881 = vmatprep.subr.bf16.mxu0 0
          %882 = vmatpush1.bf16.msra.mxu0 0
          %883 = vmatprep.subr.bf16.mxu0 0
          %884 = vmatpush1.bf16.msra.mxu0 0
          %885 = vmatprep.mubr.bf16.mxu0 0
          %886 = vmatmul.mubr.bf16.gmra.mrb[0].mxu0 %v737
          %v887 = vpop.f32.mrb[0].mxu0
          %v888 = vadd.f32 %v766, %v887
          %v889 = vpop.f32.mrb[0].mxu0
          %v890 = vadd.f32 %v770, %v889
          %v891 = vpop.f32.mrb[0].mxu0
          %v892 = vadd.f32 %v766, %v891
          %v893 = vpop.f32.mrb[0].mxu0
          %v894 = vadd.f32 %v770, %v893
          %895 = vmatprep.mubr.bf16.mxu0 0
          %896 = vmatmul.mubr.bf16.gmra.mrb[0].mxu0 %v738
          %v897 = vpop.f32.mrb[0].mxu0
          %v898 = vadd.f32 %v766, %v897
          %v899 = vpop.f32.mrb[0].mxu0
          %v900 = vadd.f32 %v770, %v899
          %v901 = vpop.f32.mrb[0].mxu0
          %v902 = vadd.f32 %v766, %v901
          %v903 = vpop.f32.mrb[0].mxu0
          %v904 = vadd.f32 %v770, %v903
          %905 = vmatprep.mubr.bf16.mxu0 0
          %906 = vmatmul.mubr.bf16.gmra.mrb[0].mxu0 %v739
          %v907 = vpop.f32.mrb[0].mxu0
          %v908 = vadd.f32 %v766, %v907
          %v909 = vpop.f32.mrb[0].mxu0
          %v910 = vadd.f32 %v770, %v909
          %v911 = vpop.f32.mrb[0].mxu0
          %v912 = vadd.f32 %v766, %v911
          %v913 = vpop.f32.mrb[0].mxu0
          %v914 = vadd.f32 %v770, %v913
          %915 = vmatprep.mubr.bf16.mxu0 0
          %916 = vmatmul.mubr.bf16.gmra.mrb[0].mxu0 %v740
          %v917 = vpop.f32.mrb[0].mxu0
          %v918 = vadd.f32 %v766, %v917
          %v919 = vpop.f32.mrb[0].mxu0
          %v920 = vadd.f32 %v770, %v919
          %v921 = vpop.f32.mrb[0].mxu0
          %v922 = vadd.f32 %v766, %v921
          %v923 = vpop.f32.mrb[0].mxu0
          %v924 = vadd.f32 %v770, %v923
          %925 = vmatprep.mubr.bf16.mxu0 0
          %926 = vmatmul.mubr.bf16.gmra.mrb[0].mxu0 %v741
          %v927 = vpop.f32.mrb[0].mxu0
          %v928 = vadd.f32 %v766, %v927
          %v929 = vpop.f32.mrb[0].mxu0
          %v930 = vadd.f32 %v770, %v929
          %v931 = vpop.f32.mrb[0].mxu0
          %v932 = vadd.f32 %v766, %v931
          %v933 = vpop.f32.mrb[0].mxu0
          %v934 = vadd.f32 %v770, %v933
          %935 = vmatprep.mubr.bf16.mxu0 0
          %936 = vmatmul.mubr.bf16.gmra.mrb[0].mxu0 %v742
          %v937 = vpop.f32.mrb[0].mxu0
          %v938 = vadd.f32 %v766, %v937
          %v939 = vpop.f32.mrb[0].mxu0
          %v940 = vadd.f32 %v770, %v939
          %v941 = vpop.f32.mrb[0].mxu0
          %v942 = vadd.f32 %v766, %v941
          %v943 = vpop.f32.mrb[0].mxu0
          %v944 = vadd.f32 %v770, %v943
          %945 = vmatprep.mubr.bf16.mxu0 0
          %946 = vmatmul.mubr.bf16.gmra.mrb[0].mxu0 %v743
          %v947 = vpop.f32.mrb[0].mxu0
          %v948 = vadd.f32 %v766, %v947
          %v949 = vpop.f32.mrb[0].mxu0
          %v950 = vadd.f32 %v770, %v949
          %v951 = vpop.f32.mrb[0].mxu0
          %v952 = vadd.f32 %v766, %v951
          %v953 = vpop.f32.mrb[0].mxu0
          %v954 = vadd.f32 %v770, %v953
          %955 = vmatprep.mubr.bf16.mxu0 0
          %956 = vmatmul.mubr.bf16.gmra.mrb[0].mxu0 %v744
          %v957 = vpop.f32.mrb[0].mxu0
          %v958 = vadd.f32 %v766, %v957
          %v959 = vpop.f32.mrb[0].mxu0
          %v960 = vadd.f32 %v770, %v959
          %v961 = vpop.f32.mrb[0].mxu0
          %v962 = vadd.f32 %v766, %v961
          %v963 = vpop.f32.mrb[0].mxu0
          %v964 = vadd.f32 %v770, %v963
          %965 = vdwg.mxu0
          %v966 = vmax.f32 %v888, 0.0
          %v967 = vmax.f32 %v890, 0.0
          %v968 = vmax.f32 %v892, 0.0
          %v969 = vmax.f32 %v894, 0.0
          %v970 = vmax.f32 %v898, 0.0
          %v971 = vmax.f32 %v900, 0.0
          %v972 = vmax.f32 %v902, 0.0
          %v973 = vmax.f32 %v904, 0.0
          %v974 = vmax.f32 %v908, 0.0
          %v975 = vmax.f32 %v910, 0.0
          %v976 = vmax.f32 %v912, 0.0
          %v977 = vmax.f32 %v914, 0.0
          %v978 = vmax.f32 %v918, 0.0
          %v979 = vmax.f32 %v920, 0.0
          %v980 = vmax.f32 %v922, 0.0
          %v981 = vmax.f32 %v924, 0.0
          %v982 = vmax.f32 %v928, 0.0
          %v983 = vmax.f32 %v930, 0.0
          %v984 = vmax.f32 %v932, 0.0
          %v985 = vmax.f32 %v934, 0.0
          %v986 = vmax.f32 %v938, 0.0
          %v987 = vmax.f32 %v940, 0.0
          %v988 = vmax.f32 %v942, 0.0
          %v989 = vmax.f32 %v944, 0.0
          %v990 = vmax.f32 %v948, 0.0
          %v991 = vmax.f32 %v950, 0.0
          %v992 = vmax.f32 %v952, 0.0
          %v993 = vmax.f32 %v954, 0.0
          %v994 = vmax.f32 %v958, 0.0
          %v995 = vmax.f32 %v960, 0.0
          %v996 = vmax.f32 %v962, 0.0
          %v997 = vmax.f32 %v964, 0.0
          %998 = vst [vmem:[%s408] sm:$0xff] %v966
          %999 = vst [vmem:[%s408 + $0x8] sm:$0xff] %v968
          %1000 = vst [vmem:[%s408 + $0x10] sm:$0xff] %v970
          %1001 = vst [vmem:[%s408 + $0x18] sm:$0xff] %v972
          %1002 = vst [vmem:[%s408 + $0x20] sm:$0xff] %v974
          %1003 = vst [vmem:[%s408 + $0x28] sm:$0xff] %v976
          %1004 = vst [vmem:[%s408 + $0x30] sm:$0xff] %v978
          %1005 = vst [vmem:[%s408 + $0x38] sm:$0xff] %v980
          %1006 = vst [vmem:[%s408 + $0x40] sm:$0xff] %v982
          %1007 = vst [vmem:[%s408 + $0x48] sm:$0xff] %v984
          %1008 = vst [vmem:[%s408 + $0x50] sm:$0xff] %v986
          %1009 = vst [vmem:[%s408 + $0x58] sm:$0xff] %v988
          %1010 = vst [vmem:[%s408 + $0x60] sm:$0xff] %v990
          %1011 = vst [vmem:[%s408 + $0x68] sm:$0xff] %v992
          %1012 = vst [vmem:[%s408 + $0x70] sm:$0xff] %v994
          %1013 = vst [vmem:[%s408 + $0x78] sm:$0xff] %v996
          %1014 = vst [vmem:[%s414] sm:$0xff] %v967
          %1015 = vst [vmem:[%s414 + $0x8] sm:$0xff] %v969
          %1016 = vst [vmem:[%s414 + $0x10] sm:$0xff] %v971
          %1017 = vst [vmem:[%s414 + $0x18] sm:$0xff] %v973
          %1018 = vst [vmem:[%s414 + $0x20] sm:$0xff] %v975
          %1019 = vst [vmem:[%s414 + $0x28] sm:$0xff] %v977
          %1020 = vst [vmem:[%s414 + $0x30] sm:$0xff] %v979
          %1021 = vst [vmem:[%s414 + $0x38] sm:$0xff] %v981
          %1022 = vst [vmem:[%s414 + $0x40] sm:$0xff] %v983
          %1023 = vst [vmem:[%s414 + $0x48] sm:$0xff] %v985
          %1024 = vst [vmem:[%s414 + $0x50] sm:$0xff] %v987
          %1025 = vst [vmem:[%s414 + $0x58] sm:$0xff] %v989
          %1026 = vst [vmem:[%s414 + $0x60] sm:$0xff] %v991
          %1027 = vst [vmem:[%s414 + $0x68] sm:$0xff] %v993
          %1028 = vst [vmem:[%s414 + $0x70] sm:$0xff] %v995
          %1029 = vst [vmem:[%s414 + $0x78] sm:$0xff] %v997
          %v1030 = vpack.c.bf16 %v969, %v967
          %v1031 = vpack.c.bf16 %v973, %v971
          %v1032 = vpack.c.bf16 %v977, %v975
          %v1033 = vpack.c.bf16 %v981, %v979
          %v1034 = vpack.c.bf16 %v985, %v983
          %v1035 = vpack.c.bf16 %v989, %v987
          %v1036 = vpack.c.bf16 %v993, %v991
          %v1037 = vpack.c.bf16 %v997, %v995
          %v1046 = vunpack.c.l.b16 %v1030
          %v1047 = vunpack.c.h.b16 %v1030
          %v1048 = vunpack.c.l.b16 %v1031
          %v1049 = vunpack.c.h.b16 %v1031
          %v1050 = vunpack.c.l.b16 %v1032
          %v1051 = vunpack.c.h.b16 %v1032
          %v1052 = vunpack.c.l.b16 %v1033
          %v1053 = vunpack.c.h.b16 %v1033
          %v1054 = vunpack.c.l.b16 %v1034
          %v1055 = vunpack.c.h.b16 %v1034
          %v1056 = vunpack.c.l.b16 %v1035
          %v1057 = vunpack.c.h.b16 %v1035
          %v1058 = vunpack.c.l.b16 %v1036
          %v1059 = vunpack.c.h.b16 %v1036
          %v1060 = vunpack.c.l.b16 %v1037
          %v1061 = vunpack.c.h.b16 %v1037
          %v1062 = vpack.c.b16 %v1046, %v1046
          %v1063 = vpack.c.b16 %v1047, %v1047
          %v1064 = vpack.c.b16 %v1048, %v1048
          %v1065 = vpack.c.b16 %v1049, %v1049
          %v1066 = vpack.c.b16 %v1050, %v1050
          %v1067 = vpack.c.b16 %v1051, %v1051
          %v1068 = vpack.c.b16 %v1052, %v1052
          %v1069 = vpack.c.b16 %v1053, %v1053
          %v1070 = vpack.c.b16 %v1054, %v1054
          %v1071 = vpack.c.b16 %v1055, %v1055
          %v1072 = vpack.c.b16 %v1056, %v1056
          %v1073 = vpack.c.b16 %v1057, %v1057
          %v1074 = vpack.c.b16 %v1058, %v1058
          %v1075 = vpack.c.b16 %v1059, %v1059
          %v1076 = vpack.c.b16 %v1060, %v1060
          %v1077 = vpack.c.b16 %v1061, %v1061
          %1094 = vst [vmem:[%s421] sm:$0xf] %v1062
          %1095 = vst [vmem:[%s421 + $0x8] sm:$0xf] %v1063
          %1096 = vst [vmem:[%s421 + $0x10] sm:$0xf] %v1064
          %1097 = vst [vmem:[%s421 + $0x18] sm:$0xf] %v1065
          %1098 = vst [vmem:[%s421 + $0x20] sm:$0xf] %v1066
          %1099 = vst [vmem:[%s421 + $0x28] sm:$0xf] %v1067
          %1100 = vst [vmem:[%s421 + $0x30] sm:$0xf] %v1068
          %1101 = vst [vmem:[%s421 + $0x38] sm:$0xf] %v1069
          %1102 = vst [vmem:[%s421 + $0x40] sm:$0xf] %v1070
          %1103 = vst [vmem:[%s421 + $0x48] sm:$0xf] %v1071
          %1104 = vst [vmem:[%s421 + $0x50] sm:$0xf] %v1072
          %1105 = vst [vmem:[%s421 + $0x58] sm:$0xf] %v1073
          %1106 = vst [vmem:[%s421 + $0x60] sm:$0xf] %v1074
          %1107 = vst [vmem:[%s421 + $0x68] sm:$0xf] %v1075
          %1108 = vst [vmem:[%s421 + $0x70] sm:$0xf] %v1076
          %1109 = vst [vmem:[%s421 + $0x78] sm:$0xf] %v1077
          %v1110 = vmul.f32 %v967, %v967
          %v1111 = vmul.f32 %v969, %v969
          %v1112 = vmul.f32 %v971, %v971
          %v1113 = vmul.f32 %v973, %v973
          %v1114 = vmul.f32 %v975, %v975
          %v1115 = vmul.f32 %v977, %v977
          %v1116 = vmul.f32 %v979, %v979
          %v1117 = vmul.f32 %v981, %v981
          %v1118 = vmul.f32 %v983, %v983
          %v1119 = vmul.f32 %v985, %v985
          %v1120 = vmul.f32 %v987, %v987
          %v1121 = vmul.f32 %v989, %v989
          %v1122 = vmul.f32 %v991, %v991
          %v1123 = vmul.f32 %v993, %v993
          %v1124 = vmul.f32 %v995, %v995
          %v1125 = vmul.f32 %v997, %v997
          %v1126 = vpack.c.bf16 %v1111, %v1110
          %v1127 = vpack.c.bf16 %v1113, %v1112
          %v1128 = vpack.c.bf16 %v1115, %v1114
          %v1129 = vpack.c.bf16 %v1117, %v1116
          %v1130 = vpack.c.bf16 %v1119, %v1118
          %v1131 = vpack.c.bf16 %v1121, %v1120
          %v1132 = vpack.c.bf16 %v1123, %v1122
          %v1133 = vpack.c.bf16 %v1125, %v1124
          %v1142 = vunpack.c.l.b16 %v1126
          %v1143 = vunpack.c.h.b16 %v1126
          %v1144 = vunpack.c.l.b16 %v1127
          %v1145 = vunpack.c.h.b16 %v1127
          %v1146 = vunpack.c.l.b16 %v1128
          %v1147 = vunpack.c.h.b16 %v1128
          %v1148 = vunpack.c.l.b16 %v1129
          %v1149 = vunpack.c.h.b16 %v1129
          %v1150 = vunpack.c.l.b16 %v1130
          %v1151 = vunpack.c.h.b16 %v1130
          %v1152 = vunpack.c.l.b16 %v1131
          %v1153 = vunpack.c.h.b16 %v1131
          %v1154 = vunpack.c.l.b16 %v1132
          %v1155 = vunpack.c.h.b16 %v1132
          %v1156 = vunpack.c.l.b16 %v1133
          %v1157 = vunpack.c.h.b16 %v1133
          %v1158 = vpack.c.b16 %v1142, %v1142
          %v1159 = vpack.c.b16 %v1143, %v1143
          %v1160 = vpack.c.b16 %v1144, %v1144
          %v1161 = vpack.c.b16 %v1145, %v1145
          %v1162 = vpack.c.b16 %v1146, %v1146
          %v1163 = vpack.c.b16 %v1147, %v1147
          %v1164 = vpack.c.b16 %v1148, %v1148
          %v1165 = vpack.c.b16 %v1149, %v1149
          %v1166 = vpack.c.b16 %v1150, %v1150
          %v1167 = vpack.c.b16 %v1151, %v1151
          %v1168 = vpack.c.b16 %v1152, %v1152
          %v1169 = vpack.c.b16 %v1153, %v1153
          %v1170 = vpack.c.b16 %v1154, %v1154
          %v1171 = vpack.c.b16 %v1155, %v1155
          %v1172 = vpack.c.b16 %v1156, %v1156
          %v1173 = vpack.c.b16 %v1157, %v1157
          %1190 = vst [vmem:[%s421 + $0x4] sm:$0xf] %v1158
          %1191 = vst [vmem:[%s421 + $0xc] sm:$0xf] %v1159
          %1192 = vst [vmem:[%s421 + $0x14] sm:$0xf] %v1160
          %1193 = vst [vmem:[%s421 + $0x1c] sm:$0xf] %v1161
          %1194 = vst [vmem:[%s421 + $0x24] sm:$0xf] %v1162
          %1195 = vst [vmem:[%s421 + $0x2c] sm:$0xf] %v1163
          %1196 = vst [vmem:[%s421 + $0x34] sm:$0xf] %v1164
          %1197 = vst [vmem:[%s421 + $0x3c] sm:$0xf] %v1165
          %1198 = vst [vmem:[%s421 + $0x44] sm:$0xf] %v1166
          %1199 = vst [vmem:[%s421 + $0x4c] sm:$0xf] %v1167
          %1200 = vst [vmem:[%s421 + $0x54] sm:$0xf] %v1168
          %1201 = vst [vmem:[%s421 + $0x5c] sm:$0xf] %v1169
          %1202 = vst [vmem:[%s421 + $0x64] sm:$0xf] %v1170
          %1203 = vst [vmem:[%s421 + $0x6c] sm:$0xf] %v1171
          %1204 = vst [vmem:[%s421 + $0x74] sm:$0xf] %v1172
          %1205 = vst [vmem:[%s421 + $0x7c] sm:$0xf] %v1173
        $region85: #{_lambda_.7} parent=72 // pred_fallthru
          _
        %s1206 = smul.u32 16, %s22
        %p1207 = scmp.lt.s32.totalorder %s1206, 31
        %s1208 = scalar_select %p1207, %s1206, 31
        %s1209 = smul.addr %s1208, 8
        %s1210 = scalar_lea.vmem %s4, %s1209
        %s1211 = smul.u32 16, %s22
        %p1212 = scmp.lt.s32.totalorder %s1211, 31
        %s1213 = scalar_select %p1212, %s1211, 31
        %s1214 = smul.addr %s1213, 8
        %s1215 = scalar_lea.vmem %s5, %s1214
        %s1216 = smul.u32 16, %s22
        %p1217 = scmp.lt.s32.totalorder %s1216, 31
        %s1218 = scalar_select %p1217, %s1216, 31
        %s1219 = smul.addr %s1218, 2
        %s1220 = smul.addr %s1219, 4
        %s1221 = scalar_lea.vmem %s6, %s1220
        // Predicated region
        $region86: #{_lambda_.7} parent=72 // pred_check
          %p1222 = pneg %p144
        $region87: #{_lambda_.7} parent=72 // pred_check_branch
          %1224 = sbr.rel (%p1222) target = $region89
        $region88: #{_lambda_.7} parent=72 // pred_region
          %s1225 = smul.u32 16, %s22
        $region89: #{_lambda_.7} parent=72 // pred_fallthru
          _
        // Predicated region
        $region90: #{_lambda_.7} parent=72 // pred_check
          %p1226 = pneg %p170
        $region91: #{_lambda_.7} parent=72 // pred_check_branch
          %1228 = sbr.rel (%p1226) target = $region93
        $region92: #{_lambda_.7} parent=72 // pred_region
          %s1229 = smul.u32 16, %s22
        $region93: #{_lambda_.7} parent=72 // pred_fallthru
          _
        // Predicated region
        $region94: #{_lambda_.7} parent=72 // pred_check
          %p1230 = pneg %p196
        $region95: #{_lambda_.7} parent=72 // pred_check_branch
          %1232 = sbr.rel (%p1230) target = $region97
        $region96: #{_lambda_.7} parent=72 // pred_region
          %s1233 = smul.u32 16, %s22
        $region97: #{_lambda_.7} parent=72 // pred_fallthru
          _
      $region73: #{_lambda_.7} parent=5 // pred_fallthru
        _
      %p1234 = scmp.le.s32.totalorder 2, %s13
      // Predicated region
      $region98: #{_lambda_.7} parent=5 // pred_check
        %p1235 = pneg %p1234
      $region99: #{_lambda_.7} parent=5 // pred_check_branch
        %1237 = sbr.rel (%p1235) target = $region101
      $region100: #{_lambda_.7} parent=5 // pred_region
        %s1238 = ssub.s32 %s13, 2
        // Predicated region
        $region102: #{_lambda_.7} parent=100 // pred_check
          %p1239 = pneg %p150
        $region103: #{_lambda_.7} parent=100 // pred_check_branch
          %1241 = sbr.rel (%p1239) target = $region105
        $region104: #{_lambda_.7} parent=100 // pred_region
          %s1242 = smul.u32 16, %s24
          %p1243 = scmp.lt.s32.totalorder %s1242, 31
          %s1244 = scalar_select %p1243, %s1242, 31
          %s1245 = smul.addr %s1244, 8
          %s1246 = scalar_lea.vmem %s4, %s1245
        $region105: #{_lambda_.7} parent=100 // pred_fallthru
          _
        // Predicated region
        $region106: #{_lambda_.7} parent=100 // pred_check
          %p1247 = pneg %p176
        $region107: #{_lambda_.7} parent=100 // pred_check_branch
          %1249 = sbr.rel (%p1247) target = $region109
        $region108: #{_lambda_.7} parent=100 // pred_region
          %s1250 = smul.u32 16, %s24
          %p1251 = scmp.lt.s32.totalorder %s1250, 31
          %s1252 = scalar_select %p1251, %s1250, 31
          %s1253 = smul.addr %s1252, 8
          %s1254 = scalar_lea.vmem %s5, %s1253
        $region109: #{_lambda_.7} parent=100 // pred_fallthru
          _
        // Predicated region
        $region110: #{_lambda_.7} parent=100 // pred_check
          %p1255 = pneg %p202
        $region111: #{_lambda_.7} parent=100 // pred_check_branch
          %1257 = sbr.rel (%p1255) target = $region113
        $region112: #{_lambda_.7} parent=100 // pred_region
          %s1258 = smul.u32 16, %s24
          %p1259 = scmp.lt.s32.totalorder %s1258, 31
          %s1260 = scalar_select %p1259, %s1258, 31
          %s1261 = smul.addr %s1260, 2
          %s1262 = smul.addr %s1261, 4
          %s1263 = scalar_lea.vmem %s6, %s1262
        $region113: #{_lambda_.7} parent=100 // pred_fallthru
          _
      $region101: #{_lambda_.7} parent=5 // pred_fallthru
        _
    $region6: #{_lambda_.7} parent=1 // loop_footer
      %s17 = sadd.s32 1, %s13
    $region7: #{_lambda_.7} parent=1 // loop_footer_branch
      %12 = sbr.rel target = $region3
    $region8: #{_lambda_.7} parent=1 // loop_exit
      _

// kernel: _lambda_.8
$region0: #{_lambda_.8}
  #allocation0 [shape = 'u32[]', space=smem, size = 0x4, offset = 0x4, fixed_abs, tag = 'smem constant byte address 0x4 - core index']
  #allocation1 [shape = 'u32[144,128]{1,0:T(1,128)}', space=vmem, size = 0x12000, scoped, tag = 'internal scratch']
  #allocation2 [shape = 'f32[128,256]{1,0:T(8,128)}', space=vmem, size = 0x20000, scoped, tag = 'scratch operand']
  %s0 = inlined_call_operand.vmem [shape: bf16[256,256], index: 0, kind: input, shape index: {}]
  %s1 = inlined_call_operand.vmem [shape: bf16[256,256], index: 1, kind: input, shape index: {}]
  %s2 = inlined_call_operand.vmem [shape: f32[256,128], index: 2, kind: input, shape index: {}]
  %s3 = inlined_call_operand.vmem [shape: f32[256,128], index: 3, kind: input, shape index: {}, may-alias: {3,6}]
  %s4 = inlined_call_operand.vmem [shape: f32[256,128], index: 4, kind: input, shape index: {}]
  %s5 = inlined_call_operand.vmem [shape: f32[256,128], index: 5, kind: input, shape index: {}]
  %s6 = inlined_call_operand.vmem [shape: f32[256,128], index: 6, kind: output, shape index: {0}, may-alias: {3,6}]
  %s7 = inlined_call_operand.vmem [shape: bf16[256,128], index: 7, kind: output, shape index: {1}]
  %8 = xla_tuple %s6, %s7
  %s9 = sld [smem:[#allocation0]]
  $region114: #{_lambda_.8} parent=0
    _
  %s11 = ssub.s32 1, %s9
  %s12 = scalar_select 0, %s11, %s9
  $region1: #{_lambda_.8} parent=0
    #allocation3 [shape = 'u8[65536]{0}', space=vmem, size = 0x10000, scoped, tag = 'input window, operand 0']
    loop: start=0, step=1, limit=6
    $region2: #{_lambda_.8} parent=1 // loop_pre_header
      _
    $region3: #{_lambda_.8} parent=1 // loop_header
      %s14 = sphi 0, %s18
      %p15 = scmp.ge.s32.totalorder %s14, 6
      %s21 = sphi 0, %s33
      %s22 = sphi 0, %s29
      %s23 = sphi 0, %s21
      %s24 = sphi 0, %s22
      %s25 = sphi 0, %s23
      %s26 = sphi 0, %s24
      %s38 = sphi 0, %s40
      %s41 = sphi 0, %s38
      %s42 = sphi 0, %s41
      %s58 = sphi 0, %s42
      %s64 = sphi 0, %s66
      %s67 = sphi 0, %s64
      %s68 = sphi 0, %s67
      %s84 = sphi 0, %s68
      %s90 = sphi 0, %s92
      %s93 = sphi 0, %s90
      %s94 = sphi 0, %s93
      %s110 = sphi 0, %s94
      %s116 = sphi 0, %s118
      %s119 = sphi 0, %s116
      %s120 = sphi 0, %s119
      %s136 = sphi 0, %s120
      %s142 = sphi 0, %s144
      %s145 = sphi 0, %s142
      %s146 = sphi 0, %s145
      %s162 = sphi 0, %s146
      %s168 = sphi 0, %s170
      %s171 = sphi 0, %s168
      %s172 = sphi 0, %s171
      %s188 = sphi 0, %s172
      %s194 = sphi 0, %s196
      %s197 = sphi 0, %s194
      %s198 = sphi 0, %s197
      %s214 = sphi 0, %s198
      %s220 = sphi 0, %s222
      %s223 = sphi 0, %s220
      %s224 = sphi 0, %s223
      %s240 = sphi 0, %s224
    $region4: #{_lambda_.8} parent=1 // loop_header_branch
      %17 = sbr.rel (%p15) target = $region8
    $region5: #{_lambda_.8} parent=1 // loop_body
      %s19 = ssub.s32 %s14, 1
      %s20 = ssub.s32 %s14, 2
      %s27 = sadd.s32 1, %s22
      %p28 = scmp.ge.s32.totalorder %s27, 2
      %s29 = scalar_select %p28, 0, %s27
      %s30 = sadd.s32 1, %s21
      %s31 = scalar_select %p28, %s30, %s21
      %p32 = scmp.ge.s32.totalorder %s31, 2
      %s33 = scalar_select %p32, 0, %s31
      %s34 = ssub.s32 %s21, %s33
      %s35 = ssub.s32 %s22, %s29
      %s36 = sor.u32 %s34, %s35
      %p37 = scmp.eq.s32.totalorder %s36, 0
      %s39 = sadd.s32 %s38, 1
      %s40 = scalar_select %p37, %s38, %s39
      %p43 = pneg %p37
      %p44 = scmp.eq.s32.totalorder %s14, 3
      %p45 = por %p43, %p44
      %p46 = scmp.ne.s32.totalorder %s38, %s41
      %p47 = scmp.eq.s32.totalorder %s14, 0
      %p48 = por %p46, %p47
      %p49 = scmp.ne.s32.totalorder %s38, %s41
      %p50 = scmp.eq.s32.totalorder %s19, 3
      %p51 = por %p49, %p50
      %p52 = scmp.ne.s32.totalorder %s41, %s42
      %p53 = scmp.eq.s32.totalorder %s19, 0
      %p54 = por %p52, %p53
      %p55 = scmp.ne.s32.totalorder %s41, %s42
      %p56 = scmp.eq.s32.totalorder %s20, 3
      %p57 = por %p55, %p56
      %p59 = scmp.ne.s32.totalorder %s42, %s58
      %p60 = scmp.eq.s32.totalorder %s20, 0
      %p61 = por %p59, %p60
      %s62 = ssub.s32 %s22, %s29
      %p63 = scmp.eq.s32.totalorder %s62, 0
      %s65 = sadd.s32 %s64, 1
      %s66 = scalar_select %p63, %s64, %s65
      %p69 = pneg %p63
      %p70 = scmp.eq.s32.totalorder %s14, 3
      %p71 = por %p69, %p70
      %p72 = scmp.ne.s32.totalorder %s64, %s67
      %p73 = scmp.eq.s32.totalorder %s14, 0
      %p74 = por %p72, %p73
      %p75 = scmp.ne.s32.totalorder %s64, %s67
      %p76 = scmp.eq.s32.totalorder %s19, 3
      %p77 = por %p75, %p76
      %p78 = scmp.ne.s32.totalorder %s67, %s68
      %p79 = scmp.eq.s32.totalorder %s19, 0
      %p80 = por %p78, %p79
      %p81 = scmp.ne.s32.totalorder %s67, %s68
      %p82 = scmp.eq.s32.totalorder %s20, 3
      %p83 = por %p81, %p82
      %p85 = scmp.ne.s32.totalorder %s68, %s84
      %p86 = scmp.eq.s32.totalorder %s20, 0
      %p87 = por %p85, %p86
      %s88 = ssub.s32 %s21, %s33
      %p89 = scmp.eq.s32.totalorder %s88, 0
      %s91 = sadd.s32 %s90, 1
      %s92 = scalar_select %p89, %s90, %s91
      %p95 = pneg %p89
      %p96 = scmp.eq.s32.totalorder %s14, 3
      %p97 = por %p95, %p96
      %p98 = scmp.ne.s32.totalorder %s90, %s93
      %p99 = scmp.eq.s32.totalorder %s14, 0
      %p100 = por %p98, %p99
      %p101 = scmp.ne.s32.totalorder %s90, %s93
      %p102 = scmp.eq.s32.totalorder %s19, 3
      %p103 = por %p101, %p102
      %p104 = scmp.ne.s32.totalorder %s93, %s94
      %p105 = scmp.eq.s32.totalorder %s19, 0
      %p106 = por %p104, %p105
      %p107 = scmp.ne.s32.totalorder %s93, %s94
      %p108 = scmp.eq.s32.totalorder %s20, 3
      %p109 = por %p107, %p108
      %p111 = scmp.ne.s32.totalorder %s94, %s110
      %p112 = scmp.eq.s32.totalorder %s20, 0
      %p113 = por %p111, %p112
      %s114 = ssub.s32 %s21, %s33
      %p115 = scmp.eq.s32.totalorder %s114, 0
      %s117 = sadd.s32 %s116, 1
      %s118 = scalar_select %p115, %s116, %s117
      %p121 = pneg %p115
      %p122 = scmp.eq.s32.totalorder %s14, 3
      %p123 = por %p121, %p122
      %p124 = scmp.ne.s32.totalorder %s116, %s119
      %p125 = scmp.eq.s32.totalorder %s14, 0
      %p126 = por %p124, %p125
      %p127 = scmp.ne.s32.totalorder %s116, %s119
      %p128 = scmp.eq.s32.totalorder %s19, 3
      %p129 = por %p127, %p128
      %p130 = scmp.ne.s32.totalorder %s119, %s120
      %p131 = scmp.eq.s32.totalorder %s19, 0
      %p132 = por %p130, %p131
      %p133 = scmp.ne.s32.totalorder %s119, %s120
      %p134 = scmp.eq.s32.totalorder %s20, 3
      %p135 = por %p133, %p134
      %p137 = scmp.ne.s32.totalorder %s120, %s136
      %p138 = scmp.eq.s32.totalorder %s20, 0
      %p139 = por %p137, %p138
      %s140 = ssub.s32 %s21, %s33
      %p141 = scmp.eq.s32.totalorder %s140, 0
      %s143 = sadd.s32 %s142, 1
      %s144 = scalar_select %p141, %s142, %s143
      %p147 = pneg %p141
      %p148 = scmp.eq.s32.totalorder %s14, 3
      %p149 = por %p147, %p148
      %p150 = scmp.ne.s32.totalorder %s142, %s145
      %p151 = scmp.eq.s32.totalorder %s14, 0
      %p152 = por %p150, %p151
      %p153 = scmp.ne.s32.totalorder %s142, %s145
      %p154 = scmp.eq.s32.totalorder %s19, 3
      %p155 = por %p153, %p154
      %p156 = scmp.ne.s32.totalorder %s145, %s146
      %p157 = scmp.eq.s32.totalorder %s19, 0
      %p158 = por %p156, %p157
      %p159 = scmp.ne.s32.totalorder %s145, %s146
      %p160 = scmp.eq.s32.totalorder %s20, 3
      %p161 = por %p159, %p160
      %p163 = scmp.ne.s32.totalorder %s146, %s162
      %p164 = scmp.eq.s32.totalorder %s20, 0
      %p165 = por %p163, %p164
      %s166 = ssub.s32 %s21, %s33
      %p167 = scmp.eq.s32.totalorder %s166, 0
      %s169 = sadd.s32 %s168, 1
      %s170 = scalar_select %p167, %s168, %s169
      %p173 = pneg %p167
      %p174 = scmp.eq.s32.totalorder %s14, 3
      %p175 = por %p173, %p174
      %p176 = scmp.ne.s32.totalorder %s168, %s171
      %p177 = scmp.eq.s32.totalorder %s14, 0
      %p178 = por %p176, %p177
      %p179 = scmp.ne.s32.totalorder %s168, %s171
      %p180 = scmp.eq.s32.totalorder %s19, 3
      %p181 = por %p179, %p180
      %p182 = scmp.ne.s32.totalorder %s171, %s172
      %p183 = scmp.eq.s32.totalorder %s19, 0
      %p184 = por %p182, %p183
      %p185 = scmp.ne.s32.totalorder %s171, %s172
      %p186 = scmp.eq.s32.totalorder %s20, 3
      %p187 = por %p185, %p186
      %p189 = scmp.ne.s32.totalorder %s172, %s188
      %p190 = scmp.eq.s32.totalorder %s20, 0
      %p191 = por %p189, %p190
      %s192 = ssub.s32 %s21, %s33
      %p193 = scmp.eq.s32.totalorder %s192, 0
      %s195 = sadd.s32 %s194, 1
      %s196 = scalar_select %p193, %s194, %s195
      %p199 = pneg %p193
      %p200 = scmp.eq.s32.totalorder %s14, 3
      %p201 = por %p199, %p200
      %p202 = scmp.ne.s32.totalorder %s194, %s197
      %p203 = scmp.eq.s32.totalorder %s14, 0
      %p204 = por %p202, %p203
      %p205 = scmp.ne.s32.totalorder %s194, %s197
      %p206 = scmp.eq.s32.totalorder %s19, 3
      %p207 = por %p205, %p206
      %p208 = scmp.ne.s32.totalorder %s197, %s198
      %p209 = scmp.eq.s32.totalorder %s19, 0
      %p210 = por %p208, %p209
      %p211 = scmp.ne.s32.totalorder %s197, %s198
      %p212 = scmp.eq.s32.totalorder %s20, 3
      %p213 = por %p211, %p212
      %p215 = scmp.ne.s32.totalorder %s198, %s214
      %p216 = scmp.eq.s32.totalorder %s20, 0
      %p217 = por %p215, %p216
      %s218 = ssub.s32 %s21, %s33
      %p219 = scmp.eq.s32.totalorder %s218, 0
      %s221 = sadd.s32 %s220, 1
      %s222 = scalar_select %p219, %s220, %s221
      %p225 = pneg %p219
      %p226 = scmp.eq.s32.totalorder %s14, 3
      %p227 = por %p225, %p226
      %p228 = scmp.ne.s32.totalorder %s220, %s223
      %p229 = scmp.eq.s32.totalorder %s14, 0
      %p230 = por %p228, %p229
      %p231 = scmp.ne.s32.totalorder %s220, %s223
      %p232 = scmp.eq.s32.totalorder %s19, 3
      %p233 = por %p231, %p232
      %p234 = scmp.ne.s32.totalorder %s223, %s224
      %p235 = scmp.eq.s32.totalorder %s19, 0
      %p236 = por %p234, %p235
      %p237 = scmp.ne.s32.totalorder %s223, %s224
      %p238 = scmp.eq.s32.totalorder %s20, 3
      %p239 = por %p237, %p238
      %p241 = scmp.ne.s32.totalorder %s224, %s240
      %p242 = scmp.eq.s32.totalorder %s20, 0
      %p243 = por %p241, %p242
      %p244 = scmp.le.s32.totalorder 1, %s14
      %p245 = scmp.lt.s32.totalorder %s14, 5
      %p246 = pnand %p244, %p245
      %p247 = pneg %p246
      // Predicated region
      $region9: #{_lambda_.8} parent=5 // pred_check
        _
      $region10: #{_lambda_.8} parent=5 // pred_check_branch
        %249 = sbr.rel (%p246) target = $region12
      $region11: #{_lambda_.8} parent=5 // pred_region
        %s250 = ssub.s32 %s14, 1
      $region12: #{_lambda_.8} parent=5 // pred_fallthru
        _
      %p251 = scmp.lt.s32.totalorder %s14, 4
      // Predicated region
      $region13: #{_lambda_.8} parent=5 // pred_check
        %p252 = pneg %p251
      $region14: #{_lambda_.8} parent=5 // pred_check_branch
        %254 = sbr.rel (%p252) target = $region16
      $region15: #{_lambda_.8} parent=5 // pred_region
        // Predicated region
        $region17: #{_lambda_.8} parent=15 // pred_check
          %p255 = pneg %p48
        $region18: #{_lambda_.8} parent=15 // pred_check_branch
          %257 = sbr.rel (%p255) target = $region20
        $region19: #{_lambda_.8} parent=15 // pred_region
          %s258 = sand.u32 %s38, 1
          %s259 = sand.u32 %s38, 1
          %s260 = smul.addr %s259, 64
          %s261 = scalar_lea.vmem [#allocation3], %s260
          %s262 = smul.u32 16, %s21
          %s263 = smul.addr %s262, 2
          %s264 = sadd.s32 %s22, %s263
          %s265 = smul.addr %s264, 4
          %s266 = scalar_lea.vmem %s0, %s265
          // Predicated region
          $region21: #{_lambda_.8} parent=19 // pred_check
            _
          $region22: #{_lambda_.8} parent=19 // pred_check_branch
            %268 = sbr.rel (0) target = $region24
          $region23: #{_lambda_.8} parent=19 // pred_region
            // Predicated region
            $region25: #{_lambda_.8} parent=23 // pred_check
              _
            $region26: #{_lambda_.8} parent=23 // pred_check_branch
              %270 = sbr.rel target = $region28
            $region27: #{_lambda_.8} parent=23 // pred_region
              // Predicated region
              $region40: #{_lambda_.8} parent=27 // pred_check
                _
              $region41: #{_lambda_.8} parent=27 // pred_check_branch
                %315 = sbr.rel (0) target = $region43
              $region42: #{_lambda_.8} parent=27 // pred_region
                loop: start=0, step=1, limit=1
                $region44: #{_lambda_.8} parent=42 // loop_pre_header
                  _
                $region45: #{_lambda_.8} parent=42 // loop_header
                  %s317 = sphi 0, %s321
                  %p318 = scmp.ge.s32.totalorder %s317, 1
                  %s322 = sphi %s266, %s266
                  %s323 = sphi %s261, %s261
                $region46: #{_lambda_.8} parent=42 // loop_header_branch
                  %320 = sbr.rel (%p318) target = $region50
                $region47: #{_lambda_.8} parent=42 // loop_body
                  _
                $region48: #{_lambda_.8} parent=42 // loop_footer
                  %s321 = sadd.s32 1, %s317
                $region49: #{_lambda_.8} parent=42 // loop_footer_branch
                  %316 = sbr.rel target = $region45
                $region50: #{_lambda_.8} parent=42 // loop_exit
                  _
                loop: start=0, step=1, limit=1
                $region51: #{_lambda_.8} parent=42 // loop_pre_header
                  _
                $region52: #{_lambda_.8} parent=42 // loop_header
                  %s326 = sphi 0, %s330
                  %p327 = scmp.ge.s32.totalorder %s326, 1
                  %s331 = sphi %s266, %s266
                  %s332 = sphi %s261, %s261
                $region53: #{_lambda_.8} parent=42 // loop_header_branch
                  %329 = sbr.rel (%p327) target = $region57
                $region54: #{_lambda_.8} parent=42 // loop_body
                  %v333 = vld [vmem:[%s331] sm:$0xf]
                  %334 = vst [vmem:[%s332] sm:$0xf] %v333
                  %v335 = vld [vmem:[%s331 + $0x8] sm:$0xf]
                  %336 = vst [vmem:[%s332 + $0x4] sm:$0xf] %v335
                  %v337 = vld [vmem:[%s331 + $0x10] sm:$0xf]
                  %338 = vst [vmem:[%s332 + $0x8] sm:$0xf] %v337
                  %v339 = vld [vmem:[%s331 + $0x18] sm:$0xf]
                  %340 = vst [vmem:[%s332 + $0xc] sm:$0xf] %v339
                  %v341 = vld [vmem:[%s331 + $0x20] sm:$0xf]
                  %342 = vst [vmem:[%s332 + $0x10] sm:$0xf] %v341
                  %v343 = vld [vmem:[%s331 + $0x28] sm:$0xf]
                  %344 = vst [vmem:[%s332 + $0x14] sm:$0xf] %v343
                  %v345 = vld [vmem:[%s331 + $0x30] sm:$0xf]
                  %346 = vst [vmem:[%s332 + $0x18] sm:$0xf] %v345
                  %v347 = vld [vmem:[%s331 + $0x38] sm:$0xf]
                  %348 = vst [vmem:[%s332 + $0x1c] sm:$0xf] %v347
                  %v349 = vld [vmem:[%s331 + $0x40] sm:$0xf]
                  %350 = vst [vmem:[%s332 + $0x20] sm:$0xf] %v349
                  %v351 = vld [vmem:[%s331 + $0x48] sm:$0xf]
                  %352 = vst [vmem:[%s332 + $0x24] sm:$0xf] %v351
                  %v353 = vld [vmem:[%s331 + $0x50] sm:$0xf]
                  %354 = vst [vmem:[%s332 + $0x28] sm:$0xf] %v353
                  %v355 = vld [vmem:[%s331 + $0x58] sm:$0xf]
                  %356 = vst [vmem:[%s332 + $0x2c] sm:$0xf] %v355
                  %v357 = vld [vmem:[%s331 + $0x60] sm:$0xf]
                  %358 = vst [vmem:[%s332 + $0x30] sm:$0xf] %v357
                  %v359 = vld [vmem:[%s331 + $0x68] sm:$0xf]
                  %360 = vst [vmem:[%s332 + $0x34] sm:$0xf] %v359
                  %v361 = vld [vmem:[%s331 + $0x70] sm:$0xf]
                  %362 = vst [vmem:[%s332 + $0x38] sm:$0xf] %v361
                  %v363 = vld [vmem:[%s331 + $0x78] sm:$0xf]
                  %364 = vst [vmem:[%s332 + $0x3c] sm:$0xf] %v363
                $region55: #{_lambda_.8} parent=42 // loop_footer
                  %s330 = sadd.s32 1, %s326
                $region56: #{_lambda_.8} parent=42 // loop_footer_branch
                  %325 = sbr.rel target = $region52
                $region57: #{_lambda_.8} parent=42 // loop_exit
                  _
              $region43: #{_lambda_.8} parent=27 // pred_fallthru
                _
            $region28: #{_lambda_.8} parent=23 // pred_fallthru
              _
            // Predicated region
            $region29: #{_lambda_.8} parent=23 // pred_check
              _
            $region30: #{_lambda_.8} parent=23 // pred_check_branch
              %272 = sbr.rel (0) target = $region32
            $region31: #{_lambda_.8} parent=23 // pred_region
              loop: start=0, step=1, limit=1
              $region33: #{_lambda_.8} parent=31 // loop_pre_header
                _
              $region34: #{_lambda_.8} parent=31 // loop_header
                %s275 = sphi 0, %s279
                %p276 = scmp.ge.s32.totalorder %s275, 1
                %s280 = sphi %s266, %s266
                %s281 = sphi %s261, %s261
              $region35: #{_lambda_.8} parent=31 // loop_header_branch
                %278 = sbr.rel (%p276) target = $region39
              $region36: #{_lambda_.8} parent=31 // loop_body
                %v282 = vld [vmem:[%s280] sm:$0xf]
                %283 = vst [vmem:[%s281] sm:$0xf] %v282
                %v284 = vld [vmem:[%s280 + $0x8] sm:$0xf]
                %285 = vst [vmem:[%s281 + $0x4] sm:$0xf] %v284
                %v286 = vld [vmem:[%s280 + $0x10] sm:$0xf]
                %287 = vst [vmem:[%s281 + $0x8] sm:$0xf] %v286
                %v288 = vld [vmem:[%s280 + $0x18] sm:$0xf]
                %289 = vst [vmem:[%s281 + $0xc] sm:$0xf] %v288
                %v290 = vld [vmem:[%s280 + $0x20] sm:$0xf]
                %291 = vst [vmem:[%s281 + $0x10] sm:$0xf] %v290
                %v292 = vld [vmem:[%s280 + $0x28] sm:$0xf]
                %293 = vst [vmem:[%s281 + $0x14] sm:$0xf] %v292
                %v294 = vld [vmem:[%s280 + $0x30] sm:$0xf]
                %295 = vst [vmem:[%s281 + $0x18] sm:$0xf] %v294
                %v296 = vld [vmem:[%s280 + $0x38] sm:$0xf]
                %297 = vst [vmem:[%s281 + $0x1c] sm:$0xf] %v296
                %v298 = vld [vmem:[%s280 + $0x40] sm:$0xf]
                %299 = vst [vmem:[%s281 + $0x20] sm:$0xf] %v298
                %v300 = vld [vmem:[%s280 + $0x48] sm:$0xf]
                %301 = vst [vmem:[%s281 + $0x24] sm:$0xf] %v300
                %v302 = vld [vmem:[%s280 + $0x50] sm:$0xf]
                %303 = vst [vmem:[%s281 + $0x28] sm:$0xf] %v302
                %v304 = vld [vmem:[%s280 + $0x58] sm:$0xf]
                %305 = vst [vmem:[%s281 + $0x2c] sm:$0xf] %v304
                %v306 = vld [vmem:[%s280 + $0x60] sm:$0xf]
                %307 = vst [vmem:[%s281 + $0x30] sm:$0xf] %v306
                %v308 = vld [vmem:[%s280 + $0x68] sm:$0xf]
                %309 = vst [vmem:[%s281 + $0x34] sm:$0xf] %v308
                %v310 = vld [vmem:[%s280 + $0x70] sm:$0xf]
                %311 = vst [vmem:[%s281 + $0x38] sm:$0xf] %v310
                %v312 = vld [vmem:[%s280 + $0x78] sm:$0xf]
                %313 = vst [vmem:[%s281 + $0x3c] sm:$0xf] %v312
              $region37: #{_lambda_.8} parent=31 // loop_footer
                %s279 = sadd.s32 1, %s275
              $region38: #{_lambda_.8} parent=31 // loop_footer_branch
                %274 = sbr.rel target = $region34
              $region39: #{_lambda_.8} parent=31 // loop_exit
                _
            $region32: #{_lambda_.8} parent=23 // pred_fallthru
              _
          $region24: #{_lambda_.8} parent=19 // pred_fallthru
            _
          %365 = vnop
        $region20: #{_lambda_.8} parent=15 // pred_fallthru
          _
        // Predicated region
        $region58: #{_lambda_.8} parent=15 // pred_check
          %p366 = pneg %p74
        $region59: #{_lambda_.8} parent=15 // pred_check_branch
          %368 = sbr.rel (%p366) target = $region61
        $region60: #{_lambda_.8} parent=15 // pred_region
          %s369 = smul.u32 16, %s22
          %p370 = scmp.lt.s32.totalorder %s369, 31
          %s371 = scalar_select %p370, %s369, 31
          %s372 = smul.addr %s371, 2
          %s373 = smul.addr %s372, 4
          %s374 = scalar_lea.vmem %s1, %s373
          %s375 = smul.u32 16, %s22
        $region61: #{_lambda_.8} parent=15 // pred_fallthru
          _
        // Predicated region
        $region62: #{_lambda_.8} parent=15 // pred_check
          %p376 = pneg %p100
        $region63: #{_lambda_.8} parent=15 // pred_check_branch
          %378 = sbr.rel (%p376) target = $region65
        $region64: #{_lambda_.8} parent=15 // pred_region
          %s379 = smul.u32 16, %s21
          %p380 = scmp.lt.s32.totalorder %s379, 31
          %s381 = scalar_select %p380, %s379, 31
          %s382 = smul.addr %s381, 8
          %s383 = scalar_lea.vmem %s2, %s382
          %s384 = smul.u32 16, %s21
        $region65: #{_lambda_.8} parent=15 // pred_fallthru
          _
        // Predicated region
        $region66: #{_lambda_.8} parent=15 // pred_check
          %p385 = pneg %p126
        $region67: #{_lambda_.8} parent=15 // pred_check_branch
          %387 = sbr.rel (%p385) target = $region69
        $region68: #{_lambda_.8} parent=15 // pred_region
          %s388 = smul.u32 16, %s21
          %p389 = scmp.lt.s32.totalorder %s388, 31
          %s390 = scalar_select %p389, %s388, 31
          %s391 = smul.addr %s390, 8
          %s392 = scalar_lea.vmem %s3, %s391
          %s393 = smul.u32 16, %s21
        $region69: #{_lambda_.8} parent=15 // pred_fallthru
          _
        // Predicated region
        $region70: #{_lambda_.8} parent=15 // pred_check
          %p394 = pneg %p152
        $region71: #{_lambda_.8} parent=15 // pred_check_branch
          %396 = sbr.rel (%p394) target = $region73
        $region72: #{_lambda_.8} parent=15 // pred_region
          %s397 = smul.u32 16, %s21
          %p398 = scmp.lt.s32.totalorder %s397, 31
          %s399 = scalar_select %p398, %s397, 31
          %s400 = smul.addr %s399, 8
          %s401 = scalar_lea.vmem %s4, %s400
          %s402 = smul.u32 16, %s21
        $region73: #{_lambda_.8} parent=15 // pred_fallthru
          _
        // Predicated region
        $region74: #{_lambda_.8} parent=15 // pred_check
          %p403 = pneg %p178
        $region75: #{_lambda_.8} parent=15 // pred_check_branch
          %405 = sbr.rel (%p403) target = $region77
        $region76: #{_lambda_.8} parent=15 // pred_region
          %s406 = smul.u32 16, %s21
          %p407 = scmp.lt.s32.totalorder %s406, 31
          %s408 = scalar_select %p407, %s406, 31
          %s409 = smul.addr %s408, 8
          %s410 = scalar_lea.vmem %s5, %s409
          %s411 = smul.u32 16, %s21
        $region77: #{_lambda_.8} parent=15 // pred_fallthru
          _
      $region16: #{_lambda_.8} parent=5 // pred_fallthru
        _
      %p412 = scmp.le.s32.totalorder 1, %s14
      %p413 = scmp.lt.s32.totalorder %s14, 5
      %p414 = pnand %p412, %p413
      %p415 = pneg %p414
      // Predicated region
      $region78: #{_lambda_.8} parent=5 // pred_check
        _
      $region79: #{_lambda_.8} parent=5 // pred_check_branch
        %417 = sbr.rel (%p414) target = $region81
      $region80: #{_lambda_.8} parent=5 // pred_region
        %s418 = ssub.s32 %s14, 1
        %s419 = sand.u32 %s41, 1
        %s420 = sand.u32 %s41, 1
        %s421 = smul.addr %s420, 64
        %s422 = scalar_lea.vmem [#allocation3], %s421
        // Predicated region
        $region82: #{_lambda_.8} parent=80 // pred_check
          %p423 = pneg %p54
        $region83: #{_lambda_.8} parent=80 // pred_check_branch
          %425 = sbr.rel (%p423) target = $region85
        $region84: #{_lambda_.8} parent=80 // pred_region
          _
        $region85: #{_lambda_.8} parent=80 // pred_fallthru
          _
        %s426 = sand.u32 %s41, 1
        %s427 = sand.u32 %s41, 1
        %s428 = smul.addr %s427, 64
        %s429 = scalar_lea.vmem [#allocation3], %s428
        %p430 = pneg %p54
        %p431 = pneg %p51
        %s432 = smul.u32 16, %s24
        %p433 = scmp.lt.s32.totalorder %s432, 31
        %s434 = scalar_select %p433, %s432, 31
        %s435 = smul.addr %s434, 2
        %s436 = smul.addr %s435, 4
        %s437 = scalar_lea.vmem %s1, %s436
        %p438 = pneg %p80
        %p439 = pneg %p77
        %s440 = smul.u32 16, %s23
        %p441 = scmp.lt.s32.totalorder %s440, 31
        %s442 = scalar_select %p441, %s440, 31
        %s443 = smul.addr %s442, 8
        %s444 = scalar_lea.vmem %s2, %s443
        %p445 = pneg %p106
        %p446 = pneg %p103
        %s447 = smul.u32 16, %s23
        %p448 = scmp.lt.s32.totalorder %s447, 31
        %s449 = scalar_select %p448, %s447, 31
        %s450 = smul.addr %s449, 8
        %s451 = scalar_lea.vmem %s3, %s450
        %p452 = pneg %p132
        %p453 = pneg %p129
        %s454 = smul.u32 16, %s23
        %p455 = scmp.lt.s32.totalorder %s454, 31
        %s456 = scalar_select %p455, %s454, 31
        %s457 = smul.addr %s456, 8
        %s458 = scalar_lea.vmem %s4, %s457
        %p459 = pneg %p158
        %p460 = pneg %p155
        %s461 = smul.u32 16, %s23
        %p462 = scmp.lt.s32.totalorder %s461, 31
        %s463 = scalar_select %p462, %s461, 31
        %s464 = smul.addr %s463, 8
        %s465 = scalar_lea.vmem %s5, %s464
        %p466 = pneg %p184
        %p467 = pneg %p181
        %p468 = pneg %p210
        %p469 = pneg %p207
        %s470 = smul.u32 16, %s23
        %p471 = scmp.lt.s32.totalorder %s470, 31
        %s472 = scalar_select %p471, %s470, 31
        %s473 = smul.addr %s472, 8
        %s474 = scalar_lea.vmem %s6, %s473
        %p475 = pneg %p236
        %p476 = pneg %p233
        %s477 = smul.u32 16, %s23
        %p478 = scmp.lt.s32.totalorder %s477, 31
        %s479 = scalar_select %p478, %s477, 31
        %s480 = smul.addr %s479, 4
        %s481 = scalar_lea.vmem %s7, %s480
        %s482 = smul.u32 16, %s23
        %s483 = smul.u32 16, %s24
        %p484 = scmp.lt.s32.totalorder %s483, 31
        %s485 = scalar_select %p484, %s483, 31
        %s486 = smul.addr %s485, 2
        %s487 = smul.addr %s486, 4
        %s488 = scalar_lea.vmem %s1, %s487
        %s489 = smul.u32 16, %s24
        %s490 = smul.u32 16, %s23
        %p491 = scmp.lt.s32.totalorder %s490, 31
        %s492 = scalar_select %p491, %s490, 31
        %s493 = smul.addr %s492, 8
        %s494 = scalar_lea.vmem %s2, %s493
        %s495 = smul.u32 16, %s23
        %s496 = smul.u32 16, %s23
        %p497 = scmp.lt.s32.totalorder %s496, 31
        %s498 = scalar_select %p497, %s496, 31
        %s499 = smul.addr %s498, 8
        %s500 = scalar_lea.vmem %s3, %s499
        %s501 = smul.u32 16, %s23
        %s502 = smul.u32 16, %s23
        %p503 = scmp.lt.s32.totalorder %s502, 31
        %s504 = scalar_select %p503, %s502, 31
        %s505 = smul.addr %s504, 8
        %s506 = scalar_lea.vmem %s4, %s505
        %s507 = smul.u32 16, %s23
        %s508 = smul.u32 16, %s23
        %p509 = scmp.lt.s32.totalorder %s508, 31
        %s510 = scalar_select %p509, %s508, 31
        %s511 = smul.addr %s510, 8
        %s512 = scalar_lea.vmem %s5, %s511
        %s513 = smul.u32 16, %s23
        %s514 = smul.u32 16, %s23
        %p515 = scmp.lt.s32.totalorder %s514, 31
        %s516 = scalar_select %p515, %s514, 31
        %s517 = smul.addr %s516, 8
        %s518 = scalar_lea.vmem %s6, %s517
        %s519 = smul.u32 16, %s23
        %s520 = smul.u32 16, %s23
        %p521 = scmp.lt.s32.totalorder %s520, 31
        %s522 = scalar_select %p521, %s520, 31
        %s523 = smul.addr %s522, 4
        %s524 = scalar_lea.vmem %s7, %s523
        %s525 = smul.u32 16, %s23
        %p527 = scmp.eq.s32.totalorder %s24, 0
        // Predicated region
        $region86: #{_lambda_.8} parent=80 // pred_check
          %p528 = pneg %p527
        $region87: #{_lambda_.8} parent=80 // pred_check_branch
          %530 = sbr.rel (%p528) target = $region89
        $region88: #{_lambda_.8} parent=80 // pred_region
          %531 = vst [vmem:[#allocation2] sm:$0xff] 0.0
          %532 = vst [vmem:[#allocation2 + $0x8] sm:$0xff] 0.0
          %533 = vst [vmem:[#allocation2 + $0x10] sm:$0xff] 0.0
          %534 = vst [vmem:[#allocation2 + $0x18] sm:$0xff] 0.0
          %535 = vst [vmem:[#allocation2 + $0x20] sm:$0xff] 0.0
          %536 = vst [vmem:[#allocation2 + $0x28] sm:$0xff] 0.0
          %537 = vst [vmem:[#allocation2 + $0x30] sm:$0xff] 0.0
          %538 = vst [vmem:[#allocation2 + $0x38] sm:$0xff] 0.0
          %539 = vst [vmem:[#allocation2 + $0x40] sm:$0xff] 0.0
          %540 = vst [vmem:[#allocation2 + $0x48] sm:$0xff] 0.0
          %541 = vst [vmem:[#allocation2 + $0x50] sm:$0xff] 0.0
          %542 = vst [vmem:[#allocation2 + $0x58] sm:$0xff] 0.0
          %543 = vst [vmem:[#allocation2 + $0x60] sm:$0xff] 0.0
          %544 = vst [vmem:[#allocation2 + $0x68] sm:$0xff] 0.0
          %545 = vst [vmem:[#allocation2 + $0x70] sm:$0xff] 0.0
          %546 = vst [vmem:[#allocation2 + $0x78] sm:$0xff] 0.0
          %547 = vst [vmem:[#allocation2 + $0x80] sm:$0xff] 0.0
          %548 = vst [vmem:[#allocation2 + $0x88] sm:$0xff] 0.0
          %549 = vst [vmem:[#allocation2 + $0x90] sm:$0xff] 0.0
          %550 = vst [vmem:[#allocation2 + $0x98] sm:$0xff] 0.0
          %551 = vst [vmem:[#allocation2 + $0xa0] sm:$0xff] 0.0
          %552 = vst [vmem:[#allocation2 + $0xa8] sm:$0xff] 0.0
          %553 = vst [vmem:[#allocation2 + $0xb0] sm:$0xff] 0.0
          %554 = vst [vmem:[#allocation2 + $0xb8] sm:$0xff] 0.0
          %555 = vst [vmem:[#allocation2 + $0xc0] sm:$0xff] 0.0
          %556 = vst [vmem:[#allocation2 + $0xc8] sm:$0xff] 0.0
          %557 = vst [vmem:[#allocation2 + $0xd0] sm:$0xff] 0.0
          %558 = vst [vmem:[#allocation2 + $0xd8] sm:$0xff] 0.0
          %559 = vst [vmem:[#allocation2 + $0xe0] sm:$0xff] 0.0
          %560 = vst [vmem:[#allocation2 + $0xe8] sm:$0xff] 0.0
          %561 = vst [vmem:[#allocation2 + $0xf0] sm:$0xff] 0.0
          %562 = vst [vmem:[#allocation2 + $0xf8] sm:$0xff] 0.0
        $region89: #{_lambda_.8} parent=80 // pred_fallthru
          _
        %v563 = vld [vmem:[#allocation2] sm:$0xff]
        %v564 = vld [vmem:[#allocation2 + $0x8] sm:$0xff]
        %v565 = vld [vmem:[#allocation2 + $0x10] sm:$0xff]
        %v566 = vld [vmem:[#allocation2 + $0x18] sm:$0xff]
        %v567 = vld [vmem:[#allocation2 + $0x20] sm:$0xff]
        %v568 = vld [vmem:[#allocation2 + $0x28] sm:$0xff]
        %v569 = vld [vmem:[#allocation2 + $0x30] sm:$0xff]
        %v570 = vld [vmem:[#allocation2 + $0x38] sm:$0xff]
        %v571 = vld [vmem:[#allocation2 + $0x40] sm:$0xff]
        %v572 = vld [vmem:[#allocation2 + $0x48] sm:$0xff]
        %v573 = vld [vmem:[#allocation2 + $0x50] sm:$0xff]
        %v574 = vld [vmem:[#allocation2 + $0x58] sm:$0xff]
        %v575 = vld [vmem:[#allocation2 + $0x60] sm:$0xff]
        %v576 = vld [vmem:[#allocation2 + $0x68] sm:$0xff]
        %v577 = vld [vmem:[#allocation2 + $0x70] sm:$0xff]
        %v578 = vld [vmem:[#allocation2 + $0x78] sm:$0xff]
        %v579 = vld [vmem:[#allocation2 + $0x80] sm:$0xff]
        %v580 = vld [vmem:[#allocation2 + $0x88] sm:$0xff]
        %v581 = vld [vmem:[#allocation2 + $0x90] sm:$0xff]
        %v582 = vld [vmem:[#allocation2 + $0x98] sm:$0xff]
        %v583 = vld [vmem:[#allocation2 + $0xa0] sm:$0xff]
        %v584 = vld [vmem:[#allocation2 + $0xa8] sm:$0xff]
        %v585 = vld [vmem:[#allocation2 + $0xb0] sm:$0xff]
        %v586 = vld [vmem:[#allocation2 + $0xb8] sm:$0xff]
        %v587 = vld [vmem:[#allocation2 + $0xc0] sm:$0xff]
        %v588 = vld [vmem:[#allocation2 + $0xc8] sm:$0xff]
        %v589 = vld [vmem:[#allocation2 + $0xd0] sm:$0xff]
        %v590 = vld [vmem:[#allocation2 + $0xd8] sm:$0xff]
        %v591 = vld [vmem:[#allocation2 + $0xe0] sm:$0xff]
        %v592 = vld [vmem:[#allocation2 + $0xe8] sm:$0xff]
        %v593 = vld [vmem:[#allocation2 + $0xf0] sm:$0xff]
        %v594 = vld [vmem:[#allocation2 + $0xf8] sm:$0xff]
        %v595 = vld [vmem:[%s422] sm:$0xf]
        %v596 = vld [vmem:[%s422 + $0x4] sm:$0xf]
        %v597 = vld [vmem:[%s422 + $0x8] sm:$0xf]
        %v598 = vld [vmem:[%s422 + $0xc] sm:$0xf]
        %v599 = vld [vmem:[%s422 + $0x10] sm:$0xf]
        %v600 = vld [vmem:[%s422 + $0x14] sm:$0xf]
        %v601 = vld [vmem:[%s422 + $0x18] sm:$0xf]
        %v602 = vld [vmem:[%s422 + $0x1c] sm:$0xf]
        %v603 = vld [vmem:[%s422 + $0x20] sm:$0xf]
        %v604 = vld [vmem:[%s422 + $0x24] sm:$0xf]
        %v605 = vld [vmem:[%s422 + $0x28] sm:$0xf]
        %v606 = vld [vmem:[%s422 + $0x2c] sm:$0xf]
        %v607 = vld [vmem:[%s422 + $0x30] sm:$0xf]
        %v608 = vld [vmem:[%s422 + $0x34] sm:$0xf]
        %v609 = vld [vmem:[%s422 + $0x38] sm:$0xf]
        %v610 = vld [vmem:[%s422 + $0x3c] sm:$0xf]
        %v611 = vld [vmem:[%s488] sm:$0xff]
        %v612 = vld [vmem:[%s488 + $0x8] sm:$0xff]
        %v613 = vld [vmem:[%s488 + $0x10] sm:$0xff]
        %v614 = vld [vmem:[%s488 + $0x18] sm:$0xff]
        %v615 = vld [vmem:[%s488 + $0x20] sm:$0xff]
        %v616 = vld [vmem:[%s488 + $0x28] sm:$0xff]
        %v617 = vld [vmem:[%s488 + $0x30] sm:$0xff]
        %v618 = vld [vmem:[%s488 + $0x38] sm:$0xff]
        %v619 = vld [vmem:[%s488 + $0x40] sm:$0xff]
        %v620 = vld [vmem:[%s488 + $0x48] sm:$0xff]
        %v621 = vld [vmem:[%s488 + $0x50] sm:$0xff]
        %v622 = vld [vmem:[%s488 + $0x58] sm:$0xff]
        %v623 = vld [vmem:[%s488 + $0x60] sm:$0xff]
        %v624 = vld [vmem:[%s488 + $0x68] sm:$0xff]
        %v625 = vld [vmem:[%s488 + $0x70] sm:$0xff]
        %v626 = vld [vmem:[%s488 + $0x78] sm:$0xff]
        %v643 = vunpack.c.l.b16 %v595
        %v644 = vunpack.c.l.b16 %v596
        %v645 = vunpack.c.l.b16 %v597
        %v646 = vunpack.c.l.b16 %v598
        %v647 = vunpack.c.l.b16 %v599
        %v648 = vunpack.c.l.b16 %v600
        %v649 = vunpack.c.l.b16 %v601
        %v650 = vunpack.c.l.b16 %v602
        %v651 = vunpack.c.l.b16 %v603
        %v652 = vunpack.c.l.b16 %v604
        %v653 = vunpack.c.l.b16 %v605
        %v654 = vunpack.c.l.b16 %v606
        %v655 = vunpack.c.l.b16 %v607
        %v656 = vunpack.c.l.b16 %v608
        %v657 = vunpack.c.l.b16 %v609
        %v658 = vunpack.c.l.b16 %v610
        %v659 = vpack.c.b16 %v644, %v643
        %v660 = vpack.c.b16 %v646, %v645
        %v661 = vpack.c.b16 %v648, %v647
        %v662 = vpack.c.b16 %v650, %v649
        %v663 = vpack.c.b16 %v652, %v651
        %v664 = vpack.c.b16 %v654, %v653
        %v665 = vpack.c.b16 %v656, %v655
        %v666 = vpack.c.b16 %v658, %v657
        %v691 = vunpack.c.l.b16 %v611
        %v692 = vunpack.c.h.b16 %v611
        %v693 = vunpack.c.l.b16 %v612
        %v694 = vunpack.c.h.b16 %v612
        %v695 = vunpack.c.l.b16 %v613
        %v696 = vunpack.c.h.b16 %v613
        %v697 = vunpack.c.l.b16 %v614
        %v698 = vunpack.c.h.b16 %v614
        %v699 = vunpack.c.l.b16 %v615
        %v700 = vunpack.c.h.b16 %v615
        %v701 = vunpack.c.l.b16 %v616
        %v702 = vunpack.c.h.b16 %v616
        %v703 = vunpack.c.l.b16 %v617
        %v704 = vunpack.c.h.b16 %v617
        %v705 = vunpack.c.l.b16 %v618
        %v706 = vunpack.c.h.b16 %v618
        %v707 = vunpack.c.l.b16 %v619
        %v708 = vunpack.c.h.b16 %v619
        %v709 = vunpack.c.l.b16 %v620
        %v710 = vunpack.c.h.b16 %v620
        %v711 = vunpack.c.l.b16 %v621
        %v712 = vunpack.c.h.b16 %v621
        %v713 = vunpack.c.l.b16 %v622
        %v714 = vunpack.c.h.b16 %v622
        %v715 = vunpack.c.l.b16 %v623
        %v716 = vunpack.c.h.b16 %v623
        %v717 = vunpack.c.l.b16 %v624
        %v718 = vunpack.c.h.b16 %v624
        %v719 = vunpack.c.l.b16 %v625
        %v720 = vunpack.c.h.b16 %v625
        %v721 = vunpack.c.l.b16 %v626
        %v722 = vunpack.c.h.b16 %v626
        %v723 = vpack.c.b16 %v693, %v691
        %v724 = vpack.c.b16 %v694, %v692
        %v725 = vpack.c.b16 %v697, %v695
        %v726 = vpack.c.b16 %v698, %v696
        %v727 = vpack.c.b16 %v701, %v699
        %v728 = vpack.c.b16 %v702, %v700
        %v729 = vpack.c.b16 %v705, %v703
        %v730 = vpack.c.b16 %v706, %v704
        %v731 = vpack.c.b16 %v709, %v707
        %v732 = vpack.c.b16 %v710, %v708
        %v733 = vpack.c.b16 %v713, %v711
        %v734 = vpack.c.b16 %v714, %v712
        %v735 = vpack.c.b16 %v717, %v715
        %v736 = vpack.c.b16 %v718, %v716
        %v737 = vpack.c.b16 %v721, %v719
        %v738 = vpack.c.b16 %v722, %v720
        %755 = vmatprep.subr.bf16.mxu0 %v724
        %756 = vmatpush1.bf16.msra.mxu0 %v723
        %757 = vmatprep.subr.bf16.mxu0 %v726
        %758 = vmatpush1.bf16.msra.mxu0 %v725
        %759 = vmatprep.subr.bf16.mxu0 %v728
        %760 = vmatpush1.bf16.msra.mxu0 %v727
        %761 = vmatprep.subr.bf16.mxu0 %v730
        %762 = vmatpush1.bf16.msra.mxu0 %v729
        %763 = vmatprep.subr.bf16.mxu0 %v732
        %764 = vmatpush1.bf16.msra.mxu0 %v731
        %765 = vmatprep.subr.bf16.mxu0 %v734
        %766 = vmatpush1.bf16.msra.mxu0 %v733
        %767 = vmatprep.subr.bf16.mxu0 %v736
        %768 = vmatpush1.bf16.msra.mxu0 %v735
        %769 = vmatprep.subr.bf16.mxu0 %v738
        %770 = vmatpush1.bf16.msra.mxu0 %v737
        %771 = vmatprep.subr.bf16.mxu0 0
        %772 = vmatpush1.bf16.msra.mxu0 0
        %773 = vmatprep.subr.bf16.mxu0 0
        %774 = vmatpush1.bf16.msra.mxu0 0
        %775 = vmatprep.subr.bf16.mxu0 0
        %776 = vmatpush1.bf16.msra.mxu0 0
        %777 = vmatprep.subr.bf16.mxu0 0
        %778 = vmatpush1.bf16.msra.mxu0 0
        %779 = vmatprep.subr.bf16.mxu0 0
        %780 = vmatpush1.bf16.msra.mxu0 0
        %781 = vmatprep.subr.bf16.mxu0 0
        %782 = vmatpush1.bf16.msra.mxu0 0
        %783 = vmatprep.subr.bf16.mxu0 0
        %784 = vmatpush1.bf16.msra.mxu0 0
        %785 = vmatprep.subr.bf16.mxu0 0
        %786 = vmatpush1.bf16.msra.mxu0 0
        %787 = vmatprep.mubr.bf16.mxu0 0
        %788 = vmatmul.mubr.bf16.gmra.mrb[0].mxu0 %v659
        %v789 = vpop.f32.mrb[0].mxu0
        %v790 = vadd.f32 0.0, %v789
        %v791 = vpop.f32.mrb[0].mxu0
        %v792 = vadd.f32 0.0, %v791
        %v793 = vpop.f32.mrb[0].mxu0
        %v794 = vadd.f32 0.0, %v793
        %v795 = vpop.f32.mrb[0].mxu0
        %v796 = vadd.f32 0.0, %v795
        %797 = vmatprep.mubr.bf16.mxu0 0
        %798 = vmatmul.mubr.bf16.gmra.mrb[0].mxu0 %v660
        %v799 = vpop.f32.mrb[0].mxu0
        %v800 = vadd.f32 0.0, %v799
        %v801 = vpop.f32.mrb[0].mxu0
        %v802 = vadd.f32 0.0, %v801
        %v803 = vpop.f32.mrb[0].mxu0
        %v804 = vadd.f32 0.0, %v803
        %v805 = vpop.f32.mrb[0].mxu0
        %v806 = vadd.f32 0.0, %v805
        %807 = vmatprep.mubr.bf16.mxu0 0
        %808 = vmatmul.mubr.bf16.gmra.mrb[0].mxu0 %v661
        %v809 = vpop.f32.mrb[0].mxu0
        %v810 = vadd.f32 0.0, %v809
        %v811 = vpop.f32.mrb[0].mxu0
        %v812 = vadd.f32 0.0, %v811
        %v813 = vpop.f32.mrb[0].mxu0
        %v814 = vadd.f32 0.0, %v813
        %v815 = vpop.f32.mrb[0].mxu0
        %v816 = vadd.f32 0.0, %v815
        %817 = vmatprep.mubr.bf16.mxu0 0
        %818 = vmatmul.mubr.bf16.gmra.mrb[0].mxu0 %v662
        %v819 = vpop.f32.mrb[0].mxu0
        %v820 = vadd.f32 0.0, %v819
        %v821 = vpop.f32.mrb[0].mxu0
        %v822 = vadd.f32 0.0, %v821
        %v823 = vpop.f32.mrb[0].mxu0
        %v824 = vadd.f32 0.0, %v823
        %v825 = vpop.f32.mrb[0].mxu0
        %v826 = vadd.f32 0.0, %v825
        %827 = vmatprep.mubr.bf16.mxu0 0
        %828 = vmatmul.mubr.bf16.gmra.mrb[0].mxu0 %v663
        %v829 = vpop.f32.mrb[0].mxu0
        %v830 = vadd.f32 0.0, %v829
        %v831 = vpop.f32.mrb[0].mxu0
        %v832 = vadd.f32 0.0, %v831
        %v833 = vpop.f32.mrb[0].mxu0
        %v834 = vadd.f32 0.0, %v833
        %v835 = vpop.f32.mrb[0].mxu0
        %v836 = vadd.f32 0.0, %v835
        %837 = vmatprep.mubr.bf16.mxu0 0
        %838 = vmatmul.mubr.bf16.gmra.mrb[0].mxu0 %v664
        %v839 = vpop.f32.mrb[0].mxu0
        %v840 = vadd.f32 0.0, %v839
        %v841 = vpop.f32.mrb[0].mxu0
        %v842 = vadd.f32 0.0, %v841
        %v843 = vpop.f32.mrb[0].mxu0
        %v844 = vadd.f32 0.0, %v843
        %v845 = vpop.f32.mrb[0].mxu0
        %v846 = vadd.f32 0.0, %v845
        %847 = vmatprep.mubr.bf16.mxu0 0
        %848 = vmatmul.mubr.bf16.gmra.mrb[0].mxu0 %v665
        %v849 = vpop.f32.mrb[0].mxu0
        %v850 = vadd.f32 0.0, %v849
        %v851 = vpop.f32.mrb[0].mxu0
        %v852 = vadd.f32 0.0, %v851
        %v853 = vpop.f32.mrb[0].mxu0
        %v854 = vadd.f32 0.0, %v853
        %v855 = vpop.f32.mrb[0].mxu0
        %v856 = vadd.f32 0.0, %v855
        %857 = vmatprep.mubr.bf16.mxu0 0
        %858 = vmatmul.mubr.bf16.gmra.mrb[0].mxu0 %v666
        %v859 = vpop.f32.mrb[0].mxu0
        %v860 = vadd.f32 0.0, %v859
        %v861 = vpop.f32.mrb[0].mxu0
        %v862 = vadd.f32 0.0, %v861
        %v863 = vpop.f32.mrb[0].mxu0
        %v864 = vadd.f32 0.0, %v863
        %v865 = vpop.f32.mrb[0].mxu0
        %v866 = vadd.f32 0.0, %v865
        %867 = vdwg.mxu0
        %v868 = vadd.f32 %v563, %v790
        %v869 = vadd.f32 %v564, %v792
        %v870 = vadd.f32 %v565, %v794
        %v871 = vadd.f32 %v566, %v796
        %v872 = vadd.f32 %v567, %v800
        %v873 = vadd.f32 %v568, %v802
        %v874 = vadd.f32 %v569, %v804
        %v875 = vadd.f32 %v570, %v806
        %v876 = vadd.f32 %v571, %v810
        %v877 = vadd.f32 %v572, %v812
        %v878 = vadd.f32 %v573, %v814
        %v879 = vadd.f32 %v574, %v816
        %v880 = vadd.f32 %v575, %v820
        %v881 = vadd.f32 %v576, %v822
        %v882 = vadd.f32 %v577, %v824
        %v883 = vadd.f32 %v578, %v826
        %v884 = vadd.f32 %v579, %v830
        %v885 = vadd.f32 %v580, %v832
        %v886 = vadd.f32 %v581, %v834
        %v887 = vadd.f32 %v582, %v836
        %v888 = vadd.f32 %v583, %v840
        %v889 = vadd.f32 %v584, %v842
        %v890 = vadd.f32 %v585, %v844
        %v891 = vadd.f32 %v586, %v846
        %v892 = vadd.f32 %v587, %v850
        %v893 = vadd.f32 %v588, %v852
        %v894 = vadd.f32 %v589, %v854
        %v895 = vadd.f32 %v590, %v856
        %v896 = vadd.f32 %v591, %v860
        %v897 = vadd.f32 %v592, %v862
        %v898 = vadd.f32 %v593, %v864
        %v899 = vadd.f32 %v594, %v866
        %900 = vst [vmem:[#allocation2] sm:$0xff] %v868
        %901 = vst [vmem:[#allocation2 + $0x8] sm:$0xff] %v869
        %902 = vst [vmem:[#allocation2 + $0x10] sm:$0xff] %v870
        %903 = vst [vmem:[#allocation2 + $0x18] sm:$0xff] %v871
        %904 = vst [vmem:[#allocation2 + $0x20] sm:$0xff] %v872
        %905 = vst [vmem:[#allocation2 + $0x28] sm:$0xff] %v873
        %906 = vst [vmem:[#allocation2 + $0x30] sm:$0xff] %v874
        %907 = vst [vmem:[#allocation2 + $0x38] sm:$0xff] %v875
        %908 = vst [vmem:[#allocation2 + $0x40] sm:$0xff] %v876
        %909 = vst [vmem:[#allocation2 + $0x48] sm:$0xff] %v877
        %910 = vst [vmem:[#allocation2 + $0x50] sm:$0xff] %v878
        %911 = vst [vmem:[#allocation2 + $0x58] sm:$0xff] %v879
        %912 = vst [vmem:[#allocation2 + $0x60] sm:$0xff] %v880
        %913 = vst [vmem:[#allocation2 + $0x68] sm:$0xff] %v881
        %914 = vst [vmem:[#allocation2 + $0x70] sm:$0xff] %v882
        %915 = vst [vmem:[#allocation2 + $0x78] sm:$0xff] %v883
        %916 = vst [vmem:[#allocation2 + $0x80] sm:$0xff] %v884
        %917 = vst [vmem:[#allocation2 + $0x88] sm:$0xff] %v885
        %918 = vst [vmem:[#allocation2 + $0x90] sm:$0xff] %v886
        %919 = vst [vmem:[#allocation2 + $0x98] sm:$0xff] %v887
        %920 = vst [vmem:[#allocation2 + $0xa0] sm:$0xff] %v888
        %921 = vst [vmem:[#allocation2 + $0xa8] sm:$0xff] %v889
        %922 = vst [vmem:[#allocation2 + $0xb0] sm:$0xff] %v890
        %923 = vst [vmem:[#allocation2 + $0xb8] sm:$0xff] %v891
        %924 = vst [vmem:[#allocation2 + $0xc0] sm:$0xff] %v892
        %925 = vst [vmem:[#allocation2 + $0xc8] sm:$0xff] %v893
        %926 = vst [vmem:[#allocation2 + $0xd0] sm:$0xff] %v894
        %927 = vst [vmem:[#allocation2 + $0xd8] sm:$0xff] %v895
        %928 = vst [vmem:[#allocation2 + $0xe0] sm:$0xff] %v896
        %929 = vst [vmem:[#allocation2 + $0xe8] sm:$0xff] %v897
        %930 = vst [vmem:[#allocation2 + $0xf0] sm:$0xff] %v898
        %931 = vst [vmem:[#allocation2 + $0xf8] sm:$0xff] %v899
        %p932 = scmp.eq.s32.totalorder %s24, 1
        // Predicated region
        $region90: #{_lambda_.8} parent=80 // pred_check
          %p933 = pneg %p932
        $region91: #{_lambda_.8} parent=80 // pred_check_branch
          %935 = sbr.rel (%p933) target = $region93
        $region92: #{_lambda_.8} parent=80 // pred_region
          %v936 = vld [vmem:[#allocation2] sm:$0xff]
          %v937 = vld [vmem:[#allocation2 + $0x10] sm:$0xff]
          %v938 = vld [vmem:[#allocation2 + $0x20] sm:$0xff]
          %v939 = vld [vmem:[#allocation2 + $0x30] sm:$0xff]
          %v940 = vld [vmem:[#allocation2 + $0x40] sm:$0xff]
          %v941 = vld [vmem:[#allocation2 + $0x50] sm:$0xff]
          %v942 = vld [vmem:[#allocation2 + $0x60] sm:$0xff]
          %v943 = vld [vmem:[#allocation2 + $0x70] sm:$0xff]
          %v944 = vld [vmem:[#allocation2 + $0x80] sm:$0xff]
          %v945 = vld [vmem:[#allocation2 + $0x90] sm:$0xff]
          %v946 = vld [vmem:[#allocation2 + $0xa0] sm:$0xff]
          %v947 = vld [vmem:[#allocation2 + $0xb0] sm:$0xff]
          %v948 = vld [vmem:[#allocation2 + $0xc0] sm:$0xff]
          %v949 = vld [vmem:[#allocation2 + $0xd0] sm:$0xff]
          %v950 = vld [vmem:[#allocation2 + $0xe0] sm:$0xff]
          %v951 = vld [vmem:[#allocation2 + $0xf0] sm:$0xff]
          %v952 = vld [vmem:[#allocation2 + $0x8] sm:$0xff]
          %v953 = vld [vmem:[#allocation2 + $0x18] sm:$0xff]
          %v954 = vld [vmem:[#allocation2 + $0x28] sm:$0xff]
          %v955 = vld [vmem:[#allocation2 + $0x38] sm:$0xff]
          %v956 = vld [vmem:[#allocation2 + $0x48] sm:$0xff]
          %v957 = vld [vmem:[#allocation2 + $0x58] sm:$0xff]
          %v958 = vld [vmem:[#allocation2 + $0x68] sm:$0xff]
          %v959 = vld [vmem:[#allocation2 + $0x78] sm:$0xff]
          %v960 = vld [vmem:[#allocation2 + $0x88] sm:$0xff]
          %v961 = vld [vmem:[#allocation2 + $0x98] sm:$0xff]
          %v962 = vld [vmem:[#allocation2 + $0xa8] sm:$0xff]
          %v963 = vld [vmem:[#allocation2 + $0xb8] sm:$0xff]
          %v964 = vld [vmem:[#allocation2 + $0xc8] sm:$0xff]
          %v965 = vld [vmem:[#allocation2 + $0xd8] sm:$0xff]
          %v966 = vld [vmem:[#allocation2 + $0xe8] sm:$0xff]
          %v967 = vld [vmem:[#allocation2 + $0xf8] sm:$0xff]
          %v968 = vld [vmem:[%s494] sm:$0xff]
          %v969 = vld [vmem:[%s494 + $0x8] sm:$0xff]
          %v970 = vld [vmem:[%s494 + $0x10] sm:$0xff]
          %v971 = vld [vmem:[%s494 + $0x18] sm:$0xff]
          %v972 = vld [vmem:[%s494 + $0x20] sm:$0xff]
          %v973 = vld [vmem:[%s494 + $0x28] sm:$0xff]
          %v974 = vld [vmem:[%s494 + $0x30] sm:$0xff]
          %v975 = vld [vmem:[%s494 + $0x38] sm:$0xff]
          %v976 = vld [vmem:[%s494 + $0x40] sm:$0xff]
          %v977 = vld [vmem:[%s494 + $0x48] sm:$0xff]
          %v978 = vld [vmem:[%s494 + $0x50] sm:$0xff]
          %v979 = vld [vmem:[%s494 + $0x58] sm:$0xff]
          %v980 = vld [vmem:[%s494 + $0x60] sm:$0xff]
          %v981 = vld [vmem:[%s494 + $0x68] sm:$0xff]
          %v982 = vld [vmem:[%s494 + $0x70] sm:$0xff]
          %v983 = vld [vmem:[%s494 + $0x78] sm:$0xff]
          %v984 = vld [vmem:[%s512] sm:$0xff]
          %v985 = vld [vmem:[%s512 + $0x8] sm:$0xff]
          %v986 = vld [vmem:[%s512 + $0x10] sm:$0xff]
          %v987 = vld [vmem:[%s512 + $0x18] sm:$0xff]
          %v988 = vld [vmem:[%s512 + $0x20] sm:$0xff]
          %v989 = vld [vmem:[%s512 + $0x28] sm:$0xff]
          %v990 = vld [vmem:[%s512 + $0x30] sm:$0xff]
          %v991 = vld [vmem:[%s512 + $0x38] sm:$0xff]
          %v992 = vld [vmem:[%s512 + $0x40] sm:$0xff]
          %v993 = vld [vmem:[%s512 + $0x48] sm:$0xff]
          %v994 = vld [vmem:[%s512 + $0x50] sm:$0xff]
          %v995 = vld [vmem:[%s512 + $0x58] sm:$0xff]
          %v996 = vld [vmem:[%s512 + $0x60] sm:$0xff]
          %v997 = vld [vmem:[%s512 + $0x68] sm:$0xff]
          %v998 = vld [vmem:[%s512 + $0x70] sm:$0xff]
          %v999 = vld [vmem:[%s512 + $0x78] sm:$0xff]
          %v1000 = vmul.f32 %v968, %v968
          %v1001 = vmul.f32 %v969, %v969
          %v1002 = vmul.f32 %v970, %v970
          %v1003 = vmul.f32 %v971, %v971
          %v1004 = vmul.f32 %v972, %v972
          %v1005 = vmul.f32 %v973, %v973
          %v1006 = vmul.f32 %v974, %v974
          %v1007 = vmul.f32 %v975, %v975
          %v1008 = vmul.f32 %v976, %v976
          %v1009 = vmul.f32 %v977, %v977
          %v1010 = vmul.f32 %v978, %v978
          %v1011 = vmul.f32 %v979, %v979
          %v1012 = vmul.f32 %v980, %v980
          %v1013 = vmul.f32 %v981, %v981
          %v1014 = vmul.f32 %v982, %v982
          %v1015 = vmul.f32 %v983, %v983
          %1017 = vset.pattern.permute.xlu0 0
          %1018 = vperm.xlu0 %1017, %v984
          %v1019 = vpop.permute.xlu0 %1018
          %1022 = vset.pattern.permute.xlu0 0
          %1023 = vperm.xlu0 %1022, %v985
          %v1024 = vpop.permute.xlu0 %1023
          %1027 = vset.pattern.permute.xlu0 0
          %1028 = vperm.xlu0 %1027, %v986
          %v1029 = vpop.permute.xlu0 %1028
          %1032 = vset.pattern.permute.xlu0 0
          %1033 = vperm.xlu0 %1032, %v987
          %v1034 = vpop.permute.xlu0 %1033
          %1037 = vset.pattern.permute.xlu0 0
          %1038 = vperm.xlu0 %1037, %v988
          %v1039 = vpop.permute.xlu0 %1038
          %1042 = vset.pattern.permute.xlu0 0
          %1043 = vperm.xlu0 %1042, %v989
          %v1044 = vpop.permute.xlu0 %1043
          %1047 = vset.pattern.permute.xlu0 0
          %1048 = vperm.xlu0 %1047, %v990
          %v1049 = vpop.permute.xlu0 %1048
          %1052 = vset.pattern.permute.xlu0 0
          %1053 = vperm.xlu0 %1052, %v991
          %v1054 = vpop.permute.xlu0 %1053
          %1057 = vset.pattern.permute.xlu0 0
          %1058 = vperm.xlu0 %1057, %v992
          %v1059 = vpop.permute.xlu0 %1058
          %1062 = vset.pattern.permute.xlu0 0
          %1063 = vperm.xlu0 %1062, %v993
          %v1064 = vpop.permute.xlu0 %1063
          %1067 = vset.pattern.permute.xlu0 0
          %1068 = vperm.xlu0 %1067, %v994
          %v1069 = vpop.permute.xlu0 %1068
          %1072 = vset.pattern.permute.xlu0 0
          %1073 = vperm.xlu0 %1072, %v995
          %v1074 = vpop.permute.xlu0 %1073
          %1077 = vset.pattern.permute.xlu0 0
          %1078 = vperm.xlu0 %1077, %v996
          %v1079 = vpop.permute.xlu0 %1078
          %1082 = vset.pattern.permute.xlu0 0
          %1083 = vperm.xlu0 %1082, %v997
          %v1084 = vpop.permute.xlu0 %1083
          %1087 = vset.pattern.permute.xlu0 0
          %1088 = vperm.xlu0 %1087, %v998
          %v1089 = vpop.permute.xlu0 %1088
          %1092 = vset.pattern.permute.xlu0 0
          %1093 = vperm.xlu0 %1092, %v999
          %v1094 = vpop.permute.xlu0 %1093
          %v1096 = vmul.f32 %v1019, %v1000
          %v1097 = vmul.f32 %v1024, %v1001
          %v1098 = vmul.f32 %v1029, %v1002
          %v1099 = vmul.f32 %v1034, %v1003
          %v1100 = vmul.f32 %v1039, %v1004
          %v1101 = vmul.f32 %v1044, %v1005
          %v1102 = vmul.f32 %v1049, %v1006
          %v1103 = vmul.f32 %v1054, %v1007
          %v1104 = vmul.f32 %v1059, %v1008
          %v1105 = vmul.f32 %v1064, %v1009
          %v1106 = vmul.f32 %v1069, %v1010
          %v1107 = vmul.f32 %v1074, %v1011
          %v1108 = vmul.f32 %v1079, %v1012
          %v1109 = vmul.f32 %v1084, %v1013
          %v1110 = vmul.f32 %v1089, %v1014
          %v1111 = vmul.f32 %v1094, %v1015
          %v1112 = vmul.f32 %v968, 2.0
          %v1113 = vmul.f32 %v969, 2.0
          %v1114 = vmul.f32 %v970, 2.0
          %v1115 = vmul.f32 %v971, 2.0
          %v1116 = vmul.f32 %v972, 2.0
          %v1117 = vmul.f32 %v973, 2.0
          %v1118 = vmul.f32 %v974, 2.0
          %v1119 = vmul.f32 %v975, 2.0
          %v1120 = vmul.f32 %v976, 2.0
          %v1121 = vmul.f32 %v977, 2.0
          %v1122 = vmul.f32 %v978, 2.0
          %v1123 = vmul.f32 %v979, 2.0
          %v1124 = vmul.f32 %v980, 2.0
          %v1125 = vmul.f32 %v981, 2.0
          %v1126 = vmul.f32 %v982, 2.0
          %v1127 = vmul.f32 %v983, 2.0
          %v1128 = vmul.f32 %v1112, %v936
          %v1129 = vmul.f32 %v1113, %v937
          %v1130 = vmul.f32 %v1114, %v938
          %v1131 = vmul.f32 %v1115, %v939
          %v1132 = vmul.f32 %v1116, %v940
          %v1133 = vmul.f32 %v1117, %v941
          %v1134 = vmul.f32 %v1118, %v942
          %v1135 = vmul.f32 %v1119, %v943
          %v1136 = vmul.f32 %v1120, %v944
          %v1137 = vmul.f32 %v1121, %v945
          %v1138 = vmul.f32 %v1122, %v946
          %v1139 = vmul.f32 %v1123, %v947
          %v1140 = vmul.f32 %v1124, %v948
          %v1141 = vmul.f32 %v1125, %v949
          %v1142 = vmul.f32 %v1126, %v950
          %v1143 = vmul.f32 %v1127, %v951
          %v1144 = vsub.f32 %v1096, %v1128
          %v1145 = vsub.f32 %v1097, %v1129
          %v1146 = vsub.f32 %v1098, %v1130
          %v1147 = vsub.f32 %v1099, %v1131
          %v1148 = vsub.f32 %v1100, %v1132
          %v1149 = vsub.f32 %v1101, %v1133
          %v1150 = vsub.f32 %v1102, %v1134
          %v1151 = vsub.f32 %v1103, %v1135
          %v1152 = vsub.f32 %v1104, %v1136
          %v1153 = vsub.f32 %v1105, %v1137
          %v1154 = vsub.f32 %v1106, %v1138
          %v1155 = vsub.f32 %v1107, %v1139
          %v1156 = vsub.f32 %v1108, %v1140
          %v1157 = vsub.f32 %v1109, %v1141
          %v1158 = vsub.f32 %v1110, %v1142
          %v1159 = vsub.f32 %v1111, %v1143
          %v1160 = vadd.f32 %v1144, %v952
          %v1161 = vadd.f32 %v1145, %v953
          %v1162 = vadd.f32 %v1146, %v954
          %v1163 = vadd.f32 %v1147, %v955
          %v1164 = vadd.f32 %v1148, %v956
          %v1165 = vadd.f32 %v1149, %v957
          %v1166 = vadd.f32 %v1150, %v958
          %v1167 = vadd.f32 %v1151, %v959
          %v1168 = vadd.f32 %v1152, %v960
          %v1169 = vadd.f32 %v1153, %v961
          %v1170 = vadd.f32 %v1154, %v962
          %v1171 = vadd.f32 %v1155, %v963
          %v1172 = vadd.f32 %v1156, %v964
          %v1173 = vadd.f32 %v1157, %v965
          %v1174 = vadd.f32 %v1158, %v966
          %v1175 = vadd.f32 %v1159, %v967
          %v1176 = vmax.f32 %v1160, 0.0
          %v1177 = vmax.f32 %v1161, 0.0
          %v1178 = vmax.f32 %v1162, 0.0
          %v1179 = vmax.f32 %v1163, 0.0
          %v1180 = vmax.f32 %v1164, 0.0
          %v1181 = vmax.f32 %v1165, 0.0
          %v1182 = vmax.f32 %v1166, 0.0
          %v1183 = vmax.f32 %v1167, 0.0
          %v1184 = vmax.f32 %v1168, 0.0
          %v1185 = vmax.f32 %v1169, 0.0
          %v1186 = vmax.f32 %v1170, 0.0
          %v1187 = vmax.f32 %v1171, 0.0
          %v1188 = vmax.f32 %v1172, 0.0
          %v1189 = vmax.f32 %v1173, 0.0
          %v1190 = vmax.f32 %v1174, 0.0
          %v1191 = vmax.f32 %v1175, 0.0
          %1192 = vset.pattern.permute.xlu0 1
          %1193 = vperm.xlu0 %1192, %v984
          %v1194 = vpop.permute.xlu0 %1193
          %1196 = vset.pattern.permute.xlu0 1
          %1197 = vperm.xlu0 %1196, %v985
          %v1198 = vpop.permute.xlu0 %1197
          %1200 = vset.pattern.permute.xlu0 1
          %1201 = vperm.xlu0 %1200, %v986
          %v1202 = vpop.permute.xlu0 %1201
          %1204 = vset.pattern.permute.xlu0 1
          %1205 = vperm.xlu0 %1204, %v987
          %v1206 = vpop.permute.xlu0 %1205
          %1208 = vset.pattern.permute.xlu0 1
          %1209 = vperm.xlu0 %1208, %v988
          %v1210 = vpop.permute.xlu0 %1209
          %1212 = vset.pattern.permute.xlu0 1
          %1213 = vperm.xlu0 %1212, %v989
          %v1214 = vpop.permute.xlu0 %1213
          %1216 = vset.pattern.permute.xlu0 1
          %1217 = vperm.xlu0 %1216, %v990
          %v1218 = vpop.permute.xlu0 %1217
          %1220 = vset.pattern.permute.xlu0 1
          %1221 = vperm.xlu0 %1220, %v991
          %v1222 = vpop.permute.xlu0 %1221
          %1224 = vset.pattern.permute.xlu0 1
          %1225 = vperm.xlu0 %1224, %v992
          %v1226 = vpop.permute.xlu0 %1225
          %1228 = vset.pattern.permute.xlu0 1
          %1229 = vperm.xlu0 %1228, %v993
          %v1230 = vpop.permute.xlu0 %1229
          %1232 = vset.pattern.permute.xlu0 1
          %1233 = vperm.xlu0 %1232, %v994
          %v1234 = vpop.permute.xlu0 %1233
          %1236 = vset.pattern.permute.xlu0 1
          %1237 = vperm.xlu0 %1236, %v995
          %v1238 = vpop.permute.xlu0 %1237
          %1240 = vset.pattern.permute.xlu0 1
          %1241 = vperm.xlu0 %1240, %v996
          %v1242 = vpop.permute.xlu0 %1241
          %1244 = vset.pattern.permute.xlu0 1
          %1245 = vperm.xlu0 %1244, %v997
          %v1246 = vpop.permute.xlu0 %1245
          %1248 = vset.pattern.permute.xlu0 1
          %1249 = vperm.xlu0 %1248, %v998
          %v1250 = vpop.permute.xlu0 %1249
          %1252 = vset.pattern.permute.xlu0 1
          %1253 = vperm.xlu0 %1252, %v999
          %v1254 = vpop.permute.xlu0 %1253
          %v1256 = vmul.f32 %v1176, %v1194
          %v1257 = vmul.f32 %v1177, %v1198
          %v1258 = vmul.f32 %v1178, %v1202
          %v1259 = vmul.f32 %v1179, %v1206
          %v1260 = vmul.f32 %v1180, %v1210
          %v1261 = vmul.f32 %v1181, %v1214
          %v1262 = vmul.f32 %v1182, %v1218
          %v1263 = vmul.f32 %v1183, %v1222
          %v1264 = vmul.f32 %v1184, %v1226
          %v1265 = vmul.f32 %v1185, %v1230
          %v1266 = vmul.f32 %v1186, %v1234
          %v1267 = vmul.f32 %v1187, %v1238
          %v1268 = vmul.f32 %v1188, %v1242
          %v1269 = vmul.f32 %v1189, %v1246
          %v1270 = vmul.f32 %v1190, %v1250
          %v1271 = vmul.f32 %v1191, %v1254
          %v1272 = vtanh.pop %v1256
          %v1273 = vtanh.pop %v1257
          %v1274 = vtanh.pop %v1258
          %v1275 = vtanh.pop %v1259
          %v1276 = vtanh.pop %v1260
          %v1277 = vtanh.pop %v1261
          %v1278 = vtanh.pop %v1262
          %v1279 = vtanh.pop %v1263
          %v1280 = vtanh.pop %v1264
          %v1281 = vtanh.pop %v1265
          %v1282 = vtanh.pop %v1266
          %v1283 = vtanh.pop %v1267
          %v1284 = vtanh.pop %v1268
          %v1285 = vtanh.pop %v1269
          %v1286 = vtanh.pop %v1270
          %v1287 = vtanh.pop %v1271
          %v1288 = vsub.f32 1.0, %v1272
          %v1289 = vsub.f32 1.0, %v1273
          %v1290 = vsub.f32 1.0, %v1274
          %v1291 = vsub.f32 1.0, %v1275
          %v1292 = vsub.f32 1.0, %v1276
          %v1293 = vsub.f32 1.0, %v1277
          %v1294 = vsub.f32 1.0, %v1278
          %v1295 = vsub.f32 1.0, %v1279
          %v1296 = vsub.f32 1.0, %v1280
          %v1297 = vsub.f32 1.0, %v1281
          %v1298 = vsub.f32 1.0, %v1282
          %v1299 = vsub.f32 1.0, %v1283
          %v1300 = vsub.f32 1.0, %v1284
          %v1301 = vsub.f32 1.0, %v1285
          %v1302 = vsub.f32 1.0, %v1286
          %v1303 = vsub.f32 1.0, %v1287
          %v1304 = vld [vmem:[%s500] sm:$0xff]
          %v1305 = vld [vmem:[%s500 + $0x8] sm:$0xff]
          %v1306 = vld [vmem:[%s500 + $0x10] sm:$0xff]
          %v1307 = vld [vmem:[%s500 + $0x18] sm:$0xff]
          %v1308 = vld [vmem:[%s500 + $0x20] sm:$0xff]
          %v1309 = vld [vmem:[%s500 + $0x28] sm:$0xff]
          %v1310 = vld [vmem:[%s500 + $0x30] sm:$0xff]
          %v1311 = vld [vmem:[%s500 + $0x38] sm:$0xff]
          %v1312 = vld [vmem:[%s500 + $0x40] sm:$0xff]
          %v1313 = vld [vmem:[%s500 + $0x48] sm:$0xff]
          %v1314 = vld [vmem:[%s500 + $0x50] sm:$0xff]
          %v1315 = vld [vmem:[%s500 + $0x58] sm:$0xff]
          %v1316 = vld [vmem:[%s500 + $0x60] sm:$0xff]
          %v1317 = vld [vmem:[%s500 + $0x68] sm:$0xff]
          %v1318 = vld [vmem:[%s500 + $0x70] sm:$0xff]
          %v1319 = vld [vmem:[%s500 + $0x78] sm:$0xff]
          %v1320 = vmul.f32 %v1288, %v1304
          %v1321 = vmul.f32 %v1289, %v1305
          %v1322 = vmul.f32 %v1290, %v1306
          %v1323 = vmul.f32 %v1291, %v1307
          %v1324 = vmul.f32 %v1292, %v1308
          %v1325 = vmul.f32 %v1293, %v1309
          %v1326 = vmul.f32 %v1294, %v1310
          %v1327 = vmul.f32 %v1295, %v1311
          %v1328 = vmul.f32 %v1296, %v1312
          %v1329 = vmul.f32 %v1297, %v1313
          %v1330 = vmul.f32 %v1298, %v1314
          %v1331 = vmul.f32 %v1299, %v1315
          %v1332 = vmul.f32 %v1300, %v1316
          %v1333 = vmul.f32 %v1301, %v1317
          %v1334 = vmul.f32 %v1302, %v1318
          %v1335 = vmul.f32 %v1303, %v1319
          %v1336 = vld [vmem:[%s506] sm:$0xff]
          %v1337 = vld [vmem:[%s506 + $0x8] sm:$0xff]
          %v1338 = vld [vmem:[%s506 + $0x10] sm:$0xff]
          %v1339 = vld [vmem:[%s506 + $0x18] sm:$0xff]
          %v1340 = vld [vmem:[%s506 + $0x20] sm:$0xff]
          %v1341 = vld [vmem:[%s506 + $0x28] sm:$0xff]
          %v1342 = vld [vmem:[%s506 + $0x30] sm:$0xff]
          %v1343 = vld [vmem:[%s506 + $0x38] sm:$0xff]
          %v1344 = vld [vmem:[%s506 + $0x40] sm:$0xff]
          %v1345 = vld [vmem:[%s506 + $0x48] sm:$0xff]
          %v1346 = vld [vmem:[%s506 + $0x50] sm:$0xff]
          %v1347 = vld [vmem:[%s506 + $0x58] sm:$0xff]
          %v1348 = vld [vmem:[%s506 + $0x60] sm:$0xff]
          %v1349 = vld [vmem:[%s506 + $0x68] sm:$0xff]
          %v1350 = vld [vmem:[%s506 + $0x70] sm:$0xff]
          %v1351 = vld [vmem:[%s506 + $0x78] sm:$0xff]
          %v1352 = vmul.f32 %v1272, %v1336
          %v1353 = vmul.f32 %v1273, %v1337
          %v1354 = vmul.f32 %v1274, %v1338
          %v1355 = vmul.f32 %v1275, %v1339
          %v1356 = vmul.f32 %v1276, %v1340
          %v1357 = vmul.f32 %v1277, %v1341
          %v1358 = vmul.f32 %v1278, %v1342
          %v1359 = vmul.f32 %v1279, %v1343
          %v1360 = vmul.f32 %v1280, %v1344
          %v1361 = vmul.f32 %v1281, %v1345
          %v1362 = vmul.f32 %v1282, %v1346
          %v1363 = vmul.f32 %v1283, %v1347
          %v1364 = vmul.f32 %v1284, %v1348
          %v1365 = vmul.f32 %v1285, %v1349
          %v1366 = vmul.f32 %v1286, %v1350
          %v1367 = vmul.f32 %v1287, %v1351
          %v1368 = vadd.f32 %v1320, %v1352
          %v1369 = vadd.f32 %v1321, %v1353
          %v1370 = vadd.f32 %v1322, %v1354
          %v1371 = vadd.f32 %v1323, %v1355
          %v1372 = vadd.f32 %v1324, %v1356
          %v1373 = vadd.f32 %v1325, %v1357
          %v1374 = vadd.f32 %v1326, %v1358
          %v1375 = vadd.f32 %v1327, %v1359
          %v1376 = vadd.f32 %v1328, %v1360
          %v1377 = vadd.f32 %v1329, %v1361
          %v1378 = vadd.f32 %v1330, %v1362
          %v1379 = vadd.f32 %v1331, %v1363
          %v1380 = vadd.f32 %v1332, %v1364
          %v1381 = vadd.f32 %v1333, %v1365
          %v1382 = vadd.f32 %v1334, %v1366
          %v1383 = vadd.f32 %v1335, %v1367
          %1384 = vst [vmem:[%s518] sm:$0xff] %v1368
          %1385 = vst [vmem:[%s518 + $0x8] sm:$0xff] %v1369
          %1386 = vst [vmem:[%s518 + $0x10] sm:$0xff] %v1370
          %1387 = vst [vmem:[%s518 + $0x18] sm:$0xff] %v1371
          %1388 = vst [vmem:[%s518 + $0x20] sm:$0xff] %v1372
          %1389 = vst [vmem:[%s518 + $0x28] sm:$0xff] %v1373
          %1390 = vst [vmem:[%s518 + $0x30] sm:$0xff] %v1374
          %1391 = vst [vmem:[%s518 + $0x38] sm:$0xff] %v1375
          %1392 = vst [vmem:[%s518 + $0x40] sm:$0xff] %v1376
          %1393 = vst [vmem:[%s518 + $0x48] sm:$0xff] %v1377
          %1394 = vst [vmem:[%s518 + $0x50] sm:$0xff] %v1378
          %1395 = vst [vmem:[%s518 + $0x58] sm:$0xff] %v1379
          %1396 = vst [vmem:[%s518 + $0x60] sm:$0xff] %v1380
          %1397 = vst [vmem:[%s518 + $0x68] sm:$0xff] %v1381
          %1398 = vst [vmem:[%s518 + $0x70] sm:$0xff] %v1382
          %1399 = vst [vmem:[%s518 + $0x78] sm:$0xff] %v1383
          %v1400 = vpack.c.bf16 %v1369, %v1368
          %v1401 = vpack.c.bf16 %v1371, %v1370
          %v1402 = vpack.c.bf16 %v1373, %v1372
          %v1403 = vpack.c.bf16 %v1375, %v1374
          %v1404 = vpack.c.bf16 %v1377, %v1376
          %v1405 = vpack.c.bf16 %v1379, %v1378
          %v1406 = vpack.c.bf16 %v1381, %v1380
          %v1407 = vpack.c.bf16 %v1383, %v1382
          %v1416 = vunpack.c.l.b16 %v1400
          %v1417 = vunpack.c.h.b16 %v1400
          %v1418 = vunpack.c.l.b16 %v1401
          %v1419 = vunpack.c.h.b16 %v1401
          %v1420 = vunpack.c.l.b16 %v1402
          %v1421 = vunpack.c.h.b16 %v1402
          %v1422 = vunpack.c.l.b16 %v1403
          %v1423 = vunpack.c.h.b16 %v1403
          %v1424 = vunpack.c.l.b16 %v1404
          %v1425 = vunpack.c.h.b16 %v1404
          %v1426 = vunpack.c.l.b16 %v1405
          %v1427 = vunpack.c.h.b16 %v1405
          %v1428 = vunpack.c.l.b16 %v1406
          %v1429 = vunpack.c.h.b16 %v1406
          %v1430 = vunpack.c.l.b16 %v1407
          %v1431 = vunpack.c.h.b16 %v1407
          %v1432 = vpack.c.b16 %v1416, %v1416
          %v1433 = vpack.c.b16 %v1417, %v1417
          %v1434 = vpack.c.b16 %v1418, %v1418
          %v1435 = vpack.c.b16 %v1419, %v1419
          %v1436 = vpack.c.b16 %v1420, %v1420
          %v1437 = vpack.c.b16 %v1421, %v1421
          %v1438 = vpack.c.b16 %v1422, %v1422
          %v1439 = vpack.c.b16 %v1423, %v1423
          %v1440 = vpack.c.b16 %v1424, %v1424
          %v1441 = vpack.c.b16 %v1425, %v1425
          %v1442 = vpack.c.b16 %v1426, %v1426
          %v1443 = vpack.c.b16 %v1427, %v1427
          %v1444 = vpack.c.b16 %v1428, %v1428
          %v1445 = vpack.c.b16 %v1429, %v1429
          %v1446 = vpack.c.b16 %v1430, %v1430
          %v1447 = vpack.c.b16 %v1431, %v1431
          %1464 = vst [vmem:[%s524] sm:$0xf] %v1432
          %1465 = vst [vmem:[%s524 + $0x4] sm:$0xf] %v1433
          %1466 = vst [vmem:[%s524 + $0x8] sm:$0xf] %v1434
          %1467 = vst [vmem:[%s524 + $0xc] sm:$0xf] %v1435
          %1468 = vst [vmem:[%s524 + $0x10] sm:$0xf] %v1436
          %1469 = vst [vmem:[%s524 + $0x14] sm:$0xf] %v1437
          %1470 = vst [vmem:[%s524 + $0x18] sm:$0xf] %v1438
          %1471 = vst [vmem:[%s524 + $0x1c] sm:$0xf] %v1439
          %1472 = vst [vmem:[%s524 + $0x20] sm:$0xf] %v1440
          %1473 = vst [vmem:[%s524 + $0x24] sm:$0xf] %v1441
          %1474 = vst [vmem:[%s524 + $0x28] sm:$0xf] %v1442
          %1475 = vst [vmem:[%s524 + $0x2c] sm:$0xf] %v1443
          %1476 = vst [vmem:[%s524 + $0x30] sm:$0xf] %v1444
          %1477 = vst [vmem:[%s524 + $0x34] sm:$0xf] %v1445
          %1478 = vst [vmem:[%s524 + $0x38] sm:$0xf] %v1446
          %1479 = vst [vmem:[%s524 + $0x3c] sm:$0xf] %v1447
        $region93: #{_lambda_.8} parent=80 // pred_fallthru
          _
        %s1480 = smul.u32 16, %s23
        %p1481 = scmp.lt.s32.totalorder %s1480, 31
        %s1482 = scalar_select %p1481, %s1480, 31
        %s1483 = smul.addr %s1482, 8
        %s1484 = scalar_lea.vmem %s6, %s1483
        %s1485 = smul.u32 16, %s23
        %p1486 = scmp.lt.s32.totalorder %s1485, 31
        %s1487 = scalar_select %p1486, %s1485, 31
        %s1488 = smul.addr %s1487, 4
        %s1489 = scalar_lea.vmem %s7, %s1488
        // Predicated region
        $region94: #{_lambda_.8} parent=80 // pred_check
          %p1490 = pneg %p207
        $region95: #{_lambda_.8} parent=80 // pred_check_branch
          %1492 = sbr.rel (%p1490) target = $region97
        $region96: #{_lambda_.8} parent=80 // pred_region
          %s1493 = smul.u32 16, %s23
        $region97: #{_lambda_.8} parent=80 // pred_fallthru
          _
        // Predicated region
        $region98: #{_lambda_.8} parent=80 // pred_check
          %p1494 = pneg %p233
        $region99: #{_lambda_.8} parent=80 // pred_check_branch
          %1496 = sbr.rel (%p1494) target = $region101
        $region100: #{_lambda_.8} parent=80 // pred_region
          %s1497 = smul.u32 16, %s23
        $region101: #{_lambda_.8} parent=80 // pred_fallthru
          _
      $region81: #{_lambda_.8} parent=5 // pred_fallthru
        _
      %p1498 = scmp.le.s32.totalorder 2, %s14
      // Predicated region
      $region102: #{_lambda_.8} parent=5 // pred_check
        %p1499 = pneg %p1498
      $region103: #{_lambda_.8} parent=5 // pred_check_branch
        %1501 = sbr.rel (%p1499) target = $region105
      $region104: #{_lambda_.8} parent=5 // pred_region
        %s1502 = ssub.s32 %s14, 2
        // Predicated region
        $region106: #{_lambda_.8} parent=104 // pred_check
          %p1503 = pneg %p213
        $region107: #{_lambda_.8} parent=104 // pred_check_branch
          %1505 = sbr.rel (%p1503) target = $region109
        $region108: #{_lambda_.8} parent=104 // pred_region
          %s1506 = smul.u32 16, %s25
          %p1507 = scmp.lt.s32.totalorder %s1506, 31
          %s1508 = scalar_select %p1507, %s1506, 31
          %s1509 = smul.addr %s1508, 8
          %s1510 = scalar_lea.vmem %s6, %s1509
        $region109: #{_lambda_.8} parent=104 // pred_fallthru
          _
        // Predicated region
        $region110: #{_lambda_.8} parent=104 // pred_check
          %p1511 = pneg %p239
        $region111: #{_lambda_.8} parent=104 // pred_check_branch
          %1513 = sbr.rel (%p1511) target = $region113
        $region112: #{_lambda_.8} parent=104 // pred_region
          %s1514 = smul.u32 16, %s25
          %p1515 = scmp.lt.s32.totalorder %s1514, 31
          %s1516 = scalar_select %p1515, %s1514, 31
          %s1517 = smul.addr %s1516, 4
          %s1518 = scalar_lea.vmem %s7, %s1517
        $region113: #{_lambda_.8} parent=104 // pred_fallthru
          _
      $region105: #{_lambda_.8} parent=5 // pred_fallthru
        _
    $region6: #{_lambda_.8} parent=1 // loop_footer
      %s18 = sadd.s32 1, %s14
    $region7: #{_lambda_.8} parent=1 // loop_footer_branch
      %13 = sbr.rel target = $region3
    $region8: #{_lambda_.8} parent=1 // loop_exit
      _

// kernel: _lambda_.11
$region0: #{_lambda_.11}
  #allocation0 [shape = 'u32[]', space=smem, size = 0x4, offset = 0x4, fixed_abs, tag = 'smem constant byte address 0x4 - core index']
  #allocation1 [shape = 'u32[144,128]{1,0:T(1,128)}', space=vmem, size = 0x12000, scoped, tag = 'internal scratch']
  %s0 = inlined_call_operand.vmem [shape: bf16[256,128], index: 0, kind: input, shape index: {}]
  %s1 = inlined_call_operand.vmem [shape: bf16[128,128], index: 1, kind: input, shape index: {}]
  %s2 = inlined_call_operand.vmem [shape: f32[1,128], index: 2, kind: input, shape index: {}]
  %s3 = inlined_call_operand.vmem [shape: f32[256,128], index: 3, kind: output, shape index: {}]
  %s4 = sld [smem:[#allocation0]]
  $region45: #{_lambda_.11} parent=0
    _
  %s6 = ssub.s32 1, %s4
  %s7 = scalar_select 0, %s6, %s4
  loop: start=0, step=1, limit=4
  $region2: #{_lambda_.11} parent=0 // loop_pre_header
    _
  $region3: #{_lambda_.11} parent=0 // loop_header
    %s9 = sphi 0, %s13
    %p10 = scmp.ge.s32.totalorder %s9, 4
    %s19 = sphi 0, %s21
    %s22 = sphi 0, %s19
    %s23 = sphi 0, %s22
    %s39 = sphi 0, %s23
    %s43 = sphi 0, %s43
    %s45 = sphi 0, %s43
    %s46 = sphi 0, %s45
    %s60 = sphi 0, %s46
    %s64 = sphi 0, %s64
    %s66 = sphi 0, %s64
    %s67 = sphi 0, %s66
    %s81 = sphi 0, %s67
    %s87 = sphi 0, %s89
    %s90 = sphi 0, %s87
    %s91 = sphi 0, %s90
    %s107 = sphi 0, %s91
  $region4: #{_lambda_.11} parent=0 // loop_header_branch
    %12 = sbr.rel (%p10) target = $region8
  $region5: #{_lambda_.11} parent=0 // loop_body
    %s14 = ssub.s32 %s9, 1
    %s15 = ssub.s32 %s9, 2
    %s16 = sadd.s32 %s9, 1
    %s17 = ssub.s32 %s9, %s16
    %p18 = scmp.eq.s32.totalorder %s17, 0
    %s20 = sadd.s32 %s19, 1
    %s21 = scalar_select %p18, %s19, %s20
    %p24 = pneg %p18
    %p25 = scmp.eq.s32.totalorder %s9, 1
    %p26 = por %p24, %p25
    %p27 = scmp.ne.s32.totalorder %s19, %s22
    %p28 = scmp.eq.s32.totalorder %s9, 0
    %p29 = por %p27, %p28
    %p30 = scmp.ne.s32.totalorder %s19, %s22
    %p31 = scmp.eq.s32.totalorder %s14, 1
    %p32 = por %p30, %p31
    %p33 = scmp.ne.s32.totalorder %s22, %s23
    %p34 = scmp.eq.s32.totalorder %s14, 0
    %p35 = por %p33, %p34
    %p36 = scmp.ne.s32.totalorder %s22, %s23
    %p37 = scmp.eq.s32.totalorder %s15, 1
    %p38 = por %p36, %p37
    %p40 = scmp.ne.s32.totalorder %s23, %s39
    %p41 = scmp.eq.s32.totalorder %s15, 0
    %p42 = por %p40, %p41
    %s44 = sadd.s32 %s43, 1
    %p47 = scmp.eq.s32.totalorder %s9, 1
    %p48 = scmp.ne.s32.totalorder %s43, %s45
    %p49 = scmp.eq.s32.totalorder %s9, 0
    %p50 = por %p48, %p49
    %p51 = scmp.ne.s32.totalorder %s43, %s45
    %p52 = scmp.eq.s32.totalorder %s14, 1
    %p53 = por %p51, %p52
    %p54 = scmp.ne.s32.totalorder %s45, %s46
    %p55 = scmp.eq.s32.totalorder %s14, 0
    %p56 = por %p54, %p55
    %p57 = scmp.ne.s32.totalorder %s45, %s46
    %p58 = scmp.eq.s32.totalorder %s15, 1
    %p59 = por %p57, %p58
    %p61 = scmp.ne.s32.totalorder %s46, %s60
    %p62 = scmp.eq.s32.totalorder %s15, 0
    %p63 = por %p61, %p62
    %s65 = sadd.s32 %s64, 1
    %p68 = scmp.eq.s32.totalorder %s9, 1
    %p69 = scmp.ne.s32.totalorder %s64, %s66
    %p70 = scmp.eq.s32.totalorder %s9, 0
    %p71 = por %p69, %p70
    %p72 = scmp.ne.s32.totalorder %s64, %s66
    %p73 = scmp.eq.s32.totalorder %s14, 1
    %p74 = por %p72, %p73
    %p75 = scmp.ne.s32.totalorder %s66, %s67
    %p76 = scmp.eq.s32.totalorder %s14, 0
    %p77 = por %p75, %p76
    %p78 = scmp.ne.s32.totalorder %s66, %s67
    %p79 = scmp.eq.s32.totalorder %s15, 1
    %p80 = por %p78, %p79
    %p82 = scmp.ne.s32.totalorder %s67, %s81
    %p83 = scmp.eq.s32.totalorder %s15, 0
    %p84 = por %p82, %p83
    %s85 = ssub.s32 %s9, %s16
    %p86 = scmp.eq.s32.totalorder %s85, 0
    %s88 = sadd.s32 %s87, 1
    %s89 = scalar_select %p86, %s87, %s88
    %p92 = pneg %p86
    %p93 = scmp.eq.s32.totalorder %s9, 1
    %p94 = por %p92, %p93
    %p95 = scmp.ne.s32.totalorder %s87, %s90
    %p96 = scmp.eq.s32.totalorder %s9, 0
    %p97 = por %p95, %p96
    %p98 = scmp.ne.s32.totalorder %s87, %s90
    %p99 = scmp.eq.s32.totalorder %s14, 1
    %p100 = por %p98, %p99
    %p101 = scmp.ne.s32.totalorder %s90, %s91
    %p102 = scmp.eq.s32.totalorder %s14, 0
    %p103 = por %p101, %p102
    %p104 = scmp.ne.s32.totalorder %s90, %s91
    %p105 = scmp.eq.s32.totalorder %s15, 1
    %p106 = por %p104, %p105
    %p108 = scmp.ne.s32.totalorder %s91, %s107
    %p109 = scmp.eq.s32.totalorder %s15, 0
    %p110 = por %p108, %p109
    %p111 = scmp.le.s32.totalorder 1, %s9
    %p112 = scmp.lt.s32.totalorder %s9, 3
    %p113 = pnand %p111, %p112
    %p114 = pneg %p113
    // Predicated region
    $region9: #{_lambda_.11} parent=5 // pred_check
      _
    $region10: #{_lambda_.11} parent=5 // pred_check_branch
      %116 = sbr.rel (%p113) target = $region12
    $region11: #{_lambda_.11} parent=5 // pred_region
      %s117 = ssub.s32 %s9, 1
      // Predicated region
      $region13: #{_lambda_.11} parent=11 // pred_check
        %p118 = pneg %p56
      $region14: #{_lambda_.11} parent=11 // pred_check_branch
        %120 = sbr.rel (%p118) target = $region16
      $region15: #{_lambda_.11} parent=11 // pred_region
        _
      $region16: #{_lambda_.11} parent=11 // pred_fallthru
        _
      // Predicated region
      $region17: #{_lambda_.11} parent=11 // pred_check
        %p121 = pneg %p77
      $region18: #{_lambda_.11} parent=11 // pred_check_branch
        %123 = sbr.rel (%p121) target = $region20
      $region19: #{_lambda_.11} parent=11 // pred_region
        _
      $region20: #{_lambda_.11} parent=11 // pred_fallthru
        _
    $region12: #{_lambda_.11} parent=5 // pred_fallthru
      _
    %p124 = scmp.lt.s32.totalorder %s9, 2
    // Predicated region
    $region21: #{_lambda_.11} parent=5 // pred_check
      %p125 = pneg %p124
    $region22: #{_lambda_.11} parent=5 // pred_check_branch
      %127 = sbr.rel (%p125) target = $region24
    $region23: #{_lambda_.11} parent=5 // pred_region
      // Predicated region
      $region25: #{_lambda_.11} parent=23 // pred_check
        %p128 = pneg %p29
      $region26: #{_lambda_.11} parent=23 // pred_check_branch
        %130 = sbr.rel (%p128) target = $region28
      $region27: #{_lambda_.11} parent=23 // pred_region
        %s131 = smul.u32 16, %s9
        %p132 = scmp.lt.s32.totalorder %s131, 31
        %s133 = scalar_select %p132, %s131, 31
        %s134 = smul.addr %s133, 4
        %s135 = scalar_lea.vmem %s0, %s134
        %s136 = smul.u32 16, %s9
      $region28: #{_lambda_.11} parent=23 // pred_fallthru
        _
    $region24: #{_lambda_.11} parent=5 // pred_fallthru
      _
    %p137 = scmp.le.s32.totalorder 1, %s9
    %p138 = scmp.lt.s32.totalorder %s9, 3
    %p139 = pnand %p137, %p138
    %p140 = pneg %p139
    // Predicated region
    $region29: #{_lambda_.11} parent=5 // pred_check
      _
    $region30: #{_lambda_.11} parent=5 // pred_check_branch
      %142 = sbr.rel (%p139) target = $region32
    $region31: #{_lambda_.11} parent=5 // pred_region
      %s143 = ssub.s32 %s9, 1
      %s144 = smul.u32 16, %s14
      %p145 = scmp.lt.s32.totalorder %s144, 31
      %s146 = scalar_select %p145, %s144, 31
      %s147 = smul.addr %s146, 4
      %s148 = scalar_lea.vmem %s0, %s147
      %p149 = pneg %p35
      %p150 = pneg %p32
      %p151 = pneg %p56
      %p152 = pneg %p53
      %p153 = pneg %p77
      %p154 = pneg %p74
      %p155 = pneg %p103
      %p156 = pneg %p100
      %s157 = smul.u32 16, %s14
      %p158 = scmp.lt.s32.totalorder %s157, 31
      %s159 = scalar_select %p158, %s157, 31
      %s160 = smul.addr %s159, 8
      %s161 = scalar_lea.vmem %s3, %s160
      %s162 = smul.u32 16, %s14
      %p163 = scmp.lt.s32.totalorder %s162, 31
      %s164 = scalar_select %p163, %s162, 31
      %s165 = smul.addr %s164, 4
      %s166 = scalar_lea.vmem %s0, %s165
      %s167 = smul.u32 16, %s14
      %s168 = smul.u32 16, %s14
      %p169 = scmp.lt.s32.totalorder %s168, 31
      %s170 = scalar_select %p169, %s168, 31
      %s171 = smul.addr %s170, 8
      %s172 = scalar_lea.vmem %s3, %s171
      %s173 = smul.u32 16, %s14
      %v175 = vld [vmem:[%s166] sm:$0xf]
      %v176 = vld [vmem:[%s166 + $0x4] sm:$0xf]
      %v177 = vld [vmem:[%s166 + $0x8] sm:$0xf]
      %v178 = vld [vmem:[%s166 + $0xc] sm:$0xf]
      %v179 = vld [vmem:[%s166 + $0x10] sm:$0xf]
      %v180 = vld [vmem:[%s166 + $0x14] sm:$0xf]
      %v181 = vld [vmem:[%s166 + $0x18] sm:$0xf]
      %v182 = vld [vmem:[%s166 + $0x1c] sm:$0xf]
      %v183 = vld [vmem:[%s166 + $0x20] sm:$0xf]
      %v184 = vld [vmem:[%s166 + $0x24] sm:$0xf]
      %v185 = vld [vmem:[%s166 + $0x28] sm:$0xf]
      %v186 = vld [vmem:[%s166 + $0x2c] sm:$0xf]
      %v187 = vld [vmem:[%s166 + $0x30] sm:$0xf]
      %v188 = vld [vmem:[%s166 + $0x34] sm:$0xf]
      %v189 = vld [vmem:[%s166 + $0x38] sm:$0xf]
      %v190 = vld [vmem:[%s166 + $0x3c] sm:$0xf]
      %v191 = vld [vmem:[%s1] sm:$0xf]
      %v192 = vld [vmem:[%s1 + $0x4] sm:$0xf]
      %v193 = vld [vmem:[%s1 + $0x8] sm:$0xf]
      %v194 = vld [vmem:[%s1 + $0xc] sm:$0xf]
      %v195 = vld [vmem:[%s1 + $0x10] sm:$0xf]
      %v196 = vld [vmem:[%s1 + $0x14] sm:$0xf]
      %v197 = vld [vmem:[%s1 + $0x18] sm:$0xf]
      %v198 = vld [vmem:[%s1 + $0x1c] sm:$0xf]
      %v199 = vld [vmem:[%s1 + $0x20] sm:$0xf]
      %v200 = vld [vmem:[%s1 + $0x24] sm:$0xf]
      %v201 = vld [vmem:[%s1 + $0x28] sm:$0xf]
      %v202 = vld [vmem:[%s1 + $0x2c] sm:$0xf]
      %v203 = vld [vmem:[%s1 + $0x30] sm:$0xf]
      %v204 = vld [vmem:[%s1 + $0x34] sm:$0xf]
      %v205 = vld [vmem:[%s1 + $0x38] sm:$0xf]
      %v206 = vld [vmem:[%s1 + $0x3c] sm:$0xf]
      %v207 = vld [vmem:[%s2] sm:$0x1]
      %v209 = vlaneseq
      %v210 = vshrl.u32 %v209, 7
      %v211 = vsub.s32 0, %v210
      %v212 = vrot.slane %v207, %v211
      %v230 = vunpack.c.l.b16 %v175
      %v231 = vunpack.c.l.b16 %v176
      %v232 = vunpack.c.l.b16 %v177
      %v233 = vunpack.c.l.b16 %v178
      %v234 = vunpack.c.l.b16 %v179
      %v235 = vunpack.c.l.b16 %v180
      %v236 = vunpack.c.l.b16 %v181
      %v237 = vunpack.c.l.b16 %v182
      %v238 = vunpack.c.l.b16 %v183
      %v239 = vunpack.c.l.b16 %v184
      %v240 = vunpack.c.l.b16 %v185
      %v241 = vunpack.c.l.b16 %v186
      %v242 = vunpack.c.l.b16 %v187
      %v243 = vunpack.c.l.b16 %v188
      %v244 = vunpack.c.l.b16 %v189
      %v245 = vunpack.c.l.b16 %v190
      %v246 = vpack.c.b16 %v231, %v230
      %v247 = vpack.c.b16 %v233, %v232
      %v248 = vpack.c.b16 %v235, %v234
      %v249 = vpack.c.b16 %v237, %v236
      %v250 = vpack.c.b16 %v239, %v238
      %v251 = vpack.c.b16 %v241, %v240
      %v252 = vpack.c.b16 %v243, %v242
      %v253 = vpack.c.b16 %v245, %v244
      %v278 = vunpack.c.l.b16 %v191
      %v279 = vunpack.c.l.b16 %v192
      %v280 = vunpack.c.l.b16 %v193
      %v281 = vunpack.c.l.b16 %v194
      %v282 = vunpack.c.l.b16 %v195
      %v283 = vunpack.c.l.b16 %v196
      %v284 = vunpack.c.l.b16 %v197
      %v285 = vunpack.c.l.b16 %v198
      %v286 = vunpack.c.l.b16 %v199
      %v287 = vunpack.c.l.b16 %v200
      %v288 = vunpack.c.l.b16 %v201
      %v289 = vunpack.c.l.b16 %v202
      %v290 = vunpack.c.l.b16 %v203
      %v291 = vunpack.c.l.b16 %v204
      %v292 = vunpack.c.l.b16 %v205
      %v293 = vunpack.c.l.b16 %v206
      %v294 = vpack.c.b16 %v279, %v278
      %v295 = vpack.c.b16 %v281, %v280
      %v296 = vpack.c.b16 %v283, %v282
      %v297 = vpack.c.b16 %v285, %v284
      %v298 = vpack.c.b16 %v287, %v286
      %v299 = vpack.c.b16 %v289, %v288
      %v300 = vpack.c.b16 %v291, %v290
      %v301 = vpack.c.b16 %v293, %v292
      %310 = vmatprep.subr.bf16.mxu0 0
      %311 = vmatpush1.bf16.msra.mxu0 %v294
      %312 = vmatprep.subr.bf16.mxu0 0
      %313 = vmatpush1.bf16.msra.mxu0 %v295
      %314 = vmatprep.subr.bf16.mxu0 0
      %315 = vmatpush1.bf16.msra.mxu0 %v296
      %316 = vmatprep.subr.bf16.mxu0 0
      %317 = vmatpush1.bf16.msra.mxu0 %v297
      %318 = vmatprep.subr.bf16.mxu0 0
      %319 = vmatpush1.bf16.msra.mxu0 %v298
      %320 = vmatprep.subr.bf16.mxu0 0
      %321 = vmatpush1.bf16.msra.mxu0 %v299
      %322 = vmatprep.subr.bf16.mxu0 0
      %323 = vmatpush1.bf16.msra.mxu0 %v300
      %324 = vmatprep.subr.bf16.mxu0 0
      %325 = vmatpush1.bf16.msra.mxu0 %v301
      %326 = vmatprep.subr.bf16.mxu0 0
      %327 = vmatpush1.bf16.msra.mxu0 0
      %328 = vmatprep.subr.bf16.mxu0 0
      %329 = vmatpush1.bf16.msra.mxu0 0
      %330 = vmatprep.subr.bf16.mxu0 0
      %331 = vmatpush1.bf16.msra.mxu0 0
      %332 = vmatprep.subr.bf16.mxu0 0
      %333 = vmatpush1.bf16.msra.mxu0 0
      %334 = vmatprep.subr.bf16.mxu0 0
      %335 = vmatpush1.bf16.msra.mxu0 0
      %336 = vmatprep.subr.bf16.mxu0 0
      %337 = vmatpush1.bf16.msra.mxu0 0
      %338 = vmatprep.subr.bf16.mxu0 0
      %339 = vmatpush1.bf16.msra.mxu0 0
      %340 = vmatprep.subr.bf16.mxu0 0
      %341 = vmatpush1.bf16.msra.mxu0 0
      %342 = vmatprep.mubr.bf16.mxu0 0
      %343 = vmatmul.mubr.bf16.gmra.mrb[0].mxu0 %v246
      %v344 = vpop.f32.mrb[0].mxu0
      %v345 = vadd.f32 %v212, %v344
      %v346 = vpop.f32.mrb[0].mxu0
      %v347 = vpop.f32.mrb[0].mxu0
      %v348 = vadd.f32 %v212, %v347
      %v349 = vpop.f32.mrb[0].mxu0
      %350 = vmatprep.mubr.bf16.mxu0 0
      %351 = vmatmul.mubr.bf16.gmra.mrb[0].mxu0 %v247
      %v352 = vpop.f32.mrb[0].mxu0
      %v353 = vadd.f32 %v212, %v352
      %v354 = vpop.f32.mrb[0].mxu0
      %v355 = vpop.f32.mrb[0].mxu0
      %v356 = vadd.f32 %v212, %v355
      %v357 = vpop.f32.mrb[0].mxu0
      %358 = vmatprep.mubr.bf16.mxu0 0
      %359 = vmatmul.mubr.bf16.gmra.mrb[0].mxu0 %v248
      %v360 = vpop.f32.mrb[0].mxu0
      %v361 = vadd.f32 %v212, %v360
      %v362 = vpop.f32.mrb[0].mxu0
      %v363 = vpop.f32.mrb[0].mxu0
      %v364 = vadd.f32 %v212, %v363
      %v365 = vpop.f32.mrb[0].mxu0
      %366 = vmatprep.mubr.bf16.mxu0 0
      %367 = vmatmul.mubr.bf16.gmra.mrb[0].mxu0 %v249
      %v368 = vpop.f32.mrb[0].mxu0
      %v369 = vadd.f32 %v212, %v368
      %v370 = vpop.f32.mrb[0].mxu0
      %v371 = vpop.f32.mrb[0].mxu0
      %v372 = vadd.f32 %v212, %v371
      %v373 = vpop.f32.mrb[0].mxu0
      %374 = vmatprep.mubr.bf16.mxu0 0
      %375 = vmatmul.mubr.bf16.gmra.mrb[0].mxu0 %v250
      %v376 = vpop.f32.mrb[0].mxu0
      %v377 = vadd.f32 %v212, %v376
      %v378 = vpop.f32.mrb[0].mxu0
      %v379 = vpop.f32.mrb[0].mxu0
      %v380 = vadd.f32 %v212, %v379
      %v381 = vpop.f32.mrb[0].mxu0
      %382 = vmatprep.mubr.bf16.mxu0 0
      %383 = vmatmul.mubr.bf16.gmra.mrb[0].mxu0 %v251
      %v384 = vpop.f32.mrb[0].mxu0
      %v385 = vadd.f32 %v212, %v384
      %v386 = vpop.f32.mrb[0].mxu0
      %v387 = vpop.f32.mrb[0].mxu0
      %v388 = vadd.f32 %v212, %v387
      %v389 = vpop.f32.mrb[0].mxu0
      %390 = vmatprep.mubr.bf16.mxu0 0
      %391 = vmatmul.mubr.bf16.gmra.mrb[0].mxu0 %v252
      %v392 = vpop.f32.mrb[0].mxu0
      %v393 = vadd.f32 %v212, %v392
      %v394 = vpop.f32.mrb[0].mxu0
      %v395 = vpop.f32.mrb[0].mxu0
      %v396 = vadd.f32 %v212, %v395
      %v397 = vpop.f32.mrb[0].mxu0
      %398 = vmatprep.mubr.bf16.mxu0 0
      %399 = vmatmul.mubr.bf16.gmra.mrb[0].mxu0 %v253
      %v400 = vpop.f32.mrb[0].mxu0
      %v401 = vadd.f32 %v212, %v400
      %v402 = vpop.f32.mrb[0].mxu0
      %v403 = vpop.f32.mrb[0].mxu0
      %v404 = vadd.f32 %v212, %v403
      %v405 = vpop.f32.mrb[0].mxu0
      %406 = vdwg.mxu0
      %v407 = vmax.f32 %v345, 0.0
      %v408 = vmax.f32 %v348, 0.0
      %v409 = vmax.f32 %v353, 0.0
      %v410 = vmax.f32 %v356, 0.0
      %v411 = vmax.f32 %v361, 0.0
      %v412 = vmax.f32 %v364, 0.0
      %v413 = vmax.f32 %v369, 0.0
      %v414 = vmax.f32 %v372, 0.0
      %v415 = vmax.f32 %v377, 0.0
      %v416 = vmax.f32 %v380, 0.0
      %v417 = vmax.f32 %v385, 0.0
      %v418 = vmax.f32 %v388, 0.0
      %v419 = vmax.f32 %v393, 0.0
      %v420 = vmax.f32 %v396, 0.0
      %v421 = vmax.f32 %v401, 0.0
      %v422 = vmax.f32 %v404, 0.0
      %423 = vst [vmem:[%s172] sm:$0xff] %v407
      %424 = vst [vmem:[%s172 + $0x8] sm:$0xff] %v408
      %425 = vst [vmem:[%s172 + $0x10] sm:$0xff] %v409
      %426 = vst [vmem:[%s172 + $0x18] sm:$0xff] %v410
      %427 = vst [vmem:[%s172 + $0x20] sm:$0xff] %v411
      %428 = vst [vmem:[%s172 + $0x28] sm:$0xff] %v412
      %429 = vst [vmem:[%s172 + $0x30] sm:$0xff] %v413
      %430 = vst [vmem:[%s172 + $0x38] sm:$0xff] %v414
      %431 = vst [vmem:[%s172 + $0x40] sm:$0xff] %v415
      %432 = vst [vmem:[%s172 + $0x48] sm:$0xff] %v416
      %433 = vst [vmem:[%s172 + $0x50] sm:$0xff] %v417
      %434 = vst [vmem:[%s172 + $0x58] sm:$0xff] %v418
      %435 = vst [vmem:[%s172 + $0x60] sm:$0xff] %v419
      %436 = vst [vmem:[%s172 + $0x68] sm:$0xff] %v420
      %437 = vst [vmem:[%s172 + $0x70] sm:$0xff] %v421
      %438 = vst [vmem:[%s172 + $0x78] sm:$0xff] %v422
      %s439 = smul.u32 16, %s14
      %p440 = scmp.lt.s32.totalorder %s439, 31
      %s441 = scalar_select %p440, %s439, 31
      %s442 = smul.addr %s441, 8
      %s443 = scalar_lea.vmem %s3, %s442
      // Predicated region
      $region33: #{_lambda_.11} parent=31 // pred_check
        %p444 = pneg %p100
      $region34: #{_lambda_.11} parent=31 // pred_check_branch
        %446 = sbr.rel (%p444) target = $region36
      $region35: #{_lambda_.11} parent=31 // pred_region
        %s447 = smul.u32 16, %s14
      $region36: #{_lambda_.11} parent=31 // pred_fallthru
        _
    $region32: #{_lambda_.11} parent=5 // pred_fallthru
      _
    %p448 = scmp.le.s32.totalorder 2, %s9
    // Predicated region
    $region37: #{_lambda_.11} parent=5 // pred_check
      %p449 = pneg %p448
    $region38: #{_lambda_.11} parent=5 // pred_check_branch
      %451 = sbr.rel (%p449) target = $region40
    $region39: #{_lambda_.11} parent=5 // pred_region
      %s452 = ssub.s32 %s9, 2
      // Predicated region
      $region41: #{_lambda_.11} parent=39 // pred_check
        %p453 = pneg %p106
      $region42: #{_lambda_.11} parent=39 // pred_check_branch
        %455 = sbr.rel (%p453) target = $region44
      $region43: #{_lambda_.11} parent=39 // pred_region
        %s456 = smul.u32 16, %s15
        %p457 = scmp.lt.s32.totalorder %s456, 31
        %s458 = scalar_select %p457, %s456, 31
        %s459 = smul.addr %s458, 8
        %s460 = scalar_lea.vmem %s3, %s459
      $region44: #{_lambda_.11} parent=39 // pred_fallthru
        _
    $region40: #{_lambda_.11} parent=5 // pred_fallthru
      _
  $region6: #{_lambda_.11} parent=0 // loop_footer
    %s13 = sadd.s32 1, %s9
  $region7: #{_lambda_.11} parent=0 // loop_footer_branch
    %8 = sbr.rel target = $region3
  $region8: #{_lambda_.11} parent=0 // loop_exit
    _

</llo_original>
